<compile_context>
chip_gen: v5e
topology: v5e:2x2
jax: 0.10.0
libtpu: 0.0.40
codegen_flags: <defaults>
</compile_context>

<pallas_src>
import functools
import math

import jax
import jax.numpy as jnp
from jax import lax
from jax.experimental import pallas as pl
from jax.experimental.pallas import tpu as pltpu
from jax.scipy.linalg import block_diag as jsp_block_diag

F32 = jnp.float32
BF16 = jnp.bfloat16
LN_EPS = 1e-5
GN_EPS = 1e-5
CELL_EPS = 1e-6


# --------------------------------------------------------------------------------------
# in-kernel helpers (exp / log / tanh / rsqrt + basic VPU ops only)
# --------------------------------------------------------------------------------------
def _sigmoid(x):
    return 1.0 / (1.0 + jnp.exp(-x))


def _log_sigmoid(x):
    # log(sigmoid(x)) = min(x, 0) - log(1 + exp(-|x|))
    return jnp.minimum(x, 0.0) - jnp.log(1.0 + jnp.exp(-jnp.abs(x)))


def _mxu(a, w):
    """MXU matmul with bf16 operands and f32 accumulation."""
    return jnp.dot(a.astype(BF16), w.astype(BF16), preferred_element_type=jnp.float32)


def _ln(x2, g_row, b_row, eps):
    """Row-wise layernorm of a 2-D value. g_row/b_row: (1, D) (b_row may be None)."""
    mu = jnp.mean(x2, axis=-1, keepdims=True)
    xc = x2 - mu
    var = jnp.mean(xc * xc, axis=-1, keepdims=True)
    y = xc * lax.rsqrt(var + eps) * g_row
    if b_row is not None:
        y = y + b_row
    return y


def _erf(x):
    # TODO(synk): lax.erf lowering in Mosaic is unverified; exact-erf GELU is kept
    # in-kernel via the Abramowitz-Stegun 7.1.26 rational approx (|abs err| <= 1.5e-7).
    a1, a2, a3, a4, a5 = 0.254829592, -0.284496736, 1.421413741, -1.453152027, 1.061405429
    pp = 0.3275911
    sgn = jnp.where(x >= 0.0, 1.0, -1.0)
    ax = jnp.abs(x)
    t = 1.0 / (1.0 + pp * ax)
    poly = ((((a5 * t + a4) * t + a3) * t + a2) * t + a1) * t
    return sgn * (1.0 - poly * jnp.exp(-ax * ax))


def _causal_conv_silu(x2, conv_w_ref, conv_b_row, S, K, scr):
    """Depthwise causal conv over the sequence (sublane) axis + SiLU.
    y[t] = b + sum_k w[k] * x[t-(K-1)+k] (PyTorch Conv1d with left pad K-1).
    Done with shifted VPU accumulation into a VMEM scratch -- no MXU shift matmuls,
    no (S,S) temporaries."""
    scr[...] = x2 * conv_w_ref[K - 1:K, :]                    # shift == 0 tap
    for k in range(K - 1):
        shift = K - 1 - k
        if shift < S:
            scr[shift:, :] = scr[shift:, :] + x2[:S - shift, :] * conv_w_ref[k:k + 1, :]
    pre = scr[...] + conv_b_row
    return pre * _sigmoid(pre)                                # SiLU


def _full_spec(a):
    n = a.ndim
    return pl.BlockSpec(a.shape, lambda b, n=n: (0,) * n)


# --------------------------------------------------------------------------------------
# small generic kernels (fallback paths only: input proj if block 0 is sLSTM, no-transformer)
# --------------------------------------------------------------------------------------
def _linear_kernel(act, x_ref, w_ref, b_ref, o_ref):
    y = _mxu(x_ref[...], w_ref[...]) + b_ref[...]
    if act == "relu":
        y = jnp.maximum(y, 0.0)
    o_ref[...] = y


def linear(x, w, b=None, act="none"):
    lead, K = x.shape[:-1], x.shape[-1]
    N = w.shape[-1]
    x2 = x.reshape(-1, K)
    if b is None:
        b = jnp.zeros((1, N), F32)
    out = pl.pallas_call(
        functools.partial(_linear_kernel, act),
        out_shape=jax.ShapeDtypeStruct((x2.shape[0], N), F32),
    )(x2, w, b)
    return out.reshape(*lead, N)


def _ln_only_kernel(eps, x_ref, g_ref, o_ref):
    o_ref[...] = _ln(x_ref[...], g_ref[...], None, eps)


def layernorm(x, gamma_row, eps=LN_EPS):
    lead, D = x.shape[:-1], x.shape[-1]
    x2 = x.reshape(-1, D)
    out = pl.pallas_call(
        functools.partial(_ln_only_kernel, eps),
        out_shape=jax.ShapeDtypeStruct(x2.shape, F32),
    )(x2, gamma_row)
    return out.reshape(*lead, D)


# --------------------------------------------------------------------------------------
# fused mLSTM block kernel  (one grid step per batch element)
# --------------------------------------------------------------------------------------
def _mlstm_block_kernel(S, inner, NH, DH, K, fuse_input,
                        x_ref, inw_ref, inb_ref, ln_w_ref, up_w_ref,
                        conv_w_ref, conv_b_ref, qk_w_ref, v_w_ref, gate_b_ref,
                        onorm_w_ref, skip_ref, down_w_ref,
                        o_ref, conv_scr, hnorm_scr):
    xin = x_ref[0]                                                  # (S, Fin) or (S, H)
    if fuse_input:
        # fused input_proj + ReLU (saves a kernel launch + HBM round-trip)
        x = jnp.maximum(_mxu(xin, inw_ref[...]) + inb_ref[...], 0.0)
    else:
        x = xin
    h_in = _ln(x, ln_w_ref[...], None, LN_EPS)

    xz = _mxu(h_in, up_w_ref[...])                                  # (S, 2*inner)
    x_m = xz[:, :inner]
    z = xz[:, inner:]

    # causal depthwise conv + SiLU (VPU shifted accumulation)
    x_c = _causal_conv_silu(x_m, conv_w_ref, conv_b_ref[...], S, K, conv_scr)

    # q, k and the i/f gate preacts come out of ONE matmul (gate weights folded into
    # qk_w / v_w at init time): qk_w is (inner, 2*inner + 2*NH), v_w is (inner, inner + 2*NH).
    qkg = _mxu(x_c, qk_w_ref[...])
    q = qkg[:, :inner]
    kk = qkg[:, inner:2 * inner]
    vg = _mxu(x_m, v_w_ref[...])
    v = vg[:, :inner]
    gates = qkg[:, 2 * inner:] + vg[:, inner:] + gate_b_ref[...]    # (S, 2*NH) = [ig | fg]
    ig_all = gates[:, :NH]
    fg_all = gates[:, NH:]
    logfg_all = _log_sigmoid(fg_all)

    ii = lax.broadcasted_iota(jnp.int32, (S, S), 0)
    jj = lax.broadcasted_iota(jnp.int32, (S, S), 1)
    causal = ii >= jj
    eye = ii == jj

    # inclusive cumulative sum of log forget gates for all heads (one MXU matmul)
    Fcol_all = jnp.dot(causal.astype(jnp.float32), logfg_all,
                       preferred_element_type=jnp.float32)          # (S, NH)
    rpart_all = ig_all - Fcol_all                                    # (S, NH)

    inv_sqrt_dh = 1.0 / math.sqrt(DH)
    for h in range(NH):
        sl = slice(h * DH, (h + 1) * DH)
        Fcol = Fcol_all[:, h:h + 1]                                  # (S, 1)
        # row-layout copy of rpart column h (diag extract; one small (S,S) temp).
        # TODO(synk): at large S derive all head rows at once with a single (S,NH) transpose.
        rrow = jnp.sum(jnp.where(eye, rpart_all[:, h:h + 1], 0.0), axis=0, keepdims=True)
        log_D = jnp.where(causal, Fcol + rrow, -jnp.inf)
        max_log_D = jnp.max(log_D, axis=-1, keepdims=True)
        Dmat = jnp.exp(log_D - max_log_D)

        qh, kh, vh = q[:, sl], kk[:, sl], v[:, sl]
        qkT = lax.dot_general(qh, kh, (((1,), (1,)), ((), ())),
                              preferred_element_type=jnp.float32) * inv_sqrt_dh
        C = qkT * Dmat
        normalizer = jnp.maximum(jnp.abs(jnp.sum(C, axis=-1, keepdims=True)),
                                 jnp.exp(-max_log_D))
        Cn = C * pl.reciprocal(normalizer + CELL_EPS, approx=True)
        ht = jnp.dot(Cn, vh, preferred_element_type=jnp.float32)    # (S, DH)

        # per-head layernorm (per-channel scale, no bias), written straight to scratch
        mu = jnp.mean(ht, axis=-1, keepdims=True)
        c = ht - mu
        var = jnp.mean(c * c, axis=-1, keepdims=True)
        hnorm_scr[:, sl] = c * lax.rsqrt(var + GN_EPS) * onorm_w_ref[:, sl]

    # (hnorm + learnable_skip * x_c) * silu(z), then down projection + residual
    h_state = (hnorm_scr[...] + skip_ref[...] * x_c) * (z * _sigmoid(z))
    o_ref[0] = x + _mxu(h_state, down_w_ref[...])


def mlstm_block(x, p, cfg, in_proj=None):
    B, S, Fx = x.shape
    inner = p["proj_up_w"].shape[1] // 2
    NH = cfg["mlstm_num_heads"]
    DH = inner // NH
    K = p["conv_w"].shape[0]
    H = p["proj_down_w"].shape[1]
    fuse_input = in_proj is not None
    if fuse_input:
        inw, inb = in_proj
    else:
        inw, inb = jnp.zeros((1, 1), F32), jnp.zeros((1, 1), F32)

    kern = functools.partial(_mlstm_block_kernel, S, inner, NH, DH, K, fuse_input)
    args = (x, inw, inb, p["ln_w"], p["proj_up_w"], p["conv_w"], p["conv_b"],
            p["qk_w"], p["v_w"], p["gate_b"], p["outnorm_w"], p["skip"], p["proj_down_w"])
    in_specs = [pl.BlockSpec((1, S, Fx), lambda b: (b, 0, 0))] + [_full_spec(a) for a in args[1:]]
    return pl.pallas_call(
        kern,
        grid=(B,),
        in_specs=in_specs,
        out_specs=pl.BlockSpec((1, S, H), lambda b: (b, 0, 0)),
        out_shape=jax.ShapeDtypeStruct((B, S, H), F32),
        scratch_shapes=[pltpu.VMEM((S, inner), F32),     # conv scratch
                        pltpu.VMEM((S, inner), F32)],    # per-head norm output
        compiler_params=pltpu.CompilerParams(dimension_semantics=("parallel",)),
    )(*args)


# --------------------------------------------------------------------------------------
# fused sLSTM block kernel  (one grid step per batch element; whole block incl. gated FF)
# --------------------------------------------------------------------------------------
def _slstm_block_kernel(S, H, NH, DH, K, FFU,
                        x_ref, ln1_w_ref, conv_w_ref, conv_b_ref,
                        if_w_ref, zo_w_ref, rec_w_ref, bias_ref,
                        gn_w_ref, ln2_w_ref, ffup_w_ref, ffdown_w_ref,
                        o_ref, conv_scr, wx_scr, y_scr):
    x = x_ref[0]                                                     # (S, H)
    h = _ln(x, ln1_w_ref[...], None, LN_EPS)
    x_c = _causal_conv_silu(h, conv_w_ref, conv_b_ref[...], S, K, conv_scr)

    # input-side gate preactivations for the whole sequence, [i|f] from x_c, [z|o] from h,
    # written to a (S, 4H) VMEM scratch (bias folded in once)
    bias = bias_ref[...]                                             # (1, 4H)
    wx_scr[:, :2 * H] = _mxu(x_c, if_w_ref[...]) + bias[:, :2 * H]
    wx_scr[:, 2 * H:] = _mxu(h, zo_w_ref[...]) + bias[:, 2 * H:]

    rec_w = rec_w_ref[...]                                           # (H, 4H) bf16

    def step(t, carry):
        h_st, c_st, n_st, m_st = carry                               # each (1, H) f32
        raw = wx_scr[pl.ds(t, 1), :] + jnp.dot(h_st.astype(BF16), rec_w,
                                               preferred_element_type=jnp.float32)
        i_raw = raw[:, 0:H]
        f_raw = raw[:, H:2 * H]
        z_raw = raw[:, 2 * H:3 * H]
        o_raw = raw[:, 3 * H:]
        logfplusm = m_st + _log_sigmoid(f_raw)                       # -inf at t==0
        m_new = jnp.maximum(i_raw, logfplusm)                        # == i_raw at t==0
        i_g = jnp.exp(i_raw - m_new)
        f_g = jnp.exp(logfplusm - m_new)                             # == 0 at t==0
        o_g = _sigmoid(o_raw)
        c_new = f_g * c_st + i_g * jnp.tanh(z_raw)
        n_new = f_g * n_st + i_g
        h_new = o_g * (c_new / n_new)                                # exact divide kept
        y_scr[pl.ds(t, 1), :] = h_new
        return (h_new, c_new, n_new, m_new)

    zero = jnp.zeros((1, H), jnp.float32)
    _ = lax.fori_loop(0, S, step,
                      (zero, zero, zero, jnp.full((1, H), -jnp.inf, jnp.float32)))

    # per-head group norm (scale only), written into the (now free) conv scratch
    y = y_scr[...]
    for hh in range(NH):
        sl = slice(hh * DH, (hh + 1) * DH)
        yh = y[:, sl]
        mu = jnp.mean(yh, axis=-1, keepdims=True)
        c = yh - mu
        var = jnp.mean(c * c, axis=-1, keepdims=True)
        conv_scr[:, sl] = c * lax.rsqrt(var + GN_EPS) * gn_w_ref[:, sl]

    x1 = x + conv_scr[...]
    h2 = _ln(x1, ln2_w_ref[...], None, LN_EPS)
    u = _mxu(h2, ffup_w_ref[...])                                    # (S, 2*FFU) [gate|up]
    gate = u[:, :FFU]
    up = u[:, FFU:]
    act = 0.5 * gate * (1.0 + _erf(gate * (1.0 / math.sqrt(2.0)))) * up   # exact-erf GELU
    o_ref[0] = x1 + _mxu(act, ffdown_w_ref[...])


def slstm_block(x, p, cfg):
    B, S, H = x.shape
    NH = cfg["slstm_num_heads"]
    DH = H // NH
    K = p["conv_w"].shape[0]
    FFU = p["ff_down_w"].shape[0]

    kern = functools.partial(_slstm_block_kernel, S, H, NH, DH, K, FFU)
    args = (x, p["ln1_w"], p["conv_w"], p["conv_b"], p["if_w"], p["zo_w"],
            p["rec_w"], p["bias"], p["gn_w"], p["ln2_w"], p["ff_up_w"], p["ff_down_w"])
    in_specs = [pl.BlockSpec((1, S, H), lambda b: (b, 0, 0))] + [_full_spec(a) for a in args[1:]]
    return pl.pallas_call(
        kern,
        grid=(B,),
        in_specs=in_specs,
        out_specs=pl.BlockSpec((1, S, H), lambda b: (b, 0, 0)),
        out_shape=jax.ShapeDtypeStruct((B, S, H), F32),
        scratch_shapes=[pltpu.VMEM((S, H), F32),          # conv / groupnorm scratch
                        pltpu.VMEM((S, 4 * H), F32),      # gate preactivations
                        pltpu.VMEM((S, H), F32)],         # per-step hidden states
        compiler_params=pltpu.CompilerParams(dimension_semantics=("parallel",)),
    )(*args)


# --------------------------------------------------------------------------------------
# fused transformer encoder layer kernel (one grid step per batch element)
# --------------------------------------------------------------------------------------
def _transformer_kernel(S, H, NHt, DHt, apply_pre_ln, fuse_head,
                        x_ref, preln_w_ref, inw_ref, inb_ref, outw_ref, outb_ref,
                        ln1w_ref, ln1b_ref, ff1w_ref, ff1b_ref, ff2w_ref, ff2b_ref,
                        ln2w_ref, ln2b_ref, fcw_ref, fcb_ref, o_ref, attn_scr):
    x = x_ref[0]                                                     # (S, H)
    if apply_pre_ln:   # xLSTM post-stack LayerNorm folded into the first encoder layer
        x = _ln(x, preln_w_ref[...], None, LN_EPS)

    qkv = _mxu(x, inw_ref[...]) + inb_ref[...]
    q = qkv[:, :H]
    k = qkv[:, H:2 * H]
    v = qkv[:, 2 * H:]

    scale = 1.0 / math.sqrt(DHt)
    for hh in range(NHt):
        sl = slice(hh * DHt, (hh + 1) * DHt)
        qh, kh, vh = q[:, sl], k[:, sl], v[:, sl]
        s = lax.dot_general(qh, kh, (((1,), (1,)), ((), ())),
                            preferred_element_type=jnp.float32) * scale
        m = jnp.max(s, axis=-1, keepdims=True)
        pmat = jnp.exp(s - m)
        pmat = pmat * pl.reciprocal(jnp.sum(pmat, axis=-1, keepdims=True), approx=True)
        attn_scr[:, sl] = jnp.dot(pmat, vh, preferred_element_type=jnp.float32)

    attn = _mxu(attn_scr[...], outw_ref[...]) + outb_ref[...]

    x = _ln(x + attn, ln1w_ref[...], ln1b_ref[...], LN_EPS)          # post-norm
    ff = jnp.maximum(_mxu(x, ff1w_ref[...]) + ff1b_ref[...], 0.0)
    ff = _mxu(ff, ff2w_ref[...]) + ff2b_ref[...]
    x = _ln(x + ff, ln2w_ref[...], ln2b_ref[...], LN_EPS)

    if fuse_head:
        # last-token slice + fc head fused into the final encoder layer (lane-padded fc)
        last = x[S - 1:S, :]
        o_ref[0] = _mxu(last, fcw_ref[...]) + fcb_ref[...]
    else:
        o_ref[0] = x


def transformer_layer(x, p, pre_ln_w, apply_pre_ln, nhead, head=None):
    B, S, H = x.shape
    DHt = H // nhead
    fuse_head = head is not None
    if fuse_head:
        fcw, fcb = head
        P = fcw.shape[1]
        out_shape = jax.ShapeDtypeStruct((B, 1, P), F32)
        out_spec = pl.BlockSpec((1, 1, P), lambda b: (b, 0, 0))
    else:
        fcw, fcb = jnp.zeros((1, 1), F32), jnp.zeros((1, 1), F32)
        out_shape = jax.ShapeDtypeStruct((B, S, H), F32)
        out_spec = pl.BlockSpec((1, S, H), lambda b: (b, 0, 0))

    kern = functools.partial(_transformer_kernel, S, H, nhead, DHt, apply_pre_ln, fuse_head)
    args = (x, pre_ln_w, p["in_proj_w"], p["in_proj_b"], p["out_proj_w"], p["out_proj_b"],
            p["ln1_w"], p["ln1_b"], p["ff1_w"], p["ff1_b"], p["ff2_w"], p["ff2_b"],
            p["ln2_w"], p["ln2_b"], fcw, fcb)
    in_specs = [pl.BlockSpec((1, S, H), lambda b: (b, 0, 0))] + [_full_spec(a) for a in args[1:]]
    return pl.pallas_call(
        kern,
        grid=(B,),
        in_specs=in_specs,
        out_specs=out_spec,
        out_shape=out_shape,
        scratch_shapes=[pltpu.VMEM((S, H), F32)],
        compiler_params=pltpu.CompilerParams(dimension_semantics=("parallel",)),
    )(*args)


# --------------------------------------------------------------------------------------
# model forward (thin JAX glue over the fused kernels)
# --------------------------------------------------------------------------------------
def forward(params, x, cfg):
    slstm_at = set(cfg["slstm_at"])
    first_is_mlstm = 0 not in slstm_at
    if not first_is_mlstm:
        # fallback: standalone input projection when block 0 is an sLSTM block
        x = linear(x, params["in_w"], params["in_b"], act="relu")

    for bi, bp in enumerate(params["blocks"]):
        if bi in slstm_at:
            x = slstm_block(x, bp, cfg)
        else:
            in_proj = (params["in_w"], params["in_b"]) if (bi == 0 and first_is_mlstm) else None
            x = mlstm_block(x, bp, cfg, in_proj=in_proj)

    out_dim = cfg["output_dim"]
    layers = params["transformer"]
    if layers:
        nl = len(layers)
        for li, lp in enumerate(layers):
            head = (params["fc_w_pad"], params["fc_b_pad"]) if li == nl - 1 else None
            x = transformer_layer(x, lp, params["post_norm_w"],
                                  apply_pre_ln=(li == 0),
                                  nhead=cfg["transformer_nhead"], head=head)
        return x[:, 0, :out_dim]

    # fallback: no transformer layers
    x = layernorm(x, params["post_norm_w"])
    agg = x[:, -1, :]
    out = linear(agg, params["fc_w_pad"], params["fc_b_pad"])
    return out[:, :out_dim]


# --------------------------------------------------------------------------------------
# deterministic parameter initialization (synthetic; shapes follow the module config)
# --------------------------------------------------------------------------------------
def _round_up(v, m):
    return int(math.ceil(v / m) * m)


def init_params(cfg, key):
    H, Fin = cfg["hidden_dim"], cfg["num_features"]
    ks = iter(jax.random.split(key, 2048))

    def rnd(shape, scale=0.08):
        return (scale * jax.random.normal(next(ks), shape)).astype(F32)

    def bdiag(blocks):
        return jsp_block_diag(*blocks).astype(F32)

    p = {"in_w": rnd((Fin, H)).astype(BF16), "in_b": rnd((1, H), 0.02)}

    inner = _round_up(2.0 * H, 64)                         # mLSTM proj_factor=2.0
    qkv_bs = cfg["mlstm_qkv_proj_blocksize"]
    n_qkv = inner // qkv_bs
    NHm = cfg["mlstm_num_heads"]
    Km = cfg["mlstm_conv_kernel"]
    NHs = cfg["slstm_num_heads"]
    DHs = H // NHs
    Ks = cfg["slstm_conv_kernel"]
    ff_up = _round_up(cfg["ff_proj_factor"] * H, 64)
    nb = cfg["xlstm_num_blocks"]

    blocks = []
    for bi in range(nb):
        if bi in cfg["slstm_at"]:
            ratio = bi / max(nb - 1, 1)
            # powerlaw block-dependent forget-gate bias (slstm_bias_init)
            dfrac = jnp.arange(DHs, dtype=F32) / max(DHs - 1, 1)
            fbias = jnp.tile(3.0 + 4.0 * dfrac ** (0.3 + 1.3 * ratio), NHs).astype(F32)
            bias = jnp.concatenate(
                [jnp.zeros((H,), F32), fbias, jnp.zeros((H,), F32), jnp.zeros((H,), F32)]
            ).reshape(1, 4 * H)
            blk = dict(
                ln1_w=jnp.ones((1, H), F32),
                conv_w=rnd((Ks, H)), conv_b=rnd((1, H), 0.02),
                # [i|f] from conv'd activation, [z|o] from h (per-head block-diagonal)
                if_w=jnp.concatenate(
                    [bdiag([rnd((DHs, DHs)) for _ in range(NHs)]),
                     bdiag([rnd((DHs, DHs)) for _ in range(NHs)])], axis=1).astype(BF16),
                zo_w=jnp.concatenate(
                    [bdiag([rnd((DHs, DHs)) for _ in range(NHs)]),
                     bdiag([rnd((DHs, DHs)) for _ in range(NHs)])], axis=1).astype(BF16),
                rec_w=jnp.concatenate(
                    [bdiag([rnd((DHs, DHs)) for _ in range(NHs)]) for _ in range(4)],
                    axis=1).astype(BF16),
                bias=bias,
                gn_w=jnp.ones((1, H), F32),
                ln2_w=jnp.ones((1, H), F32),
                ff_up_w=rnd((H, 2 * ff_up)).astype(BF16),
                ff_down_w=rnd((ff_up, H)).astype(BF16),
            )
        else:
            # q/k/v block-diagonal projections
            q_w0 = bdiag([rnd((qkv_bs, qkv_bs)) for _ in range(n_qkv)])
            k_w0 = bdiag([rnd((qkv_bs, qkv_bs)) for _ in range(n_qkv)])
            v_w0 = bdiag([rnd((qkv_bs, qkv_bs)) for _ in range(n_qkv)])
            # i/f gate: Linear(3*inner -> NH) on [q|k|v]; fold into qk_w / v_w at init
            ig_w = rnd((3 * inner, NHm))
            ig_b = rnd((NHm,), 0.02)
            fg_w = rnd((3 * inner, NHm))
            fg_b = jnp.linspace(3.0, 6.0, NHm).astype(F32)
            gate_full = jnp.concatenate([ig_w, fg_w], axis=1)          # (3*inner, 2*NH)
            wg_q = gate_full[:inner]
            wg_k = gate_full[inner:2 * inner]
            wg_v = gate_full[2 * inner:]
            qk_w = jnp.concatenate([q_w0, k_w0, q_w0 @ wg_q + k_w0 @ wg_k], axis=1)
            v_w = jnp.concatenate([v_w0, v_w0 @ wg_v], axis=1)
            blk = dict(
                ln_w=jnp.ones((1, H), F32),
                proj_up_w=rnd((H, 2 * inner)).astype(BF16),
                conv_w=rnd((Km, inner)), conv_b=rnd((1, inner), 0.02),
                qk_w=qk_w.astype(BF16),                                # (inner, 2*inner+2*NH)
                v_w=v_w.astype(BF16),                                  # (inner, inner+2*NH)
                gate_b=jnp.concatenate([ig_b, fg_b]).reshape(1, 2 * NHm),
                outnorm_w=jnp.ones((1, inner), F32),
                skip=jnp.ones((1, inner), F32),
                proj_down_w=rnd((inner, H)).astype(BF16),
            )
        blocks.append(blk)
    p["blocks"] = blocks
    p["post_norm_w"] = jnp.ones((1, H), F32)

    dff = cfg["transformer_dim_feedforward"]
    p["transformer"] = [
        dict(
            in_proj_w=rnd((H, 3 * H)).astype(BF16), in_proj_b=rnd((1, 3 * H), 0.02),
            out_proj_w=rnd((H, H)).astype(BF16), out_proj_b=rnd((1, H), 0.02),
            ln1_w=jnp.ones((1, H), F32), ln1_b=jnp.zeros((1, H), F32),
            ff1_w=rnd((H, dff)).astype(BF16), ff1_b=rnd((1, dff), 0.02),
            ff2_w=rnd((dff, H)).astype(BF16), ff2_b=rnd((1, H), 0.02),
            ln2_w=jnp.ones((1, H), F32), ln2_b=jnp.zeros((1, H), F32),
        )
        for _ in range(cfg["transformer_layers"])
    ]

    # fc head, lane-padded to a dense 128-lane output slab (sliced back in the wrapper)
    out_dim = cfg["output_dim"]
    P = _round_up(max(out_dim, 1), 128)
    fc_w = rnd((H, out_dim))
    fc_b = rnd((1, out_dim), 0.02)
    p["fc_w_pad"] = jnp.zeros((H, P), F32).at[:, :out_dim].set(fc_w).astype(BF16)
    p["fc_b_pad"] = jnp.zeros((1, P), F32).at[:, :out_dim].set(fc_b)
    return p


# --------------------------------------------------------------------------------------
if __name__ == "__main__":
    cfg = dict(
        num_features=4,
        hidden_dim=32,
        sequence_length=8,
        mlstm_conv_kernel=4,
        mlstm_qkv_proj_blocksize=4,
        mlstm_num_heads=4,
        slstm_backend="vanilla",
        slstm_num_heads=4,
        slstm_conv_kernel=4,
        slstm_bias_init="powerlaw_blockdependent",
        ff_proj_factor=1.3,
        ff_act_fn="gelu",
        xlstm_num_blocks=2,
        slstm_at=[1],
        transformer_nhead=4,
        transformer_dim_feedforward=64,
        transformer_layers=1,
        dropout=0.1,
        output_dim=3,
    )

    key = jax.random.PRNGKey(0)
    pkey, xkey = jax.random.split(key)
    params = init_params(cfg, pkey)

    B = 2
    x = jax.random.normal(xkey, (B, cfg["sequence_length"], cfg["num_features"]), dtype=F32)

    fwd = jax.jit(lambda p, xx: forward(p, xx, cfg))
    out = fwd(params, x)
    out = jax.block_until_ready(out)

    assert out.shape == (B, cfg["output_dim"]), out.shape
    assert bool(jnp.all(jnp.isfinite(out)))
    print("KERNEL_OK")
</pallas_src>

<mosaic_0001>
module attributes {stable_mosaic.version = 11 : i64} {
  func.func @_slstm_block_kernel(%arg0: i32, %arg1: memref<1x8x32xf32, #tpu.memory_space<vmem>>, %arg2: memref<1x32xf32, #tpu.memory_space<vmem>>, %arg3: memref<4x32xf32, #tpu.memory_space<vmem>>, %arg4: memref<1x32xf32, #tpu.memory_space<vmem>>, %arg5: memref<32x64xbf16, #tpu.memory_space<vmem>>, %arg6: memref<32x64xbf16, #tpu.memory_space<vmem>>, %arg7: memref<32x128xbf16, #tpu.memory_space<vmem>>, %arg8: memref<1x128xf32, #tpu.memory_space<vmem>>, %arg9: memref<1x32xf32, #tpu.memory_space<vmem>>, %arg10: memref<1x32xf32, #tpu.memory_space<vmem>>, %arg11: memref<32x128xbf16, #tpu.memory_space<vmem>>, %arg12: memref<64x32xbf16, #tpu.memory_space<vmem>>, %arg13: memref<1x8x32xf32, #tpu.memory_space<vmem>>, %arg14: memref<8x32xf32, #tpu.memory_space<vmem>>, %arg15: memref<8x128xf32, #tpu.memory_space<vmem>>, %arg16: memref<8x32xf32, #tpu.memory_space<vmem>>) attributes {dimension_semantics = [#tpu.dimension_semantics<parallel>], iteration_bounds = array<i64: 2>, scalar_prefetch = 0 : i64, scratch_operands = 3 : i64, tpu.core_type = #tpu.core_type<tc>, window_params = [{transform_indices = @transform_0, window_bounds = array<i64: 1, 8, 32>}, {pipeline_mode = #tpu.pipeline_mode<synchronous>, transform_indices = @transform_1, window_bounds = array<i64: 1, 32>}, {pipeline_mode = #tpu.pipeline_mode<synchronous>, transform_indices = @transform_2, window_bounds = array<i64: 4, 32>}, {pipeline_mode = #tpu.pipeline_mode<synchronous>, transform_indices = @transform_3, window_bounds = array<i64: 1, 32>}, {pipeline_mode = #tpu.pipeline_mode<synchronous>, transform_indices = @transform_4, window_bounds = array<i64: 32, 64>}, {pipeline_mode = #tpu.pipeline_mode<synchronous>, transform_indices = @transform_5, window_bounds = array<i64: 32, 64>}, {pipeline_mode = #tpu.pipeline_mode<synchronous>, transform_indices = @transform_6, window_bounds = array<i64: 32, 128>}, {pipeline_mode = #tpu.pipeline_mode<synchronous>, transform_indices = @transform_7, window_bounds = array<i64: 1, 128>}, {pipeline_mode = #tpu.pipeline_mode<synchronous>, transform_indices = @transform_8, window_bounds = array<i64: 1, 32>}, {pipeline_mode = #tpu.pipeline_mode<synchronous>, transform_indices = @transform_9, window_bounds = array<i64: 1, 32>}, {pipeline_mode = #tpu.pipeline_mode<synchronous>, transform_indices = @transform_10, window_bounds = array<i64: 32, 128>}, {pipeline_mode = #tpu.pipeline_mode<synchronous>, transform_indices = @transform_11, window_bounds = array<i64: 64, 32>}, {transform_indices = @transform_12, window_bounds = array<i64: 1, 8, 32>}]} {
    %c0 = arith.constant 0 : index
    %c0_0 = arith.constant 0 : index
    %c0_1 = arith.constant 0 : index
    %0 = vector.load %arg1[%c0, %c0_0, %c0_1] : memref<1x8x32xf32, #tpu.memory_space<vmem>>, vector<1x8x32xf32>
    %1 = vector.shape_cast %0 : vector<1x8x32xf32> to vector<8x32xf32>
    %c0_2 = arith.constant 0 : index
    %c0_3 = arith.constant 0 : index
    %2 = vector.load %arg2[%c0_2, %c0_3] : memref<1x32xf32, #tpu.memory_space<vmem>>, vector<1x32xf32>
    %cst = arith.constant dense<0.000000e+00> : vector<8xf32>
    %3 = vector.multi_reduction <add>, %1, %cst [1] : vector<8x32xf32> to vector<8xf32>
    %4 = vector.shape_cast %3 : vector<8xf32> to vector<8x1xf32>
    %cst_4 = arith.constant 3.200000e+01 : f32
    %5 = vector.broadcast %cst_4 : f32 to vector<8x1xf32>
    %6 = arith.divf %4, %5 : vector<8x1xf32>
    %7 = vector.broadcast %6 : vector<8x1xf32> to vector<8x32xf32>
    %8 = arith.subf %1, %7 : vector<8x32xf32>
    %9 = arith.mulf %8, %8 : vector<8x32xf32>
    %cst_5 = arith.constant dense<0.000000e+00> : vector<8xf32>
    %10 = vector.multi_reduction <add>, %9, %cst_5 [1] : vector<8x32xf32> to vector<8xf32>
    %11 = vector.shape_cast %10 : vector<8xf32> to vector<8x1xf32>
    %cst_6 = arith.constant 3.200000e+01 : f32
    %12 = vector.broadcast %cst_6 : f32 to vector<8x1xf32>
    %13 = arith.divf %11, %12 : vector<8x1xf32>
    %cst_7 = arith.constant 9.99999974E-6 : f32
    %14 = vector.broadcast %cst_7 : f32 to vector<8x1xf32>
    %15 = arith.addf %13, %14 : vector<8x1xf32>
    %16 = math.rsqrt %15 : vector<8x1xf32>
    %17 = vector.broadcast %16 : vector<8x1xf32> to vector<8x32xf32>
    %18 = arith.mulf %8, %17 : vector<8x32xf32>
    %19 = vector.broadcast %2 : vector<1x32xf32> to vector<8x32xf32>
    %20 = arith.mulf %18, %19 : vector<8x32xf32>
    %c0_8 = arith.constant 0 : index
    %c0_9 = arith.constant 0 : index
    %21 = vector.load %arg4[%c0_8, %c0_9] : memref<1x32xf32, #tpu.memory_space<vmem>>, vector<1x32xf32>
    %c3 = arith.constant 3 : index
    %c0_10 = arith.constant 0 : index
    %22 = vector.load %arg3[%c3, %c0_10] : memref<4x32xf32, #tpu.memory_space<vmem>>, vector<1x32xf32>
    %23 = vector.broadcast %22 : vector<1x32xf32> to vector<8x32xf32>
    %24 = arith.mulf %20, %23 : vector<8x32xf32>
    %c0_11 = arith.constant 0 : index
    %c0_12 = arith.constant 0 : index
    %25 = vector.load %arg14[%c0_11, %c0_12] : memref<8x32xf32, #tpu.memory_space<vmem>>, vector<8x32xf32>
    tpu.vector_store %arg14[%c0_11, %c0_12], %24 {strides = array<i32>} : memref<8x32xf32, #tpu.memory_space<vmem>>, vector<8x32xf32>,
    %c3_13 = arith.constant 3 : index
    %c0_14 = arith.constant 0 : index
    %26 = vector.load %arg14[%c3_13, %c0_14] : memref<8x32xf32, #tpu.memory_space<vmem>>, vector<5x32xf32>
    %27 = vector.extract_strided_slice %20 {offsets = [0, 0], sizes = [5, 32], strides = [1, 1]} : vector<8x32xf32> to vector<5x32xf32>
    %c0_15 = arith.constant 0 : index
    %c0_16 = arith.constant 0 : index
    %28 = vector.load %arg3[%c0_15, %c0_16] : memref<4x32xf32, #tpu.memory_space<vmem>>, vector<1x32xf32>
    %29 = vector.broadcast %28 : vector<1x32xf32> to vector<5x32xf32>
    %30 = arith.mulf %27, %29 : vector<5x32xf32>
    %31 = arith.addf %26, %30 : vector<5x32xf32>
    %c3_17 = arith.constant 3 : index
    %c0_18 = arith.constant 0 : index
    %32 = vector.load %arg14[%c3_17, %c0_18] : memref<8x32xf32, #tpu.memory_space<vmem>>, vector<5x32xf32>
    tpu.vector_store %arg14[%c3_17, %c0_18], %31 {strides = array<i32>} : memref<8x32xf32, #tpu.memory_space<vmem>>, vector<5x32xf32>,
    %c2 = arith.constant 2 : index
    %c0_19 = arith.constant 0 : index
    %33 = vector.load %arg14[%c2, %c0_19] : memref<8x32xf32, #tpu.memory_space<vmem>>, vector<6x32xf32>
    %34 = vector.extract_strided_slice %20 {offsets = [0, 0], sizes = [6, 32], strides = [1, 1]} : vector<8x32xf32> to vector<6x32xf32>
    %c1 = arith.constant 1 : index
    %c0_20 = arith.constant 0 : index
    %35 = vector.load %arg3[%c1, %c0_20] : memref<4x32xf32, #tpu.memory_space<vmem>>, vector<1x32xf32>
    %36 = vector.broadcast %35 : vector<1x32xf32> to vector<6x32xf32>
    %37 = arith.mulf %34, %36 : vector<6x32xf32>
    %38 = arith.addf %33, %37 : vector<6x32xf32>
    %c2_21 = arith.constant 2 : index
    %c0_22 = arith.constant 0 : index
    %39 = vector.load %arg14[%c2_21, %c0_22] : memref<8x32xf32, #tpu.memory_space<vmem>>, vector<6x32xf32>
    tpu.vector_store %arg14[%c2_21, %c0_22], %38 {strides = array<i32>} : memref<8x32xf32, #tpu.memory_space<vmem>>, vector<6x32xf32>,
    %c1_23 = arith.constant 1 : index
    %c0_24 = arith.constant 0 : index
    %40 = vector.load %arg14[%c1_23, %c0_24] : memref<8x32xf32, #tpu.memory_space<vmem>>, vector<7x32xf32>
    %41 = vector.extract_strided_slice %20 {offsets = [0, 0], sizes = [7, 32], strides = [1, 1]} : vector<8x32xf32> to vector<7x32xf32>
    %c2_25 = arith.constant 2 : index
    %c0_26 = arith.constant 0 : index
    %42 = vector.load %arg3[%c2_25, %c0_26] : memref<4x32xf32, #tpu.memory_space<vmem>>, vector<1x32xf32>
    %43 = vector.broadcast %42 : vector<1x32xf32> to vector<7x32xf32>
    %44 = arith.mulf %41, %43 : vector<7x32xf32>
    %45 = arith.addf %40, %44 : vector<7x32xf32>
    %c1_27 = arith.constant 1 : index
    %c0_28 = arith.constant 0 : index
    %46 = vector.load %arg14[%c1_27, %c0_28] : memref<8x32xf32, #tpu.memory_space<vmem>>, vector<7x32xf32>
    tpu.vector_store %arg14[%c1_27, %c0_28], %45 {strides = array<i32>} : memref<8x32xf32, #tpu.memory_space<vmem>>, vector<7x32xf32>,
    %c0_29 = arith.constant 0 : index
    %c0_30 = arith.constant 0 : index
    %47 = vector.load %arg14[%c0_29, %c0_30] : memref<8x32xf32, #tpu.memory_space<vmem>>, vector<8x32xf32>
    %48 = vector.broadcast %21 : vector<1x32xf32> to vector<8x32xf32>
    %49 = arith.addf %47, %48 : vector<8x32xf32>
    %cst_31 = arith.constant 0.000000e+00 : f32
    %50 = vector.broadcast %cst_31 : f32 to vector<8x32xf32>
    %51 = arith.subf %50, %49 : vector<8x32xf32>
    %52 = math.exp %51 : vector<8x32xf32>
    %cst_32 = arith.constant 1.000000e+00 : f32
    %53 = vector.broadcast %cst_32 : f32 to vector<8x32xf32>
    %54 = arith.addf %53, %52 : vector<8x32xf32>
    %cst_33 = arith.constant 1.000000e+00 : f32
    %55 = vector.broadcast %cst_33 : f32 to vector<8x32xf32>
    %56 = arith.divf %55, %54 : vector<8x32xf32>
    %57 = arith.mulf %49, %56 : vector<8x32xf32>
    %c0_34 = arith.constant 0 : index
    %c0_35 = arith.constant 0 : index
    %58 = vector.load %arg8[%c0_34, %c0_35] : memref<1x128xf32, #tpu.memory_space<vmem>>, vector<1x128xf32>
    %c0_36 = arith.constant 0 : index
    %c0_37 = arith.constant 0 : index
    %59 = vector.load %arg5[%c0_36, %c0_37] : memref<32x64xbf16, #tpu.memory_space<vmem>>, vector<32x64xbf16>
    %60 = arith.truncf %57 : vector<8x32xf32> to vector<8x32xbf16>
    %cst_38 = arith.constant dense<0.000000e+00> : vector<8x64xf32>
    %61 = tpu.matmul %60, %59, %cst_38 {dimension_numbers = #tpu.dot_dimension_numbers<[1], [0], [0], [1], [0, 0, 1, 1], [], []>} : vector<8x32xbf16>, vector<32x64xbf16>, vector<8x64xf32> -> vector<8x64xf32>
    %62 = vector.extract_strided_slice %58 {offsets = [0, 0], sizes = [1, 64], strides = [1, 1]} : vector<1x128xf32> to vector<1x64xf32>
    %63 = vector.broadcast %62 : vector<1x64xf32> to vector<8x64xf32>
    %64 = arith.addf %61, %63 : vector<8x64xf32>
    %c0_39 = arith.constant 0 : index
    %c0_40 = arith.constant 0 : index
    %65 = vector.load %arg15[%c0_39, %c0_40] : memref<8x128xf32, #tpu.memory_space<vmem>>, vector<8x64xf32>
    tpu.vector_store %arg15[%c0_39, %c0_40], %64 {strides = array<i32>} : memref<8x128xf32, #tpu.memory_space<vmem>>, vector<8x64xf32>,
    %c0_41 = arith.constant 0 : index
    %c0_42 = arith.constant 0 : index
    %66 = vector.load %arg6[%c0_41, %c0_42] : memref<32x64xbf16, #tpu.memory_space<vmem>>, vector<32x64xbf16>
    %67 = arith.truncf %20 : vector<8x32xf32> to vector<8x32xbf16>
    %cst_43 = arith.constant dense<0.000000e+00> : vector<8x64xf32>
    %68 = tpu.matmul %67, %66, %cst_43 {dimension_numbers = #tpu.dot_dimension_numbers<[1], [0], [0], [1], [0, 0, 1, 1], [], []>} : vector<8x32xbf16>, vector<32x64xbf16>, vector<8x64xf32> -> vector<8x64xf32>
    %69 = vector.extract_strided_slice %58 {offsets = [0, 64], sizes = [1, 64], strides = [1, 1]} : vector<1x128xf32> to vector<1x64xf32>
    %70 = vector.broadcast %69 : vector<1x64xf32> to vector<8x64xf32>
    %71 = arith.addf %68, %70 : vector<8x64xf32>
    %c0_44 = arith.constant 0 : index
    %c64 = arith.constant 64 : index
    %72 = vector.load %arg15[%c0_44, %c64] : memref<8x128xf32, #tpu.memory_space<vmem>>, vector<8x64xf32>
    tpu.vector_store %arg15[%c0_44, %c64], %71 {strides = array<i32>} : memref<8x128xf32, #tpu.memory_space<vmem>>, vector<8x64xf32>,
    %c0_45 = arith.constant 0 : index
    %c0_46 = arith.constant 0 : index
    %73 = vector.load %arg7[%c0_45, %c0_46] : memref<32x128xbf16, #tpu.memory_space<vmem>>, vector<32x128xbf16>
    %cst_47 = arith.constant 0.000000e+00 : f32
    %74 = vector.broadcast %cst_47 : f32 to vector<1x32xf32>
    %cst_48 = arith.constant 0xFF800000 : f32
    %75 = vector.broadcast %cst_48 : f32 to vector<1x32xf32>
    %c0_i32 = arith.constant 0 : i32
    %c8_i32 = arith.constant 8 : i32
    %76 = arith.addi %c0_i32, %c8_i32 : i32
    %c1_i32 = arith.constant 1 : i32
    %77:4 = scf.for %arg17 = %c0_i32 to %76 step %c1_i32 iter_args(%arg18 = %74, %arg19 = %74, %arg20 = %74, %arg21 = %75) -> (vector<1x32xf32>, vector<1x32xf32>, vector<1x32xf32>, vector<1x32xf32>)  : i32 {
      %238 = arith.index_cast %arg17 : i32 to index
      %c0_119 = arith.constant 0 : index
      %239 = vector.load %arg15[%238, %c0_119] : memref<8x128xf32, #tpu.memory_space<vmem>>, vector<1x128xf32>
      %240 = arith.truncf %arg18 : vector<1x32xf32> to vector<1x32xbf16>
      %cst_120 = arith.constant dense<0.000000e+00> : vector<1x128xf32>
      %241 = tpu.matmul %240, %73, %cst_120 {dimension_numbers = #tpu.dot_dimension_numbers<[1], [0], [0], [1], [0, 0, 1, 1], [], []>} : vector<1x32xbf16>, vector<32x128xbf16>, vector<1x128xf32> -> vector<1x128xf32>
      %242 = arith.addf %239, %241 : vector<1x128xf32>
      %243 = vector.extract_strided_slice %242 {offsets = [0, 0], sizes = [1, 32], strides = [1, 1]} : vector<1x128xf32> to vector<1x32xf32>
      %244 = vector.extract_strided_slice %242 {offsets = [0, 32], sizes = [1, 32], strides = [1, 1]} : vector<1x128xf32> to vector<1x32xf32>
      %245 = vector.extract_strided_slice %242 {offsets = [0, 64], sizes = [1, 32], strides = [1, 1]} : vector<1x128xf32> to vector<1x32xf32>
      %246 = vector.extract_strided_slice %242 {offsets = [0, 96], sizes = [1, 32], strides = [1, 1]} : vector<1x128xf32> to vector<1x32xf32>
      %cst_121 = arith.constant 0.000000e+00 : f32
      %247 = vector.broadcast %cst_121 : f32 to vector<1x32xf32>
      %248 = arith.minimumf %244, %247 : vector<1x32xf32>
      %249 = math.absf %244 : vector<1x32xf32>
      %cst_122 = arith.constant 0.000000e+00 : f32
      %250 = vector.broadcast %cst_122 : f32 to vector<1x32xf32>
      %251 = arith.subf %250, %249 : vector<1x32xf32>
      %252 = math.exp %251 : vector<1x32xf32>
      %cst_123 = arith.constant 1.000000e+00 : f32
      %253 = vector.broadcast %cst_123 : f32 to vector<1x32xf32>
      %254 = arith.addf %253, %252 : vector<1x32xf32>
      %255 = math.log %254 : vector<1x32xf32>
      %256 = arith.subf %248, %255 : vector<1x32xf32>
      %257 = arith.addf %arg21, %256 : vector<1x32xf32>
      %258 = arith.maximumf %243, %257 : vector<1x32xf32>
      %259 = arith.subf %243, %258 : vector<1x32xf32>
      %260 = math.exp %259 : vector<1x32xf32>
      %261 = arith.subf %257, %258 : vector<1x32xf32>
      %262 = math.exp %261 : vector<1x32xf32>
      %cst_124 = arith.constant 0.000000e+00 : f32
      %263 = vector.broadcast %cst_124 : f32 to vector<1x32xf32>
      %264 = arith.subf %263, %246 : vector<1x32xf32>
      %265 = math.exp %264 : vector<1x32xf32>
      %cst_125 = arith.constant 1.000000e+00 : f32
      %266 = vector.broadcast %cst_125 : f32 to vector<1x32xf32>
      %267 = arith.addf %266, %265 : vector<1x32xf32>
      %cst_126 = arith.constant 1.000000e+00 : f32
      %268 = vector.broadcast %cst_126 : f32 to vector<1x32xf32>
      %269 = arith.divf %268, %267 : vector<1x32xf32>
      %270 = arith.mulf %262, %arg19 : vector<1x32xf32>
      %271 = math.tanh %245 : vector<1x32xf32>
      %272 = arith.mulf %260, %271 : vector<1x32xf32>
      %273 = arith.addf %270, %272 : vector<1x32xf32>
      %274 = arith.mulf %262, %arg20 : vector<1x32xf32>
      %275 = arith.addf %274, %260 : vector<1x32xf32>
      %276 = arith.divf %273, %275 : vector<1x32xf32>
      %277 = arith.mulf %269, %276 : vector<1x32xf32>
      %278 = arith.index_cast %arg17 : i32 to index
      %c0_127 = arith.constant 0 : index
      %279 = vector.load %arg16[%278, %c0_127] : memref<8x32xf32, #tpu.memory_space<vmem>>, vector<1x32xf32>
      tpu.vector_store %arg16[%278, %c0_127], %277 {strides = array<i32>} : memref<8x32xf32, #tpu.memory_space<vmem>>, vector<1x32xf32>,
      scf.yield %277, %273, %275, %258 : vector<1x32xf32>, vector<1x32xf32>, vector<1x32xf32>, vector<1x32xf32>
    }
    %c8_i32_49 = arith.constant 8 : i32
    %c0_50 = arith.constant 0 : index
    %c0_51 = arith.constant 0 : index
    %78 = vector.load %arg16[%c0_50, %c0_51] : memref<8x32xf32, #tpu.memory_space<vmem>>, vector<8x32xf32>
    %79 = vector.extract_strided_slice %78 {offsets = [0, 0], sizes = [8, 8], strides = [1, 1]} : vector<8x32xf32> to vector<8x8xf32>
    %cst_52 = arith.constant dense<0.000000e+00> : vector<8xf32>
    %80 = vector.multi_reduction <add>, %79, %cst_52 [1] : vector<8x8xf32> to vector<8xf32>
    %81 = vector.shape_cast %80 : vector<8xf32> to vector<8x1xf32>
    %cst_53 = arith.constant 8.000000e+00 : f32
    %82 = vector.broadcast %cst_53 : f32 to vector<8x1xf32>
    %83 = arith.divf %81, %82 : vector<8x1xf32>
    %84 = vector.broadcast %83 : vector<8x1xf32> to vector<8x8xf32>
    %85 = arith.subf %79, %84 : vector<8x8xf32>
    %86 = arith.mulf %85, %85 : vector<8x8xf32>
    %cst_54 = arith.constant dense<0.000000e+00> : vector<8xf32>
    %87 = vector.multi_reduction <add>, %86, %cst_54 [1] : vector<8x8xf32> to vector<8xf32>
    %88 = vector.shape_cast %87 : vector<8xf32> to vector<8x1xf32>
    %cst_55 = arith.constant 8.000000e+00 : f32
    %89 = vector.broadcast %cst_55 : f32 to vector<8x1xf32>
    %90 = arith.divf %88, %89 : vector<8x1xf32>
    %cst_56 = arith.constant 9.99999974E-6 : f32
    %91 = vector.broadcast %cst_56 : f32 to vector<8x1xf32>
    %92 = arith.addf %90, %91 : vector<8x1xf32>
    %93 = math.rsqrt %92 : vector<8x1xf32>
    %94 = vector.broadcast %93 : vector<8x1xf32> to vector<8x8xf32>
    %95 = arith.mulf %85, %94 : vector<8x8xf32>
    %c0_57 = arith.constant 0 : index
    %c0_58 = arith.constant 0 : index
    %96 = vector.load %arg9[%c0_57, %c0_58] : memref<1x32xf32, #tpu.memory_space<vmem>>, vector<1x8xf32>
    %97 = vector.broadcast %96 : vector<1x8xf32> to vector<8x8xf32>
    %98 = arith.mulf %95, %97 : vector<8x8xf32>
    %c0_59 = arith.constant 0 : index
    %c0_60 = arith.constant 0 : index
    %99 = vector.load %arg14[%c0_59, %c0_60] : memref<8x32xf32, #tpu.memory_space<vmem>>, vector<8x8xf32>
    tpu.vector_store %arg14[%c0_59, %c0_60], %98 {strides = array<i32>} : memref<8x32xf32, #tpu.memory_space<vmem>>, vector<8x8xf32>,
    %100 = vector.extract_strided_slice %78 {offsets = [0, 8], sizes = [8, 8], strides = [1, 1]} : vector<8x32xf32> to vector<8x8xf32>
    %cst_61 = arith.constant dense<0.000000e+00> : vector<8xf32>
    %101 = vector.multi_reduction <add>, %100, %cst_61 [1] : vector<8x8xf32> to vector<8xf32>
    %102 = vector.shape_cast %101 : vector<8xf32> to vector<8x1xf32>
    %cst_62 = arith.constant 8.000000e+00 : f32
    %103 = vector.broadcast %cst_62 : f32 to vector<8x1xf32>
    %104 = arith.divf %102, %103 : vector<8x1xf32>
    %105 = vector.broadcast %104 : vector<8x1xf32> to vector<8x8xf32>
    %106 = arith.subf %100, %105 : vector<8x8xf32>
    %107 = arith.mulf %106, %106 : vector<8x8xf32>
    %cst_63 = arith.constant dense<0.000000e+00> : vector<8xf32>
    %108 = vector.multi_reduction <add>, %107, %cst_63 [1] : vector<8x8xf32> to vector<8xf32>
    %109 = vector.shape_cast %108 : vector<8xf32> to vector<8x1xf32>
    %cst_64 = arith.constant 8.000000e+00 : f32
    %110 = vector.broadcast %cst_64 : f32 to vector<8x1xf32>
    %111 = arith.divf %109, %110 : vector<8x1xf32>
    %cst_65 = arith.constant 9.99999974E-6 : f32
    %112 = vector.broadcast %cst_65 : f32 to vector<8x1xf32>
    %113 = arith.addf %111, %112 : vector<8x1xf32>
    %114 = math.rsqrt %113 : vector<8x1xf32>
    %115 = vector.broadcast %114 : vector<8x1xf32> to vector<8x8xf32>
    %116 = arith.mulf %106, %115 : vector<8x8xf32>
    %c0_66 = arith.constant 0 : index
    %c8 = arith.constant 8 : index
    %117 = vector.load %arg9[%c0_66, %c8] : memref<1x32xf32, #tpu.memory_space<vmem>>, vector<1x8xf32>
    %118 = vector.broadcast %117 : vector<1x8xf32> to vector<8x8xf32>
    %119 = arith.mulf %116, %118 : vector<8x8xf32>
    %c0_67 = arith.constant 0 : index
    %c8_68 = arith.constant 8 : index
    %120 = vector.load %arg14[%c0_67, %c8_68] : memref<8x32xf32, #tpu.memory_space<vmem>>, vector<8x8xf32>
    tpu.vector_store %arg14[%c0_67, %c8_68], %119 {strides = array<i32>} : memref<8x32xf32, #tpu.memory_space<vmem>>, vector<8x8xf32>,
    %121 = vector.extract_strided_slice %78 {offsets = [0, 16], sizes = [8, 8], strides = [1, 1]} : vector<8x32xf32> to vector<8x8xf32>
    %cst_69 = arith.constant dense<0.000000e+00> : vector<8xf32>
    %122 = vector.multi_reduction <add>, %121, %cst_69 [1] : vector<8x8xf32> to vector<8xf32>
    %123 = vector.shape_cast %122 : vector<8xf32> to vector<8x1xf32>
    %cst_70 = arith.constant 8.000000e+00 : f32
    %124 = vector.broadcast %cst_70 : f32 to vector<8x1xf32>
    %125 = arith.divf %123, %124 : vector<8x1xf32>
    %126 = vector.broadcast %125 : vector<8x1xf32> to vector<8x8xf32>
    %127 = arith.subf %121, %126 : vector<8x8xf32>
    %128 = arith.mulf %127, %127 : vector<8x8xf32>
    %cst_71 = arith.constant dense<0.000000e+00> : vector<8xf32>
    %129 = vector.multi_reduction <add>, %128, %cst_71 [1] : vector<8x8xf32> to vector<8xf32>
    %130 = vector.shape_cast %129 : vector<8xf32> to vector<8x1xf32>
    %cst_72 = arith.constant 8.000000e+00 : f32
    %131 = vector.broadcast %cst_72 : f32 to vector<8x1xf32>
    %132 = arith.divf %130, %131 : vector<8x1xf32>
    %cst_73 = arith.constant 9.99999974E-6 : f32
    %133 = vector.broadcast %cst_73 : f32 to vector<8x1xf32>
    %134 = arith.addf %132, %133 : vector<8x1xf32>
    %135 = math.rsqrt %134 : vector<8x1xf32>
    %136 = vector.broadcast %135 : vector<8x1xf32> to vector<8x8xf32>
    %137 = arith.mulf %127, %136 : vector<8x8xf32>
    %c0_74 = arith.constant 0 : index
    %c16 = arith.constant 16 : index
    %138 = vector.load %arg9[%c0_74, %c16] : memref<1x32xf32, #tpu.memory_space<vmem>>, vector<1x8xf32>
    %139 = vector.broadcast %138 : vector<1x8xf32> to vector<8x8xf32>
    %140 = arith.mulf %137, %139 : vector<8x8xf32>
    %c0_75 = arith.constant 0 : index
    %c16_76 = arith.constant 16 : index
    %141 = vector.load %arg14[%c0_75, %c16_76] : memref<8x32xf32, #tpu.memory_space<vmem>>, vector<8x8xf32>
    tpu.vector_store %arg14[%c0_75, %c16_76], %140 {strides = array<i32>} : memref<8x32xf32, #tpu.memory_space<vmem>>, vector<8x8xf32>,
    %142 = vector.extract_strided_slice %78 {offsets = [0, 24], sizes = [8, 8], strides = [1, 1]} : vector<8x32xf32> to vector<8x8xf32>
    %cst_77 = arith.constant dense<0.000000e+00> : vector<8xf32>
    %143 = vector.multi_reduction <add>, %142, %cst_77 [1] : vector<8x8xf32> to vector<8xf32>
    %144 = vector.shape_cast %143 : vector<8xf32> to vector<8x1xf32>
    %cst_78 = arith.constant 8.000000e+00 : f32
    %145 = vector.broadcast %cst_78 : f32 to vector<8x1xf32>
    %146 = arith.divf %144, %145 : vector<8x1xf32>
    %147 = vector.broadcast %146 : vector<8x1xf32> to vector<8x8xf32>
    %148 = arith.subf %142, %147 : vector<8x8xf32>
    %149 = arith.mulf %148, %148 : vector<8x8xf32>
    %cst_79 = arith.constant dense<0.000000e+00> : vector<8xf32>
    %150 = vector.multi_reduction <add>, %149, %cst_79 [1] : vector<8x8xf32> to vector<8xf32>
    %151 = vector.shape_cast %150 : vector<8xf32> to vector<8x1xf32>
    %cst_80 = arith.constant 8.000000e+00 : f32
    %152 = vector.broadcast %cst_80 : f32 to vector<8x1xf32>
    %153 = arith.divf %151, %152 : vector<8x1xf32>
    %cst_81 = arith.constant 9.99999974E-6 : f32
    %154 = vector.broadcast %cst_81 : f32 to vector<8x1xf32>
    %155 = arith.addf %153, %154 : vector<8x1xf32>
    %156 = math.rsqrt %155 : vector<8x1xf32>
    %157 = vector.broadcast %156 : vector<8x1xf32> to vector<8x8xf32>
    %158 = arith.mulf %148, %157 : vector<8x8xf32>
    %c0_82 = arith.constant 0 : index
    %c24 = arith.constant 24 : index
    %159 = vector.load %arg9[%c0_82, %c24] : memref<1x32xf32, #tpu.memory_space<vmem>>, vector<1x8xf32>
    %160 = vector.broadcast %159 : vector<1x8xf32> to vector<8x8xf32>
    %161 = arith.mulf %158, %160 : vector<8x8xf32>
    %c0_83 = arith.constant 0 : index
    %c24_84 = arith.constant 24 : index
    %162 = vector.load %arg14[%c0_83, %c24_84] : memref<8x32xf32, #tpu.memory_space<vmem>>, vector<8x8xf32>
    tpu.vector_store %arg14[%c0_83, %c24_84], %161 {strides = array<i32>} : memref<8x32xf32, #tpu.memory_space<vmem>>, vector<8x8xf32>,
    %c0_85 = arith.constant 0 : index
    %c0_86 = arith.constant 0 : index
    %163 = vector.load %arg14[%c0_85, %c0_86] : memref<8x32xf32, #tpu.memory_space<vmem>>, vector<8x32xf32>
    %164 = arith.addf %1, %163 : vector<8x32xf32>
    %c0_87 = arith.constant 0 : index
    %c0_88 = arith.constant 0 : index
    %165 = vector.load %arg10[%c0_87, %c0_88] : memref<1x32xf32, #tpu.memory_space<vmem>>, vector<1x32xf32>
    %cst_89 = arith.constant dense<0.000000e+00> : vector<8xf32>
    %166 = vector.multi_reduction <add>, %164, %cst_89 [1] : vector<8x32xf32> to vector<8xf32>
    %167 = vector.shape_cast %166 : vector<8xf32> to vector<8x1xf32>
    %cst_90 = arith.constant 3.200000e+01 : f32
    %168 = vector.broadcast %cst_90 : f32 to vector<8x1xf32>
    %169 = arith.divf %167, %168 : vector<8x1xf32>
    %170 = vector.broadcast %169 : vector<8x1xf32> to vector<8x32xf32>
    %171 = arith.subf %164, %170 : vector<8x32xf32>
    %172 = arith.mulf %171, %171 : vector<8x32xf32>
    %cst_91 = arith.constant dense<0.000000e+00> : vector<8xf32>
    %173 = vector.multi_reduction <add>, %172, %cst_91 [1] : vector<8x32xf32> to vector<8xf32>
    %174 = vector.shape_cast %173 : vector<8xf32> to vector<8x1xf32>
    %cst_92 = arith.constant 3.200000e+01 : f32
    %175 = vector.broadcast %cst_92 : f32 to vector<8x1xf32>
    %176 = arith.divf %174, %175 : vector<8x1xf32>
    %cst_93 = arith.constant 9.99999974E-6 : f32
    %177 = vector.broadcast %cst_93 : f32 to vector<8x1xf32>
    %178 = arith.addf %176, %177 : vector<8x1xf32>
    %179 = math.rsqrt %178 : vector<8x1xf32>
    %180 = vector.broadcast %179 : vector<8x1xf32> to vector<8x32xf32>
    %181 = arith.mulf %171, %180 : vector<8x32xf32>
    %182 = vector.broadcast %165 : vector<1x32xf32> to vector<8x32xf32>
    %183 = arith.mulf %181, %182 : vector<8x32xf32>
    %c0_94 = arith.constant 0 : index
    %c0_95 = arith.constant 0 : index
    %184 = vector.load %arg11[%c0_94, %c0_95] : memref<32x128xbf16, #tpu.memory_space<vmem>>, vector<32x128xbf16>
    %185 = arith.truncf %183 : vector<8x32xf32> to vector<8x32xbf16>
    %cst_96 = arith.constant dense<0.000000e+00> : vector<8x128xf32>
    %186 = tpu.matmul %185, %184, %cst_96 {dimension_numbers = #tpu.dot_dimension_numbers<[1], [0], [0], [1], [0, 0, 1, 1], [], []>} : vector<8x32xbf16>, vector<32x128xbf16>, vector<8x128xf32> -> vector<8x128xf32>
    %187 = vector.extract_strided_slice %186 {offsets = [0, 0], sizes = [8, 64], strides = [1, 1]} : vector<8x128xf32> to vector<8x64xf32>
    %188 = vector.extract_strided_slice %186 {offsets = [0, 64], sizes = [8, 64], strides = [1, 1]} : vector<8x128xf32> to vector<8x64xf32>
    %cst_97 = arith.constant 5.000000e-01 : f32
    %189 = vector.broadcast %cst_97 : f32 to vector<8x64xf32>
    %190 = arith.mulf %189, %187 : vector<8x64xf32>
    %cst_98 = arith.constant 0.707106769 : f32
    %191 = vector.broadcast %cst_98 : f32 to vector<8x64xf32>
    %192 = arith.mulf %187, %191 : vector<8x64xf32>
    %cst_99 = arith.constant 0.000000e+00 : f32
    %193 = vector.broadcast %cst_99 : f32 to vector<8x64xf32>
    %194 = arith.cmpf oge, %192, %193 : vector<8x64xf32>
    %cst_100 = arith.constant 1.000000e+00 : f32
    %cst_101 = arith.constant -1.000000e+00 : f32
    %195 = vector.broadcast %cst_100 : f32 to vector<8x64xf32>
    %196 = vector.broadcast %cst_101 : f32 to vector<8x64xf32>
    %197 = arith.select %194, %195, %196 : vector<8x64xi1>, vector<8x64xf32>
    %198 = math.absf %192 : vector<8x64xf32>
    %cst_102 = arith.constant 0.327591091 : f32
    %199 = vector.broadcast %cst_102 : f32 to vector<8x64xf32>
    %200 = arith.mulf %199, %198 : vector<8x64xf32>
    %cst_103 = arith.constant 1.000000e+00 : f32
    %201 = vector.broadcast %cst_103 : f32 to vector<8x64xf32>
    %202 = arith.addf %201, %200 : vector<8x64xf32>
    %cst_104 = arith.constant 1.000000e+00 : f32
    %203 = vector.broadcast %cst_104 : f32 to vector<8x64xf32>
    %204 = arith.divf %203, %202 : vector<8x64xf32>
    %cst_105 = arith.constant 1.06140542 : f32
    %205 = vector.broadcast %cst_105 : f32 to vector<8x64xf32>
    %206 = arith.mulf %205, %204 : vector<8x64xf32>
    %cst_106 = arith.constant -1.45315206 : f32
    %207 = vector.broadcast %cst_106 : f32 to vector<8x64xf32>
    %208 = arith.addf %206, %207 : vector<8x64xf32>
    %209 = arith.mulf %208, %204 : vector<8x64xf32>
    %cst_107 = arith.constant 1.42141378 : f32
    %210 = vector.broadcast %cst_107 : f32 to vector<8x64xf32>
    %211 = arith.addf %209, %210 : vector<8x64xf32>
    %212 = arith.mulf %211, %204 : vector<8x64xf32>
    %cst_108 = arith.constant -0.284496725 : f32
    %213 = vector.broadcast %cst_108 : f32 to vector<8x64xf32>
    %214 = arith.addf %212, %213 : vector<8x64xf32>
    %215 = arith.mulf %214, %204 : vector<8x64xf32>
    %cst_109 = arith.constant 0.254829586 : f32
    %216 = vector.broadcast %cst_109 : f32 to vector<8x64xf32>
    %217 = arith.addf %215, %216 : vector<8x64xf32>
    %218 = arith.mulf %217, %204 : vector<8x64xf32>
    %cst_110 = arith.constant 0.000000e+00 : f32
    %219 = vector.broadcast %cst_110 : f32 to vector<8x64xf32>
    %220 = arith.subf %219, %198 : vector<8x64xf32>
    %221 = arith.mulf %220, %198 : vector<8x64xf32>
    %222 = math.exp %221 : vector<8x64xf32>
    %223 = arith.mulf %218, %222 : vector<8x64xf32>
    %cst_111 = arith.constant 1.000000e+00 : f32
    %224 = vector.broadcast %cst_111 : f32 to vector<8x64xf32>
    %225 = arith.subf %224, %223 : vector<8x64xf32>
    %226 = arith.mulf %197, %225 : vector<8x64xf32>
    %cst_112 = arith.constant 1.000000e+00 : f32
    %227 = vector.broadcast %cst_112 : f32 to vector<8x64xf32>
    %228 = arith.addf %227, %226 : vector<8x64xf32>
    %229 = arith.mulf %190, %228 : vector<8x64xf32>
    %230 = arith.mulf %229, %188 : vector<8x64xf32>
    %c0_113 = arith.constant 0 : index
    %c0_114 = arith.constant 0 : index
    %231 = vector.load %arg12[%c0_113, %c0_114] : memref<64x32xbf16, #tpu.memory_space<vmem>>, vector<64x32xbf16>
    %232 = arith.truncf %230 : vector<8x64xf32> to vector<8x64xbf16>
    %cst_115 = arith.constant dense<0.000000e+00> : vector<8x32xf32>
    %233 = tpu.matmul %232, %231, %cst_115 {dimension_numbers = #tpu.dot_dimension_numbers<[1], [0], [0], [1], [0, 0, 1, 1], [], []>} : vector<8x64xbf16>, vector<64x32xbf16>, vector<8x32xf32> -> vector<8x32xf32>
    %234 = arith.addf %164, %233 : vector<8x32xf32>
    %c0_116 = arith.constant 0 : index
    %c0_117 = arith.constant 0 : index
    %c0_118 = arith.constant 0 : index
    %235 = vector.load %arg13[%c0_116, %c0_117, %c0_118] : memref<1x8x32xf32, #tpu.memory_space<vmem>>, vector<1x8x32xf32>
    %236 = vector.shape_cast %235 : vector<1x8x32xf32> to vector<8x32xf32>
    %237 = vector.shape_cast %234 : vector<8x32xf32> to vector<1x8x32xf32>
    tpu.vector_store %arg13[%c0_116, %c0_117, %c0_118], %237 {strides = array<i32>} : memref<1x8x32xf32, #tpu.memory_space<vmem>>, vector<1x8x32xf32>,
    return
  }
  func.func @transform_0(%arg0: i32) -> (i32, i32, i32) {
    %c0_i32 = arith.constant 0 : i32
    %c0_i32_0 = arith.constant 0 : i32
    %c0_i32_1 = arith.constant 0 : i32
    return %arg0, %c0_i32, %c0_i32_0 : i32, i32, i32
  }
  func.func @transform_1(%arg0: i32) -> (i32, i32) {
    %c0_i32 = arith.constant 0 : i32
    %c0_i32_0 = arith.constant 0 : i32
    %c0_i32_1 = arith.constant 0 : i32
    return %c0_i32, %c0_i32_0 : i32, i32
  }
  func.func @transform_2(%arg0: i32) -> (i32, i32) {
    %c0_i32 = arith.constant 0 : i32
    %c0_i32_0 = arith.constant 0 : i32
    %c0_i32_1 = arith.constant 0 : i32
    return %c0_i32, %c0_i32_0 : i32, i32
  }
  func.func @transform_3(%arg0: i32) -> (i32, i32) {
    %c0_i32 = arith.constant 0 : i32
    %c0_i32_0 = arith.constant 0 : i32
    %c0_i32_1 = arith.constant 0 : i32
    return %c0_i32, %c0_i32_0 : i32, i32
  }
  func.func @transform_4(%arg0: i32) -> (i32, i32) {
    %c0_i32 = arith.constant 0 : i32
    %c0_i32_0 = arith.constant 0 : i32
    %c0_i32_1 = arith.constant 0 : i32
    return %c0_i32, %c0_i32_0 : i32, i32
  }
  func.func @transform_5(%arg0: i32) -> (i32, i32) {
    %c0_i32 = arith.constant 0 : i32
    %c0_i32_0 = arith.constant 0 : i32
    %c0_i32_1 = arith.constant 0 : i32
    return %c0_i32, %c0_i32_0 : i32, i32
  }
  func.func @transform_6(%arg0: i32) -> (i32, i32) {
    %c0_i32 = arith.constant 0 : i32
    %c0_i32_0 = arith.constant 0 : i32
    %c0_i32_1 = arith.constant 0 : i32
    return %c0_i32, %c0_i32_0 : i32, i32
  }
  func.func @transform_7(%arg0: i32) -> (i32, i32) {
    %c0_i32 = arith.constant 0 : i32
    %c0_i32_0 = arith.constant 0 : i32
    %c0_i32_1 = arith.constant 0 : i32
    return %c0_i32, %c0_i32_0 : i32, i32
  }
  func.func @transform_8(%arg0: i32) -> (i32, i32) {
    %c0_i32 = arith.constant 0 : i32
    %c0_i32_0 = arith.constant 0 : i32
    %c0_i32_1 = arith.constant 0 : i32
    return %c0_i32, %c0_i32_0 : i32, i32
  }
  func.func @transform_9(%arg0: i32) -> (i32, i32) {
    %c0_i32 = arith.constant 0 : i32
    %c0_i32_0 = arith.constant 0 : i32
    %c0_i32_1 = arith.constant 0 : i32
    return %c0_i32, %c0_i32_0 : i32, i32
  }
  func.func @transform_10(%arg0: i32) -> (i32, i32) {
    %c0_i32 = arith.constant 0 : i32
    %c0_i32_0 = arith.constant 0 : i32
    %c0_i32_1 = arith.constant 0 : i32
    return %c0_i32, %c0_i32_0 : i32, i32
  }
  func.func @transform_11(%arg0: i32) -> (i32, i32) {
    %c0_i32 = arith.constant 0 : i32
    %c0_i32_0 = arith.constant 0 : i32
    %c0_i32_1 = arith.constant 0 : i32
    return %c0_i32, %c0_i32_0 : i32, i32
  }
  func.func @transform_12(%arg0: i32) -> (i32, i32, i32) {
    %c0_i32 = arith.constant 0 : i32
    %c0_i32_0 = arith.constant 0 : i32
    %c0_i32_1 = arith.constant 0 : i32
    return %arg0, %c0_i32, %c0_i32_0 : i32, i32, i32
  }
}

module attributes {stable_mosaic.version = 11 : i64} {
  func.func @_mlstm_block_kernel(%arg0: i32, %arg1: memref<1x8x4xf32, #tpu.memory_space<vmem>>, %arg2: memref<4x32xbf16, #tpu.memory_space<vmem>>, %arg3: memref<1x32xf32, #tpu.memory_space<vmem>>, %arg4: memref<1x32xf32, #tpu.memory_space<vmem>>, %arg5: memref<32x128xbf16, #tpu.memory_space<vmem>>, %arg6: memref<4x64xf32, #tpu.memory_space<vmem>>, %arg7: memref<1x64xf32, #tpu.memory_space<vmem>>, %arg8: memref<64x136xbf16, #tpu.memory_space<vmem>>, %arg9: memref<64x72xbf16, #tpu.memory_space<vmem>>, %arg10: memref<1x8xf32, #tpu.memory_space<vmem>>, %arg11: memref<1x64xf32, #tpu.memory_space<vmem>>, %arg12: memref<1x64xf32, #tpu.memory_space<vmem>>, %arg13: memref<64x32xbf16, #tpu.memory_space<vmem>>, %arg14: memref<1x8x32xf32, #tpu.memory_space<vmem>>, %arg15: memref<8x64xf32, #tpu.memory_space<vmem>>, %arg16: memref<8x64xf32, #tpu.memory_space<vmem>>) attributes {dimension_semantics = [#tpu.dimension_semantics<parallel>], iteration_bounds = array<i64: 2>, scalar_prefetch = 0 : i64, scratch_operands = 2 : i64, tpu.core_type = #tpu.core_type<tc>, window_params = [{transform_indices = @transform_0, window_bounds = array<i64: 1, 8, 4>}, {pipeline_mode = #tpu.pipeline_mode<synchronous>, transform_indices = @transform_1, window_bounds = array<i64: 4, 32>}, {pipeline_mode = #tpu.pipeline_mode<synchronous>, transform_indices = @transform_2, window_bounds = array<i64: 1, 32>}, {pipeline_mode = #tpu.pipeline_mode<synchronous>, transform_indices = @transform_3, window_bounds = array<i64: 1, 32>}, {pipeline_mode = #tpu.pipeline_mode<synchronous>, transform_indices = @transform_4, window_bounds = array<i64: 32, 128>}, {pipeline_mode = #tpu.pipeline_mode<synchronous>, transform_indices = @transform_5, window_bounds = array<i64: 4, 64>}, {pipeline_mode = #tpu.pipeline_mode<synchronous>, transform_indices = @transform_6, window_bounds = array<i64: 1, 64>}, {pipeline_mode = #tpu.pipeline_mode<synchronous>, transform_indices = @transform_7, window_bounds = array<i64: 64, 136>}, {pipeline_mode = #tpu.pipeline_mode<synchronous>, transform_indices = @transform_8, window_bounds = array<i64: 64, 72>}, {pipeline_mode = #tpu.pipeline_mode<synchronous>, transform_indices = @transform_9, window_bounds = array<i64: 1, 8>}, {pipeline_mode = #tpu.pipeline_mode<synchronous>, transform_indices = @transform_10, window_bounds = array<i64: 1, 64>}, {pipeline_mode = #tpu.pipeline_mode<synchronous>, transform_indices = @transform_11, window_bounds = array<i64: 1, 64>}, {pipeline_mode = #tpu.pipeline_mode<synchronous>, transform_indices = @transform_12, window_bounds = array<i64: 64, 32>}, {transform_indices = @transform_13, window_bounds = array<i64: 1, 8, 32>}]} {
    %c0 = arith.constant 0 : index
    %c0_0 = arith.constant 0 : index
    %c0_1 = arith.constant 0 : index
    %0 = vector.load %arg1[%c0, %c0_0, %c0_1] : memref<1x8x4xf32, #tpu.memory_space<vmem>>, vector<1x8x4xf32>
    %1 = vector.shape_cast %0 : vector<1x8x4xf32> to vector<8x4xf32>
    %c0_2 = arith.constant 0 : index
    %c0_3 = arith.constant 0 : index
    %2 = vector.load %arg2[%c0_2, %c0_3] : memref<4x32xbf16, #tpu.memory_space<vmem>>, vector<4x32xbf16>
    %3 = arith.truncf %1 : vector<8x4xf32> to vector<8x4xbf16>
    %cst = arith.constant dense<0.000000e+00> : vector<8x32xf32>
    %4 = tpu.matmul %3, %2, %cst {dimension_numbers = #tpu.dot_dimension_numbers<[1], [0], [0], [1], [0, 0, 1, 1], [], []>} : vector<8x4xbf16>, vector<4x32xbf16>, vector<8x32xf32> -> vector<8x32xf32>
    %c0_4 = arith.constant 0 : index
    %c0_5 = arith.constant 0 : index
    %5 = vector.load %arg3[%c0_4, %c0_5] : memref<1x32xf32, #tpu.memory_space<vmem>>, vector<1x32xf32>
    %6 = vector.broadcast %5 : vector<1x32xf32> to vector<8x32xf32>
    %7 = arith.addf %4, %6 : vector<8x32xf32>
    %cst_6 = arith.constant 0.000000e+00 : f32
    %8 = vector.broadcast %cst_6 : f32 to vector<8x32xf32>
    %9 = arith.maximumf %7, %8 : vector<8x32xf32>
    %c0_7 = arith.constant 0 : index
    %c0_8 = arith.constant 0 : index
    %10 = vector.load %arg4[%c0_7, %c0_8] : memref<1x32xf32, #tpu.memory_space<vmem>>, vector<1x32xf32>
    %cst_9 = arith.constant dense<0.000000e+00> : vector<8xf32>
    %11 = vector.multi_reduction <add>, %9, %cst_9 [1] : vector<8x32xf32> to vector<8xf32>
    %12 = vector.shape_cast %11 : vector<8xf32> to vector<8x1xf32>
    %cst_10 = arith.constant 3.200000e+01 : f32
    %13 = vector.broadcast %cst_10 : f32 to vector<8x1xf32>
    %14 = arith.divf %12, %13 : vector<8x1xf32>
    %15 = vector.broadcast %14 : vector<8x1xf32> to vector<8x32xf32>
    %16 = arith.subf %9, %15 : vector<8x32xf32>
    %17 = arith.mulf %16, %16 : vector<8x32xf32>
    %cst_11 = arith.constant dense<0.000000e+00> : vector<8xf32>
    %18 = vector.multi_reduction <add>, %17, %cst_11 [1] : vector<8x32xf32> to vector<8xf32>
    %19 = vector.shape_cast %18 : vector<8xf32> to vector<8x1xf32>
    %cst_12 = arith.constant 3.200000e+01 : f32
    %20 = vector.broadcast %cst_12 : f32 to vector<8x1xf32>
    %21 = arith.divf %19, %20 : vector<8x1xf32>
    %cst_13 = arith.constant 9.99999974E-6 : f32
    %22 = vector.broadcast %cst_13 : f32 to vector<8x1xf32>
    %23 = arith.addf %21, %22 : vector<8x1xf32>
    %24 = math.rsqrt %23 : vector<8x1xf32>
    %25 = vector.broadcast %24 : vector<8x1xf32> to vector<8x32xf32>
    %26 = arith.mulf %16, %25 : vector<8x32xf32>
    %27 = vector.broadcast %10 : vector<1x32xf32> to vector<8x32xf32>
    %28 = arith.mulf %26, %27 : vector<8x32xf32>
    %c0_14 = arith.constant 0 : index
    %c0_15 = arith.constant 0 : index
    %29 = vector.load %arg5[%c0_14, %c0_15] : memref<32x128xbf16, #tpu.memory_space<vmem>>, vector<32x128xbf16>
    %30 = arith.truncf %28 : vector<8x32xf32> to vector<8x32xbf16>
    %cst_16 = arith.constant dense<0.000000e+00> : vector<8x128xf32>
    %31 = tpu.matmul %30, %29, %cst_16 {dimension_numbers = #tpu.dot_dimension_numbers<[1], [0], [0], [1], [0, 0, 1, 1], [], []>} : vector<8x32xbf16>, vector<32x128xbf16>, vector<8x128xf32> -> vector<8x128xf32>
    %32 = vector.extract_strided_slice %31 {offsets = [0, 0], sizes = [8, 64], strides = [1, 1]} : vector<8x128xf32> to vector<8x64xf32>
    %33 = vector.extract_strided_slice %31 {offsets = [0, 64], sizes = [8, 64], strides = [1, 1]} : vector<8x128xf32> to vector<8x64xf32>
    %c0_17 = arith.constant 0 : index
    %c0_18 = arith.constant 0 : index
    %34 = vector.load %arg7[%c0_17, %c0_18] : memref<1x64xf32, #tpu.memory_space<vmem>>, vector<1x64xf32>
    %c3 = arith.constant 3 : index
    %c0_19 = arith.constant 0 : index
    %35 = vector.load %arg6[%c3, %c0_19] : memref<4x64xf32, #tpu.memory_space<vmem>>, vector<1x64xf32>
    %36 = vector.broadcast %35 : vector<1x64xf32> to vector<8x64xf32>
    %37 = arith.mulf %32, %36 : vector<8x64xf32>
    %c0_20 = arith.constant 0 : index
    %c0_21 = arith.constant 0 : index
    %38 = vector.load %arg15[%c0_20, %c0_21] : memref<8x64xf32, #tpu.memory_space<vmem>>, vector<8x64xf32>
    tpu.vector_store %arg15[%c0_20, %c0_21], %37 {strides = array<i32>} : memref<8x64xf32, #tpu.memory_space<vmem>>, vector<8x64xf32>,
    %c3_22 = arith.constant 3 : index
    %c0_23 = arith.constant 0 : index
    %39 = vector.load %arg15[%c3_22, %c0_23] : memref<8x64xf32, #tpu.memory_space<vmem>>, vector<5x64xf32>
    %40 = vector.extract_strided_slice %32 {offsets = [0, 0], sizes = [5, 64], strides = [1, 1]} : vector<8x64xf32> to vector<5x64xf32>
    %c0_24 = arith.constant 0 : index
    %c0_25 = arith.constant 0 : index
    %41 = vector.load %arg6[%c0_24, %c0_25] : memref<4x64xf32, #tpu.memory_space<vmem>>, vector<1x64xf32>
    %42 = vector.broadcast %41 : vector<1x64xf32> to vector<5x64xf32>
    %43 = arith.mulf %40, %42 : vector<5x64xf32>
    %44 = arith.addf %39, %43 : vector<5x64xf32>
    %c3_26 = arith.constant 3 : index
    %c0_27 = arith.constant 0 : index
    %45 = vector.load %arg15[%c3_26, %c0_27] : memref<8x64xf32, #tpu.memory_space<vmem>>, vector<5x64xf32>
    tpu.vector_store %arg15[%c3_26, %c0_27], %44 {strides = array<i32>} : memref<8x64xf32, #tpu.memory_space<vmem>>, vector<5x64xf32>,
    %c2 = arith.constant 2 : index
    %c0_28 = arith.constant 0 : index
    %46 = vector.load %arg15[%c2, %c0_28] : memref<8x64xf32, #tpu.memory_space<vmem>>, vector<6x64xf32>
    %47 = vector.extract_strided_slice %32 {offsets = [0, 0], sizes = [6, 64], strides = [1, 1]} : vector<8x64xf32> to vector<6x64xf32>
    %c1 = arith.constant 1 : index
    %c0_29 = arith.constant 0 : index
    %48 = vector.load %arg6[%c1, %c0_29] : memref<4x64xf32, #tpu.memory_space<vmem>>, vector<1x64xf32>
    %49 = vector.broadcast %48 : vector<1x64xf32> to vector<6x64xf32>
    %50 = arith.mulf %47, %49 : vector<6x64xf32>
    %51 = arith.addf %46, %50 : vector<6x64xf32>
    %c2_30 = arith.constant 2 : index
    %c0_31 = arith.constant 0 : index
    %52 = vector.load %arg15[%c2_30, %c0_31] : memref<8x64xf32, #tpu.memory_space<vmem>>, vector<6x64xf32>
    tpu.vector_store %arg15[%c2_30, %c0_31], %51 {strides = array<i32>} : memref<8x64xf32, #tpu.memory_space<vmem>>, vector<6x64xf32>,
    %c1_32 = arith.constant 1 : index
    %c0_33 = arith.constant 0 : index
    %53 = vector.load %arg15[%c1_32, %c0_33] : memref<8x64xf32, #tpu.memory_space<vmem>>, vector<7x64xf32>
    %54 = vector.extract_strided_slice %32 {offsets = [0, 0], sizes = [7, 64], strides = [1, 1]} : vector<8x64xf32> to vector<7x64xf32>
    %c2_34 = arith.constant 2 : index
    %c0_35 = arith.constant 0 : index
    %55 = vector.load %arg6[%c2_34, %c0_35] : memref<4x64xf32, #tpu.memory_space<vmem>>, vector<1x64xf32>
    %56 = vector.broadcast %55 : vector<1x64xf32> to vector<7x64xf32>
    %57 = arith.mulf %54, %56 : vector<7x64xf32>
    %58 = arith.addf %53, %57 : vector<7x64xf32>
    %c1_36 = arith.constant 1 : index
    %c0_37 = arith.constant 0 : index
    %59 = vector.load %arg15[%c1_36, %c0_37] : memref<8x64xf32, #tpu.memory_space<vmem>>, vector<7x64xf32>
    tpu.vector_store %arg15[%c1_36, %c0_37], %58 {strides = array<i32>} : memref<8x64xf32, #tpu.memory_space<vmem>>, vector<7x64xf32>,
    %c0_38 = arith.constant 0 : index
    %c0_39 = arith.constant 0 : index
    %60 = vector.load %arg15[%c0_38, %c0_39] : memref<8x64xf32, #tpu.memory_space<vmem>>, vector<8x64xf32>
    %61 = vector.broadcast %34 : vector<1x64xf32> to vector<8x64xf32>
    %62 = arith.addf %60, %61 : vector<8x64xf32>
    %cst_40 = arith.constant 0.000000e+00 : f32
    %63 = vector.broadcast %cst_40 : f32 to vector<8x64xf32>
    %64 = arith.subf %63, %62 : vector<8x64xf32>
    %65 = math.exp %64 : vector<8x64xf32>
    %cst_41 = arith.constant 1.000000e+00 : f32
    %66 = vector.broadcast %cst_41 : f32 to vector<8x64xf32>
    %67 = arith.addf %66, %65 : vector<8x64xf32>
    %cst_42 = arith.constant 1.000000e+00 : f32
    %68 = vector.broadcast %cst_42 : f32 to vector<8x64xf32>
    %69 = arith.divf %68, %67 : vector<8x64xf32>
    %70 = arith.mulf %62, %69 : vector<8x64xf32>
    %c0_43 = arith.constant 0 : index
    %c0_44 = arith.constant 0 : index
    %71 = vector.load %arg8[%c0_43, %c0_44] : memref<64x136xbf16, #tpu.memory_space<vmem>>, vector<64x136xbf16>
    %72 = arith.truncf %70 : vector<8x64xf32> to vector<8x64xbf16>
    %cst_45 = arith.constant dense<0.000000e+00> : vector<8x136xf32>
    %73 = tpu.matmul %72, %71, %cst_45 {dimension_numbers = #tpu.dot_dimension_numbers<[1], [0], [0], [1], [0, 0, 1, 1], [], []>} : vector<8x64xbf16>, vector<64x136xbf16>, vector<8x136xf32> -> vector<8x136xf32>
    %74 = vector.extract_strided_slice %73 {offsets = [0, 0], sizes = [8, 64], strides = [1, 1]} : vector<8x136xf32> to vector<8x64xf32>
    %75 = vector.extract_strided_slice %73 {offsets = [0, 64], sizes = [8, 64], strides = [1, 1]} : vector<8x136xf32> to vector<8x64xf32>
    %c0_46 = arith.constant 0 : index
    %c0_47 = arith.constant 0 : index
    %76 = vector.load %arg9[%c0_46, %c0_47] : memref<64x72xbf16, #tpu.memory_space<vmem>>, vector<64x72xbf16>
    %77 = arith.truncf %32 : vector<8x64xf32> to vector<8x64xbf16>
    %cst_48 = arith.constant dense<0.000000e+00> : vector<8x72xf32>
    %78 = tpu.matmul %77, %76, %cst_48 {dimension_numbers = #tpu.dot_dimension_numbers<[1], [0], [0], [1], [0, 0, 1, 1], [], []>} : vector<8x64xbf16>, vector<64x72xbf16>, vector<8x72xf32> -> vector<8x72xf32>
    %79 = vector.extract_strided_slice %78 {offsets = [0, 0], sizes = [8, 64], strides = [1, 1]} : vector<8x72xf32> to vector<8x64xf32>
    %80 = vector.extract_strided_slice %73 {offsets = [0, 128], sizes = [8, 8], strides = [1, 1]} : vector<8x136xf32> to vector<8x8xf32>
    %81 = vector.extract_strided_slice %78 {offsets = [0, 64], sizes = [8, 8], strides = [1, 1]} : vector<8x72xf32> to vector<8x8xf32>
    %82 = arith.addf %80, %81 : vector<8x8xf32>
    %c0_49 = arith.constant 0 : index
    %c0_50 = arith.constant 0 : index
    %83 = vector.load %arg10[%c0_49, %c0_50] : memref<1x8xf32, #tpu.memory_space<vmem>>, vector<1x8xf32>
    %84 = vector.broadcast %83 : vector<1x8xf32> to vector<8x8xf32>
    %85 = arith.addf %82, %84 : vector<8x8xf32>
    %86 = vector.extract_strided_slice %85 {offsets = [0, 0], sizes = [8, 4], strides = [1, 1]} : vector<8x8xf32> to vector<8x4xf32>
    %87 = vector.extract_strided_slice %85 {offsets = [0, 4], sizes = [8, 4], strides = [1, 1]} : vector<8x8xf32> to vector<8x4xf32>
    %cst_51 = arith.constant 0.000000e+00 : f32
    %88 = vector.broadcast %cst_51 : f32 to vector<8x4xf32>
    %89 = arith.minimumf %87, %88 : vector<8x4xf32>
    %90 = math.absf %87 : vector<8x4xf32>
    %cst_52 = arith.constant 0.000000e+00 : f32
    %91 = vector.broadcast %cst_52 : f32 to vector<8x4xf32>
    %92 = arith.subf %91, %90 : vector<8x4xf32>
    %93 = math.exp %92 : vector<8x4xf32>
    %cst_53 = arith.constant 1.000000e+00 : f32
    %94 = vector.broadcast %cst_53 : f32 to vector<8x4xf32>
    %95 = arith.addf %94, %93 : vector<8x4xf32>
    %96 = math.log %95 : vector<8x4xf32>
    %97 = arith.subf %89, %96 : vector<8x4xf32>
    %98 = tpu.iota {dimensions = array<i32: 0>} : vector<8x8xi32>
    %99 = tpu.iota {dimensions = array<i32: 1>} : vector<8x8xi32>
    %100 = arith.cmpi sge, %98, %99 : vector<8x8xi32>
    %101 = arith.cmpi eq, %98, %99 : vector<8x8xi32>
    %102 = arith.extui %100 : vector<8x8xi1> to vector<8x8xi32>
    %103 = arith.sitofp %102 : vector<8x8xi32> to vector<8x8xf32>
    %cst_54 = arith.constant dense<0.000000e+00> : vector<8x4xf32>
    %104 = tpu.matmul %103, %97, %cst_54 {dimension_numbers = #tpu.dot_dimension_numbers<[1], [0], [0], [1], [0, 0, 1, 1], [], []>} : vector<8x8xf32>, vector<8x4xf32>, vector<8x4xf32> -> vector<8x4xf32>
    %105 = arith.subf %86, %104 : vector<8x4xf32>
    %106 = vector.extract_strided_slice %104 {offsets = [0, 0], sizes = [8, 1], strides = [1, 1]} : vector<8x4xf32> to vector<8x1xf32>
    %107 = vector.extract_strided_slice %105 {offsets = [0, 0], sizes = [8, 1], strides = [1, 1]} : vector<8x4xf32> to vector<8x1xf32>
    %cst_55 = arith.constant 0.000000e+00 : f32
    %108 = vector.shape_cast %107 : vector<8x1xf32> to vector<8x1xf32>
    %109 = vector.broadcast %108 : vector<8x1xf32> to vector<8x8xf32>
    %110 = vector.broadcast %cst_55 : f32 to vector<8x8xf32>
    %111 = arith.select %101, %109, %110 : vector<8x8xi1>, vector<8x8xf32>
    %cst_56 = arith.constant dense<0.000000e+00> : vector<8xf32>
    %112 = vector.multi_reduction <add>, %111, %cst_56 [0] : vector<8x8xf32> to vector<8xf32>
    %113 = vector.shape_cast %112 : vector<8xf32> to vector<1x8xf32>
    %114 = vector.broadcast %106 : vector<8x1xf32> to vector<8x8xf32>
    %115 = vector.broadcast %113 : vector<1x8xf32> to vector<8x8xf32>
    %116 = arith.addf %114, %115 : vector<8x8xf32>
    %cst_57 = arith.constant 0xFF800000 : f32
    %117 = vector.broadcast %cst_57 : f32 to vector<8x8xf32>
    %118 = arith.select %100, %116, %117 : vector<8x8xi1>, vector<8x8xf32>
    %cst_58 = arith.constant dense<0xFF800000> : vector<8xf32>
    %119 = vector.multi_reduction <maximumf>, %118, %cst_58 [1] : vector<8x8xf32> to vector<8xf32>
    %120 = vector.shape_cast %119 : vector<8xf32> to vector<8x1xf32>
    %121 = vector.broadcast %120 : vector<8x1xf32> to vector<8x8xf32>
    %122 = arith.subf %118, %121 : vector<8x8xf32>
    %123 = math.exp %122 : vector<8x8xf32>
    %124 = vector.extract_strided_slice %74 {offsets = [0, 0], sizes = [8, 16], strides = [1, 1]} : vector<8x64xf32> to vector<8x16xf32>
    %125 = vector.extract_strided_slice %75 {offsets = [0, 0], sizes = [8, 16], strides = [1, 1]} : vector<8x64xf32> to vector<8x16xf32>
    %126 = vector.extract_strided_slice %79 {offsets = [0, 0], sizes = [8, 16], strides = [1, 1]} : vector<8x64xf32> to vector<8x16xf32>
    %cst_59 = arith.constant dense<0.000000e+00> : vector<8x8xf32>
    %127 = tpu.matmul %124, %125, %cst_59 {dimension_numbers = #tpu.dot_dimension_numbers<[1], [1], [0], [0], [0, 0, 1, 0], [], []>} : vector<8x16xf32>, vector<8x16xf32>, vector<8x8xf32> -> vector<8x8xf32>
    %cst_60 = arith.constant 2.500000e-01 : f32
    %128 = vector.broadcast %cst_60 : f32 to vector<8x8xf32>
    %129 = arith.mulf %127, %128 : vector<8x8xf32>
    %130 = arith.mulf %129, %123 : vector<8x8xf32>
    %cst_61 = arith.constant dense<0.000000e+00> : vector<8xf32>
    %131 = vector.multi_reduction <add>, %130, %cst_61 [1] : vector<8x8xf32> to vector<8xf32>
    %132 = vector.shape_cast %131 : vector<8xf32> to vector<8x1xf32>
    %133 = math.absf %132 : vector<8x1xf32>
    %cst_62 = arith.constant 0.000000e+00 : f32
    %134 = vector.broadcast %cst_62 : f32 to vector<8x1xf32>
    %135 = arith.subf %134, %120 : vector<8x1xf32>
    %136 = math.exp %135 : vector<8x1xf32>
    %137 = arith.maximumf %133, %136 : vector<8x1xf32>
    %cst_63 = arith.constant 9.99999997E-7 : f32
    %138 = vector.broadcast %cst_63 : f32 to vector<8x1xf32>
    %139 = arith.addf %137, %138 : vector<8x1xf32>
    %140 = tpu.reciprocal %139 {approx = true} : vector<8x1xf32> -> vector<8x1xf32>
    %141 = vector.broadcast %140 : vector<8x1xf32> to vector<8x8xf32>
    %142 = arith.mulf %130, %141 : vector<8x8xf32>
    %cst_64 = arith.constant dense<0.000000e+00> : vector<8x16xf32>
    %143 = tpu.matmul %142, %126, %cst_64 {dimension_numbers = #tpu.dot_dimension_numbers<[1], [0], [0], [1], [0, 0, 1, 1], [], []>} : vector<8x8xf32>, vector<8x16xf32>, vector<8x16xf32> -> vector<8x16xf32>
    %cst_65 = arith.constant dense<0.000000e+00> : vector<8xf32>
    %144 = vector.multi_reduction <add>, %143, %cst_65 [1] : vector<8x16xf32> to vector<8xf32>
    %145 = vector.shape_cast %144 : vector<8xf32> to vector<8x1xf32>
    %cst_66 = arith.constant 1.600000e+01 : f32
    %146 = vector.broadcast %cst_66 : f32 to vector<8x1xf32>
    %147 = arith.divf %145, %146 : vector<8x1xf32>
    %148 = vector.broadcast %147 : vector<8x1xf32> to vector<8x16xf32>
    %149 = arith.subf %143, %148 : vector<8x16xf32>
    %150 = arith.mulf %149, %149 : vector<8x16xf32>
    %cst_67 = arith.constant dense<0.000000e+00> : vector<8xf32>
    %151 = vector.multi_reduction <add>, %150, %cst_67 [1] : vector<8x16xf32> to vector<8xf32>
    %152 = vector.shape_cast %151 : vector<8xf32> to vector<8x1xf32>
    %cst_68 = arith.constant 1.600000e+01 : f32
    %153 = vector.broadcast %cst_68 : f32 to vector<8x1xf32>
    %154 = arith.divf %152, %153 : vector<8x1xf32>
    %cst_69 = arith.constant 9.99999974E-6 : f32
    %155 = vector.broadcast %cst_69 : f32 to vector<8x1xf32>
    %156 = arith.addf %154, %155 : vector<8x1xf32>
    %157 = math.rsqrt %156 : vector<8x1xf32>
    %158 = vector.broadcast %157 : vector<8x1xf32> to vector<8x16xf32>
    %159 = arith.mulf %149, %158 : vector<8x16xf32>
    %c0_70 = arith.constant 0 : index
    %c0_71 = arith.constant 0 : index
    %160 = vector.load %arg11[%c0_70, %c0_71] : memref<1x64xf32, #tpu.memory_space<vmem>>, vector<1x16xf32>
    %161 = vector.broadcast %160 : vector<1x16xf32> to vector<8x16xf32>
    %162 = arith.mulf %159, %161 : vector<8x16xf32>
    %c0_72 = arith.constant 0 : index
    %c0_73 = arith.constant 0 : index
    %163 = vector.load %arg16[%c0_72, %c0_73] : memref<8x64xf32, #tpu.memory_space<vmem>>, vector<8x16xf32>
    tpu.vector_store %arg16[%c0_72, %c0_73], %162 {strides = array<i32>} : memref<8x64xf32, #tpu.memory_space<vmem>>, vector<8x16xf32>,
    %164 = vector.extract_strided_slice %104 {offsets = [0, 1], sizes = [8, 1], strides = [1, 1]} : vector<8x4xf32> to vector<8x1xf32>
    %165 = vector.extract_strided_slice %105 {offsets = [0, 1], sizes = [8, 1], strides = [1, 1]} : vector<8x4xf32> to vector<8x1xf32>
    %cst_74 = arith.constant 0.000000e+00 : f32
    %166 = vector.shape_cast %165 : vector<8x1xf32> to vector<8x1xf32>
    %167 = vector.broadcast %166 : vector<8x1xf32> to vector<8x8xf32>
    %168 = vector.broadcast %cst_74 : f32 to vector<8x8xf32>
    %169 = arith.select %101, %167, %168 : vector<8x8xi1>, vector<8x8xf32>
    %cst_75 = arith.constant dense<0.000000e+00> : vector<8xf32>
    %170 = vector.multi_reduction <add>, %169, %cst_75 [0] : vector<8x8xf32> to vector<8xf32>
    %171 = vector.shape_cast %170 : vector<8xf32> to vector<1x8xf32>
    %172 = vector.broadcast %164 : vector<8x1xf32> to vector<8x8xf32>
    %173 = vector.broadcast %171 : vector<1x8xf32> to vector<8x8xf32>
    %174 = arith.addf %172, %173 : vector<8x8xf32>
    %cst_76 = arith.constant 0xFF800000 : f32
    %175 = vector.broadcast %cst_76 : f32 to vector<8x8xf32>
    %176 = arith.select %100, %174, %175 : vector<8x8xi1>, vector<8x8xf32>
    %cst_77 = arith.constant dense<0xFF800000> : vector<8xf32>
    %177 = vector.multi_reduction <maximumf>, %176, %cst_77 [1] : vector<8x8xf32> to vector<8xf32>
    %178 = vector.shape_cast %177 : vector<8xf32> to vector<8x1xf32>
    %179 = vector.broadcast %178 : vector<8x1xf32> to vector<8x8xf32>
    %180 = arith.subf %176, %179 : vector<8x8xf32>
    %181 = math.exp %180 : vector<8x8xf32>
    %182 = vector.extract_strided_slice %74 {offsets = [0, 16], sizes = [8, 16], strides = [1, 1]} : vector<8x64xf32> to vector<8x16xf32>
    %183 = vector.extract_strided_slice %75 {offsets = [0, 16], sizes = [8, 16], strides = [1, 1]} : vector<8x64xf32> to vector<8x16xf32>
    %184 = vector.extract_strided_slice %79 {offsets = [0, 16], sizes = [8, 16], strides = [1, 1]} : vector<8x64xf32> to vector<8x16xf32>
    %cst_78 = arith.constant dense<0.000000e+00> : vector<8x8xf32>
    %185 = tpu.matmul %182, %183, %cst_78 {dimension_numbers = #tpu.dot_dimension_numbers<[1], [1], [0], [0], [0, 0, 1, 0], [], []>} : vector<8x16xf32>, vector<8x16xf32>, vector<8x8xf32> -> vector<8x8xf32>
    %cst_79 = arith.constant 2.500000e-01 : f32
    %186 = vector.broadcast %cst_79 : f32 to vector<8x8xf32>
    %187 = arith.mulf %185, %186 : vector<8x8xf32>
    %188 = arith.mulf %187, %181 : vector<8x8xf32>
    %cst_80 = arith.constant dense<0.000000e+00> : vector<8xf32>
    %189 = vector.multi_reduction <add>, %188, %cst_80 [1] : vector<8x8xf32> to vector<8xf32>
    %190 = vector.shape_cast %189 : vector<8xf32> to vector<8x1xf32>
    %191 = math.absf %190 : vector<8x1xf32>
    %cst_81 = arith.constant 0.000000e+00 : f32
    %192 = vector.broadcast %cst_81 : f32 to vector<8x1xf32>
    %193 = arith.subf %192, %178 : vector<8x1xf32>
    %194 = math.exp %193 : vector<8x1xf32>
    %195 = arith.maximumf %191, %194 : vector<8x1xf32>
    %cst_82 = arith.constant 9.99999997E-7 : f32
    %196 = vector.broadcast %cst_82 : f32 to vector<8x1xf32>
    %197 = arith.addf %195, %196 : vector<8x1xf32>
    %198 = tpu.reciprocal %197 {approx = true} : vector<8x1xf32> -> vector<8x1xf32>
    %199 = vector.broadcast %198 : vector<8x1xf32> to vector<8x8xf32>
    %200 = arith.mulf %188, %199 : vector<8x8xf32>
    %cst_83 = arith.constant dense<0.000000e+00> : vector<8x16xf32>
    %201 = tpu.matmul %200, %184, %cst_83 {dimension_numbers = #tpu.dot_dimension_numbers<[1], [0], [0], [1], [0, 0, 1, 1], [], []>} : vector<8x8xf32>, vector<8x16xf32>, vector<8x16xf32> -> vector<8x16xf32>
    %cst_84 = arith.constant dense<0.000000e+00> : vector<8xf32>
    %202 = vector.multi_reduction <add>, %201, %cst_84 [1] : vector<8x16xf32> to vector<8xf32>
    %203 = vector.shape_cast %202 : vector<8xf32> to vector<8x1xf32>
    %cst_85 = arith.constant 1.600000e+01 : f32
    %204 = vector.broadcast %cst_85 : f32 to vector<8x1xf32>
    %205 = arith.divf %203, %204 : vector<8x1xf32>
    %206 = vector.broadcast %205 : vector<8x1xf32> to vector<8x16xf32>
    %207 = arith.subf %201, %206 : vector<8x16xf32>
    %208 = arith.mulf %207, %207 : vector<8x16xf32>
    %cst_86 = arith.constant dense<0.000000e+00> : vector<8xf32>
    %209 = vector.multi_reduction <add>, %208, %cst_86 [1] : vector<8x16xf32> to vector<8xf32>
    %210 = vector.shape_cast %209 : vector<8xf32> to vector<8x1xf32>
    %cst_87 = arith.constant 1.600000e+01 : f32
    %211 = vector.broadcast %cst_87 : f32 to vector<8x1xf32>
    %212 = arith.divf %210, %211 : vector<8x1xf32>
    %cst_88 = arith.constant 9.99999974E-6 : f32
    %213 = vector.broadcast %cst_88 : f32 to vector<8x1xf32>
    %214 = arith.addf %212, %213 : vector<8x1xf32>
    %215 = math.rsqrt %214 : vector<8x1xf32>
    %216 = vector.broadcast %215 : vector<8x1xf32> to vector<8x16xf32>
    %217 = arith.mulf %207, %216 : vector<8x16xf32>
    %c0_89 = arith.constant 0 : index
    %c16 = arith.constant 16 : index
    %218 = vector.load %arg11[%c0_89, %c16] : memref<1x64xf32, #tpu.memory_space<vmem>>, vector<1x16xf32>
    %219 = vector.broadcast %218 : vector<1x16xf32> to vector<8x16xf32>
    %220 = arith.mulf %217, %219 : vector<8x16xf32>
    %c0_90 = arith.constant 0 : index
    %c16_91 = arith.constant 16 : index
    %221 = vector.load %arg16[%c0_90, %c16_91] : memref<8x64xf32, #tpu.memory_space<vmem>>, vector<8x16xf32>
    tpu.vector_store %arg16[%c0_90, %c16_91], %220 {strides = array<i32>} : memref<8x64xf32, #tpu.memory_space<vmem>>, vector<8x16xf32>,
    %222 = vector.extract_strided_slice %104 {offsets = [0, 2], sizes = [8, 1], strides = [1, 1]} : vector<8x4xf32> to vector<8x1xf32>
    %223 = vector.extract_strided_slice %105 {offsets = [0, 2], sizes = [8, 1], strides = [1, 1]} : vector<8x4xf32> to vector<8x1xf32>
    %cst_92 = arith.constant 0.000000e+00 : f32
    %224 = vector.shape_cast %223 : vector<8x1xf32> to vector<8x1xf32>
    %225 = vector.broadcast %224 : vector<8x1xf32> to vector<8x8xf32>
    %226 = vector.broadcast %cst_92 : f32 to vector<8x8xf32>
    %227 = arith.select %101, %225, %226 : vector<8x8xi1>, vector<8x8xf32>
    %cst_93 = arith.constant dense<0.000000e+00> : vector<8xf32>
    %228 = vector.multi_reduction <add>, %227, %cst_93 [0] : vector<8x8xf32> to vector<8xf32>
    %229 = vector.shape_cast %228 : vector<8xf32> to vector<1x8xf32>
    %230 = vector.broadcast %222 : vector<8x1xf32> to vector<8x8xf32>
    %231 = vector.broadcast %229 : vector<1x8xf32> to vector<8x8xf32>
    %232 = arith.addf %230, %231 : vector<8x8xf32>
    %cst_94 = arith.constant 0xFF800000 : f32
    %233 = vector.broadcast %cst_94 : f32 to vector<8x8xf32>
    %234 = arith.select %100, %232, %233 : vector<8x8xi1>, vector<8x8xf32>
    %cst_95 = arith.constant dense<0xFF800000> : vector<8xf32>
    %235 = vector.multi_reduction <maximumf>, %234, %cst_95 [1] : vector<8x8xf32> to vector<8xf32>
    %236 = vector.shape_cast %235 : vector<8xf32> to vector<8x1xf32>
    %237 = vector.broadcast %236 : vector<8x1xf32> to vector<8x8xf32>
    %238 = arith.subf %234, %237 : vector<8x8xf32>
    %239 = math.exp %238 : vector<8x8xf32>
    %240 = vector.extract_strided_slice %74 {offsets = [0, 32], sizes = [8, 16], strides = [1, 1]} : vector<8x64xf32> to vector<8x16xf32>
    %241 = vector.extract_strided_slice %75 {offsets = [0, 32], sizes = [8, 16], strides = [1, 1]} : vector<8x64xf32> to vector<8x16xf32>
    %242 = vector.extract_strided_slice %79 {offsets = [0, 32], sizes = [8, 16], strides = [1, 1]} : vector<8x64xf32> to vector<8x16xf32>
    %cst_96 = arith.constant dense<0.000000e+00> : vector<8x8xf32>
    %243 = tpu.matmul %240, %241, %cst_96 {dimension_numbers = #tpu.dot_dimension_numbers<[1], [1], [0], [0], [0, 0, 1, 0], [], []>} : vector<8x16xf32>, vector<8x16xf32>, vector<8x8xf32> -> vector<8x8xf32>
    %cst_97 = arith.constant 2.500000e-01 : f32
    %244 = vector.broadcast %cst_97 : f32 to vector<8x8xf32>
    %245 = arith.mulf %243, %244 : vector<8x8xf32>
    %246 = arith.mulf %245, %239 : vector<8x8xf32>
    %cst_98 = arith.constant dense<0.000000e+00> : vector<8xf32>
    %247 = vector.multi_reduction <add>, %246, %cst_98 [1] : vector<8x8xf32> to vector<8xf32>
    %248 = vector.shape_cast %247 : vector<8xf32> to vector<8x1xf32>
    %249 = math.absf %248 : vector<8x1xf32>
    %cst_99 = arith.constant 0.000000e+00 : f32
    %250 = vector.broadcast %cst_99 : f32 to vector<8x1xf32>
    %251 = arith.subf %250, %236 : vector<8x1xf32>
    %252 = math.exp %251 : vector<8x1xf32>
    %253 = arith.maximumf %249, %252 : vector<8x1xf32>
    %cst_100 = arith.constant 9.99999997E-7 : f32
    %254 = vector.broadcast %cst_100 : f32 to vector<8x1xf32>
    %255 = arith.addf %253, %254 : vector<8x1xf32>
    %256 = tpu.reciprocal %255 {approx = true} : vector<8x1xf32> -> vector<8x1xf32>
    %257 = vector.broadcast %256 : vector<8x1xf32> to vector<8x8xf32>
    %258 = arith.mulf %246, %257 : vector<8x8xf32>
    %cst_101 = arith.constant dense<0.000000e+00> : vector<8x16xf32>
    %259 = tpu.matmul %258, %242, %cst_101 {dimension_numbers = #tpu.dot_dimension_numbers<[1], [0], [0], [1], [0, 0, 1, 1], [], []>} : vector<8x8xf32>, vector<8x16xf32>, vector<8x16xf32> -> vector<8x16xf32>
    %cst_102 = arith.constant dense<0.000000e+00> : vector<8xf32>
    %260 = vector.multi_reduction <add>, %259, %cst_102 [1] : vector<8x16xf32> to vector<8xf32>
    %261 = vector.shape_cast %260 : vector<8xf32> to vector<8x1xf32>
    %cst_103 = arith.constant 1.600000e+01 : f32
    %262 = vector.broadcast %cst_103 : f32 to vector<8x1xf32>
    %263 = arith.divf %261, %262 : vector<8x1xf32>
    %264 = vector.broadcast %263 : vector<8x1xf32> to vector<8x16xf32>
    %265 = arith.subf %259, %264 : vector<8x16xf32>
    %266 = arith.mulf %265, %265 : vector<8x16xf32>
    %cst_104 = arith.constant dense<0.000000e+00> : vector<8xf32>
    %267 = vector.multi_reduction <add>, %266, %cst_104 [1] : vector<8x16xf32> to vector<8xf32>
    %268 = vector.shape_cast %267 : vector<8xf32> to vector<8x1xf32>
    %cst_105 = arith.constant 1.600000e+01 : f32
    %269 = vector.broadcast %cst_105 : f32 to vector<8x1xf32>
    %270 = arith.divf %268, %269 : vector<8x1xf32>
    %cst_106 = arith.constant 9.99999974E-6 : f32
    %271 = vector.broadcast %cst_106 : f32 to vector<8x1xf32>
    %272 = arith.addf %270, %271 : vector<8x1xf32>
    %273 = math.rsqrt %272 : vector<8x1xf32>
    %274 = vector.broadcast %273 : vector<8x1xf32> to vector<8x16xf32>
    %275 = arith.mulf %265, %274 : vector<8x16xf32>
    %c0_107 = arith.constant 0 : index
    %c32 = arith.constant 32 : index
    %276 = vector.load %arg11[%c0_107, %c32] : memref<1x64xf32, #tpu.memory_space<vmem>>, vector<1x16xf32>
    %277 = vector.broadcast %276 : vector<1x16xf32> to vector<8x16xf32>
    %278 = arith.mulf %275, %277 : vector<8x16xf32>
    %c0_108 = arith.constant 0 : index
    %c32_109 = arith.constant 32 : index
    %279 = vector.load %arg16[%c0_108, %c32_109] : memref<8x64xf32, #tpu.memory_space<vmem>>, vector<8x16xf32>
    tpu.vector_store %arg16[%c0_108, %c32_109], %278 {strides = array<i32>} : memref<8x64xf32, #tpu.memory_space<vmem>>, vector<8x16xf32>,
    %280 = vector.extract_strided_slice %104 {offsets = [0, 3], sizes = [8, 1], strides = [1, 1]} : vector<8x4xf32> to vector<8x1xf32>
    %281 = vector.extract_strided_slice %105 {offsets = [0, 3], sizes = [8, 1], strides = [1, 1]} : vector<8x4xf32> to vector<8x1xf32>
    %cst_110 = arith.constant 0.000000e+00 : f32
    %282 = vector.shape_cast %281 : vector<8x1xf32> to vector<8x1xf32>
    %283 = vector.broadcast %282 : vector<8x1xf32> to vector<8x8xf32>
    %284 = vector.broadcast %cst_110 : f32 to vector<8x8xf32>
    %285 = arith.select %101, %283, %284 : vector<8x8xi1>, vector<8x8xf32>
    %cst_111 = arith.constant dense<0.000000e+00> : vector<8xf32>
    %286 = vector.multi_reduction <add>, %285, %cst_111 [0] : vector<8x8xf32> to vector<8xf32>
    %287 = vector.shape_cast %286 : vector<8xf32> to vector<1x8xf32>
    %288 = vector.broadcast %280 : vector<8x1xf32> to vector<8x8xf32>
    %289 = vector.broadcast %287 : vector<1x8xf32> to vector<8x8xf32>
    %290 = arith.addf %288, %289 : vector<8x8xf32>
    %cst_112 = arith.constant 0xFF800000 : f32
    %291 = vector.broadcast %cst_112 : f32 to vector<8x8xf32>
    %292 = arith.select %100, %290, %291 : vector<8x8xi1>, vector<8x8xf32>
    %cst_113 = arith.constant dense<0xFF800000> : vector<8xf32>
    %293 = vector.multi_reduction <maximumf>, %292, %cst_113 [1] : vector<8x8xf32> to vector<8xf32>
    %294 = vector.shape_cast %293 : vector<8xf32> to vector<8x1xf32>
    %295 = vector.broadcast %294 : vector<8x1xf32> to vector<8x8xf32>
    %296 = arith.subf %292, %295 : vector<8x8xf32>
    %297 = math.exp %296 : vector<8x8xf32>
    %298 = vector.extract_strided_slice %74 {offsets = [0, 48], sizes = [8, 16], strides = [1, 1]} : vector<8x64xf32> to vector<8x16xf32>
    %299 = vector.extract_strided_slice %75 {offsets = [0, 48], sizes = [8, 16], strides = [1, 1]} : vector<8x64xf32> to vector<8x16xf32>
    %300 = vector.extract_strided_slice %79 {offsets = [0, 48], sizes = [8, 16], strides = [1, 1]} : vector<8x64xf32> to vector<8x16xf32>
    %cst_114 = arith.constant dense<0.000000e+00> : vector<8x8xf32>
    %301 = tpu.matmul %298, %299, %cst_114 {dimension_numbers = #tpu.dot_dimension_numbers<[1], [1], [0], [0], [0, 0, 1, 0], [], []>} : vector<8x16xf32>, vector<8x16xf32>, vector<8x8xf32> -> vector<8x8xf32>
    %cst_115 = arith.constant 2.500000e-01 : f32
    %302 = vector.broadcast %cst_115 : f32 to vector<8x8xf32>
    %303 = arith.mulf %301, %302 : vector<8x8xf32>
    %304 = arith.mulf %303, %297 : vector<8x8xf32>
    %cst_116 = arith.constant dense<0.000000e+00> : vector<8xf32>
    %305 = vector.multi_reduction <add>, %304, %cst_116 [1] : vector<8x8xf32> to vector<8xf32>
    %306 = vector.shape_cast %305 : vector<8xf32> to vector<8x1xf32>
    %307 = math.absf %306 : vector<8x1xf32>
    %cst_117 = arith.constant 0.000000e+00 : f32
    %308 = vector.broadcast %cst_117 : f32 to vector<8x1xf32>
    %309 = arith.subf %308, %294 : vector<8x1xf32>
    %310 = math.exp %309 : vector<8x1xf32>
    %311 = arith.maximumf %307, %310 : vector<8x1xf32>
    %cst_118 = arith.constant 9.99999997E-7 : f32
    %312 = vector.broadcast %cst_118 : f32 to vector<8x1xf32>
    %313 = arith.addf %311, %312 : vector<8x1xf32>
    %314 = tpu.reciprocal %313 {approx = true} : vector<8x1xf32> -> vector<8x1xf32>
    %315 = vector.broadcast %314 : vector<8x1xf32> to vector<8x8xf32>
    %316 = arith.mulf %304, %315 : vector<8x8xf32>
    %cst_119 = arith.constant dense<0.000000e+00> : vector<8x16xf32>
    %317 = tpu.matmul %316, %300, %cst_119 {dimension_numbers = #tpu.dot_dimension_numbers<[1], [0], [0], [1], [0, 0, 1, 1], [], []>} : vector<8x8xf32>, vector<8x16xf32>, vector<8x16xf32> -> vector<8x16xf32>
    %cst_120 = arith.constant dense<0.000000e+00> : vector<8xf32>
    %318 = vector.multi_reduction <add>, %317, %cst_120 [1] : vector<8x16xf32> to vector<8xf32>
    %319 = vector.shape_cast %318 : vector<8xf32> to vector<8x1xf32>
    %cst_121 = arith.constant 1.600000e+01 : f32
    %320 = vector.broadcast %cst_121 : f32 to vector<8x1xf32>
    %321 = arith.divf %319, %320 : vector<8x1xf32>
    %322 = vector.broadcast %321 : vector<8x1xf32> to vector<8x16xf32>
    %323 = arith.subf %317, %322 : vector<8x16xf32>
    %324 = arith.mulf %323, %323 : vector<8x16xf32>
    %cst_122 = arith.constant dense<0.000000e+00> : vector<8xf32>
    %325 = vector.multi_reduction <add>, %324, %cst_122 [1] : vector<8x16xf32> to vector<8xf32>
    %326 = vector.shape_cast %325 : vector<8xf32> to vector<8x1xf32>
    %cst_123 = arith.constant 1.600000e+01 : f32
    %327 = vector.broadcast %cst_123 : f32 to vector<8x1xf32>
    %328 = arith.divf %326, %327 : vector<8x1xf32>
    %cst_124 = arith.constant 9.99999974E-6 : f32
    %329 = vector.broadcast %cst_124 : f32 to vector<8x1xf32>
    %330 = arith.addf %328, %329 : vector<8x1xf32>
    %331 = math.rsqrt %330 : vector<8x1xf32>
    %332 = vector.broadcast %331 : vector<8x1xf32> to vector<8x16xf32>
    %333 = arith.mulf %323, %332 : vector<8x16xf32>
    %c0_125 = arith.constant 0 : index
    %c48 = arith.constant 48 : index
    %334 = vector.load %arg11[%c0_125, %c48] : memref<1x64xf32, #tpu.memory_space<vmem>>, vector<1x16xf32>
    %335 = vector.broadcast %334 : vector<1x16xf32> to vector<8x16xf32>
    %336 = arith.mulf %333, %335 : vector<8x16xf32>
    %c0_126 = arith.constant 0 : index
    %c48_127 = arith.constant 48 : index
    %337 = vector.load %arg16[%c0_126, %c48_127] : memref<8x64xf32, #tpu.memory_space<vmem>>, vector<8x16xf32>
    tpu.vector_store %arg16[%c0_126, %c48_127], %336 {strides = array<i32>} : memref<8x64xf32, #tpu.memory_space<vmem>>, vector<8x16xf32>,
    %c0_128 = arith.constant 0 : index
    %c0_129 = arith.constant 0 : index
    %338 = vector.load %arg16[%c0_128, %c0_129] : memref<8x64xf32, #tpu.memory_space<vmem>>, vector<8x64xf32>
    %c0_130 = arith.constant 0 : index
    %c0_131 = arith.constant 0 : index
    %339 = vector.load %arg12[%c0_130, %c0_131] : memref<1x64xf32, #tpu.memory_space<vmem>>, vector<1x64xf32>
    %340 = vector.broadcast %339 : vector<1x64xf32> to vector<8x64xf32>
    %341 = arith.mulf %340, %70 : vector<8x64xf32>
    %342 = arith.addf %338, %341 : vector<8x64xf32>
    %cst_132 = arith.constant 0.000000e+00 : f32
    %343 = vector.broadcast %cst_132 : f32 to vector<8x64xf32>
    %344 = arith.subf %343, %33 : vector<8x64xf32>
    %345 = math.exp %344 : vector<8x64xf32>
    %cst_133 = arith.constant 1.000000e+00 : f32
    %346 = vector.broadcast %cst_133 : f32 to vector<8x64xf32>
    %347 = arith.addf %346, %345 : vector<8x64xf32>
    %cst_134 = arith.constant 1.000000e+00 : f32
    %348 = vector.broadcast %cst_134 : f32 to vector<8x64xf32>
    %349 = arith.divf %348, %347 : vector<8x64xf32>
    %350 = arith.mulf %33, %349 : vector<8x64xf32>
    %351 = arith.mulf %342, %350 : vector<8x64xf32>
    %c0_135 = arith.constant 0 : index
    %c0_136 = arith.constant 0 : index
    %352 = vector.load %arg13[%c0_135, %c0_136] : memref<64x32xbf16, #tpu.memory_space<vmem>>, vector<64x32xbf16>
    %353 = arith.truncf %351 : vector<8x64xf32> to vector<8x64xbf16>
    %cst_137 = arith.constant dense<0.000000e+00> : vector<8x32xf32>
    %354 = tpu.matmul %353, %352, %cst_137 {dimension_numbers = #tpu.dot_dimension_numbers<[1], [0], [0], [1], [0, 0, 1, 1], [], []>} : vector<8x64xbf16>, vector<64x32xbf16>, vector<8x32xf32> -> vector<8x32xf32>
    %355 = arith.addf %9, %354 : vector<8x32xf32>
    %c0_138 = arith.constant 0 : index
    %c0_139 = arith.constant 0 : index
    %c0_140 = arith.constant 0 : index
    %356 = vector.load %arg14[%c0_138, %c0_139, %c0_140] : memref<1x8x32xf32, #tpu.memory_space<vmem>>, vector<1x8x32xf32>
    %357 = vector.shape_cast %356 : vector<1x8x32xf32> to vector<8x32xf32>
    %358 = vector.shape_cast %355 : vector<8x32xf32> to vector<1x8x32xf32>
    tpu.vector_store %arg14[%c0_138, %c0_139, %c0_140], %358 {strides = array<i32>} : memref<1x8x32xf32, #tpu.memory_space<vmem>>, vector<1x8x32xf32>,
    return
  }
  func.func @transform_0(%arg0: i32) -> (i32, i32, i32) {
    %c0_i32 = arith.constant 0 : i32
    %c0_i32_0 = arith.constant 0 : i32
    %c0_i32_1 = arith.constant 0 : i32
    return %arg0, %c0_i32, %c0_i32_0 : i32, i32, i32
  }
  func.func @transform_1(%arg0: i32) -> (i32, i32) {
    %c0_i32 = arith.constant 0 : i32
    %c0_i32_0 = arith.constant 0 : i32
    %c0_i32_1 = arith.constant 0 : i32
    return %c0_i32, %c0_i32_0 : i32, i32
  }
  func.func @transform_2(%arg0: i32) -> (i32, i32) {
    %c0_i32 = arith.constant 0 : i32
    %c0_i32_0 = arith.constant 0 : i32
    %c0_i32_1 = arith.constant 0 : i32
    return %c0_i32, %c0_i32_0 : i32, i32
  }
  func.func @transform_3(%arg0: i32) -> (i32, i32) {
    %c0_i32 = arith.constant 0 : i32
    %c0_i32_0 = arith.constant 0 : i32
    %c0_i32_1 = arith.constant 0 : i32
    return %c0_i32, %c0_i32_0 : i32, i32
  }
  func.func @transform_4(%arg0: i32) -> (i32, i32) {
    %c0_i32 = arith.constant 0 : i32
    %c0_i32_0 = arith.constant 0 : i32
    %c0_i32_1 = arith.constant 0 : i32
    return %c0_i32, %c0_i32_0 : i32, i32
  }
  func.func @transform_5(%arg0: i32) -> (i32, i32) {
    %c0_i32 = arith.constant 0 : i32
    %c0_i32_0 = arith.constant 0 : i32
    %c0_i32_1 = arith.constant 0 : i32
    return %c0_i32, %c0_i32_0 : i32, i32
  }
  func.func @transform_6(%arg0: i32) -> (i32, i32) {
    %c0_i32 = arith.constant 0 : i32
    %c0_i32_0 = arith.constant 0 : i32
    %c0_i32_1 = arith.constant 0 : i32
    return %c0_i32, %c0_i32_0 : i32, i32
  }
  func.func @transform_7(%arg0: i32) -> (i32, i32) {
    %c0_i32 = arith.constant 0 : i32
    %c0_i32_0 = arith.constant 0 : i32
    %c0_i32_1 = arith.constant 0 : i32
    return %c0_i32, %c0_i32_0 : i32, i32
  }
  func.func @transform_8(%arg0: i32) -> (i32, i32) {
    %c0_i32 = arith.constant 0 : i32
    %c0_i32_0 = arith.constant 0 : i32
    %c0_i32_1 = arith.constant 0 : i32
    return %c0_i32, %c0_i32_0 : i32, i32
  }
  func.func @transform_9(%arg0: i32) -> (i32, i32) {
    %c0_i32 = arith.constant 0 : i32
    %c0_i32_0 = arith.constant 0 : i32
    %c0_i32_1 = arith.constant 0 : i32
    return %c0_i32, %c0_i32_0 : i32, i32
  }
  func.func @transform_10(%arg0: i32) -> (i32, i32) {
    %c0_i32 = arith.constant 0 : i32
    %c0_i32_0 = arith.constant 0 : i32
    %c0_i32_1 = arith.constant 0 : i32
    return %c0_i32, %c0_i32_0 : i32, i32
  }
  func.func @transform_11(%arg0: i32) -> (i32, i32) {
    %c0_i32 = arith.constant 0 : i32
    %c0_i32_0 = arith.constant 0 : i32
    %c0_i32_1 = arith.constant 0 : i32
    return %c0_i32, %c0_i32_0 : i32, i32
  }
  func.func @transform_12(%arg0: i32) -> (i32, i32) {
    %c0_i32 = arith.constant 0 : i32
    %c0_i32_0 = arith.constant 0 : i32
    %c0_i32_1 = arith.constant 0 : i32
    return %c0_i32, %c0_i32_0 : i32, i32
  }
  func.func @transform_13(%arg0: i32) -> (i32, i32, i32) {
    %c0_i32 = arith.constant 0 : i32
    %c0_i32_0 = arith.constant 0 : i32
    %c0_i32_1 = arith.constant 0 : i32
    return %arg0, %c0_i32, %c0_i32_0 : i32, i32, i32
  }
}

module attributes {stable_mosaic.version = 11 : i64} {
  func.func @_transformer_kernel(%arg0: i32, %arg1: memref<1x8x32xf32, #tpu.memory_space<vmem>>, %arg2: memref<1x32xf32, #tpu.memory_space<vmem>>, %arg3: memref<32x96xbf16, #tpu.memory_space<vmem>>, %arg4: memref<1x96xf32, #tpu.memory_space<vmem>>, %arg5: memref<32x32xbf16, #tpu.memory_space<vmem>>, %arg6: memref<1x32xf32, #tpu.memory_space<vmem>>, %arg7: memref<1x32xf32, #tpu.memory_space<vmem>>, %arg8: memref<1x32xf32, #tpu.memory_space<vmem>>, %arg9: memref<32x64xbf16, #tpu.memory_space<vmem>>, %arg10: memref<1x64xf32, #tpu.memory_space<vmem>>, %arg11: memref<64x32xbf16, #tpu.memory_space<vmem>>, %arg12: memref<1x32xf32, #tpu.memory_space<vmem>>, %arg13: memref<1x32xf32, #tpu.memory_space<vmem>>, %arg14: memref<1x32xf32, #tpu.memory_space<vmem>>, %arg15: memref<32x128xbf16, #tpu.memory_space<vmem>>, %arg16: memref<1x128xf32, #tpu.memory_space<vmem>>, %arg17: memref<1x1x128xf32, #tpu.memory_space<vmem>>, %arg18: memref<8x32xf32, #tpu.memory_space<vmem>>) attributes {dimension_semantics = [#tpu.dimension_semantics<parallel>], iteration_bounds = array<i64: 2>, scalar_prefetch = 0 : i64, scratch_operands = 1 : i64, tpu.core_type = #tpu.core_type<tc>, window_params = [{transform_indices = @transform_0, window_bounds = array<i64: 1, 8, 32>}, {pipeline_mode = #tpu.pipeline_mode<synchronous>, transform_indices = @transform_1, window_bounds = array<i64: 1, 32>}, {pipeline_mode = #tpu.pipeline_mode<synchronous>, transform_indices = @transform_2, window_bounds = array<i64: 32, 96>}, {pipeline_mode = #tpu.pipeline_mode<synchronous>, transform_indices = @transform_3, window_bounds = array<i64: 1, 96>}, {pipeline_mode = #tpu.pipeline_mode<synchronous>, transform_indices = @transform_4, window_bounds = array<i64: 32, 32>}, {pipeline_mode = #tpu.pipeline_mode<synchronous>, transform_indices = @transform_5, window_bounds = array<i64: 1, 32>}, {pipeline_mode = #tpu.pipeline_mode<synchronous>, transform_indices = @transform_6, window_bounds = array<i64: 1, 32>}, {pipeline_mode = #tpu.pipeline_mode<synchronous>, transform_indices = @transform_7, window_bounds = array<i64: 1, 32>}, {pipeline_mode = #tpu.pipeline_mode<synchronous>, transform_indices = @transform_8, window_bounds = array<i64: 32, 64>}, {pipeline_mode = #tpu.pipeline_mode<synchronous>, transform_indices = @transform_9, window_bounds = array<i64: 1, 64>}, {pipeline_mode = #tpu.pipeline_mode<synchronous>, transform_indices = @transform_10, window_bounds = array<i64: 64, 32>}, {pipeline_mode = #tpu.pipeline_mode<synchronous>, transform_indices = @transform_11, window_bounds = array<i64: 1, 32>}, {pipeline_mode = #tpu.pipeline_mode<synchronous>, transform_indices = @transform_12, window_bounds = array<i64: 1, 32>}, {pipeline_mode = #tpu.pipeline_mode<synchronous>, transform_indices = @transform_13, window_bounds = array<i64: 1, 32>}, {pipeline_mode = #tpu.pipeline_mode<synchronous>, transform_indices = @transform_14, window_bounds = array<i64: 32, 128>}, {pipeline_mode = #tpu.pipeline_mode<synchronous>, transform_indices = @transform_15, window_bounds = array<i64: 1, 128>}, {transform_indices = @transform_16, window_bounds = array<i64: 1, 1, 128>}]} {
    %c0 = arith.constant 0 : index
    %c0_0 = arith.constant 0 : index
    %c0_1 = arith.constant 0 : index
    %0 = vector.load %arg1[%c0, %c0_0, %c0_1] : memref<1x8x32xf32, #tpu.memory_space<vmem>>, vector<1x8x32xf32>
    %1 = vector.shape_cast %0 : vector<1x8x32xf32> to vector<8x32xf32>
    %c0_2 = arith.constant 0 : index
    %c0_3 = arith.constant 0 : index
    %2 = vector.load %arg2[%c0_2, %c0_3] : memref<1x32xf32, #tpu.memory_space<vmem>>, vector<1x32xf32>
    %cst = arith.constant dense<0.000000e+00> : vector<8xf32>
    %3 = vector.multi_reduction <add>, %1, %cst [1] : vector<8x32xf32> to vector<8xf32>
    %4 = vector.shape_cast %3 : vector<8xf32> to vector<8x1xf32>
    %cst_4 = arith.constant 3.200000e+01 : f32
    %5 = vector.broadcast %cst_4 : f32 to vector<8x1xf32>
    %6 = arith.divf %4, %5 : vector<8x1xf32>
    %7 = vector.broadcast %6 : vector<8x1xf32> to vector<8x32xf32>
    %8 = arith.subf %1, %7 : vector<8x32xf32>
    %9 = arith.mulf %8, %8 : vector<8x32xf32>
    %cst_5 = arith.constant dense<0.000000e+00> : vector<8xf32>
    %10 = vector.multi_reduction <add>, %9, %cst_5 [1] : vector<8x32xf32> to vector<8xf32>
    %11 = vector.shape_cast %10 : vector<8xf32> to vector<8x1xf32>
    %cst_6 = arith.constant 3.200000e+01 : f32
    %12 = vector.broadcast %cst_6 : f32 to vector<8x1xf32>
    %13 = arith.divf %11, %12 : vector<8x1xf32>
    %cst_7 = arith.constant 9.99999974E-6 : f32
    %14 = vector.broadcast %cst_7 : f32 to vector<8x1xf32>
    %15 = arith.addf %13, %14 : vector<8x1xf32>
    %16 = math.rsqrt %15 : vector<8x1xf32>
    %17 = vector.broadcast %16 : vector<8x1xf32> to vector<8x32xf32>
    %18 = arith.mulf %8, %17 : vector<8x32xf32>
    %19 = vector.broadcast %2 : vector<1x32xf32> to vector<8x32xf32>
    %20 = arith.mulf %18, %19 : vector<8x32xf32>
    %c0_8 = arith.constant 0 : index
    %c0_9 = arith.constant 0 : index
    %21 = vector.load %arg3[%c0_8, %c0_9] : memref<32x96xbf16, #tpu.memory_space<vmem>>, vector<32x96xbf16>
    %22 = arith.truncf %20 : vector<8x32xf32> to vector<8x32xbf16>
    %cst_10 = arith.constant dense<0.000000e+00> : vector<8x96xf32>
    %23 = tpu.matmul %22, %21, %cst_10 {dimension_numbers = #tpu.dot_dimension_numbers<[1], [0], [0], [1], [0, 0, 1, 1], [], []>} : vector<8x32xbf16>, vector<32x96xbf16>, vector<8x96xf32> -> vector<8x96xf32>
    %c0_11 = arith.constant 0 : index
    %c0_12 = arith.constant 0 : index
    %24 = vector.load %arg4[%c0_11, %c0_12] : memref<1x96xf32, #tpu.memory_space<vmem>>, vector<1x96xf32>
    %25 = vector.broadcast %24 : vector<1x96xf32> to vector<8x96xf32>
    %26 = arith.addf %23, %25 : vector<8x96xf32>
    %27 = vector.extract_strided_slice %26 {offsets = [0, 0], sizes = [8, 32], strides = [1, 1]} : vector<8x96xf32> to vector<8x32xf32>
    %28 = vector.extract_strided_slice %26 {offsets = [0, 32], sizes = [8, 32], strides = [1, 1]} : vector<8x96xf32> to vector<8x32xf32>
    %29 = vector.extract_strided_slice %26 {offsets = [0, 64], sizes = [8, 32], strides = [1, 1]} : vector<8x96xf32> to vector<8x32xf32>
    %30 = vector.extract_strided_slice %27 {offsets = [0, 0], sizes = [8, 8], strides = [1, 1]} : vector<8x32xf32> to vector<8x8xf32>
    %31 = vector.extract_strided_slice %28 {offsets = [0, 0], sizes = [8, 8], strides = [1, 1]} : vector<8x32xf32> to vector<8x8xf32>
    %32 = vector.extract_strided_slice %29 {offsets = [0, 0], sizes = [8, 8], strides = [1, 1]} : vector<8x32xf32> to vector<8x8xf32>
    %cst_13 = arith.constant dense<0.000000e+00> : vector<8x8xf32>
    %33 = tpu.matmul %30, %31, %cst_13 {dimension_numbers = #tpu.dot_dimension_numbers<[1], [1], [0], [0], [0, 0, 1, 0], [], []>} : vector<8x8xf32>, vector<8x8xf32>, vector<8x8xf32> -> vector<8x8xf32>
    %cst_14 = arith.constant 0.353553385 : f32
    %34 = vector.broadcast %cst_14 : f32 to vector<8x8xf32>
    %35 = arith.mulf %33, %34 : vector<8x8xf32>
    %cst_15 = arith.constant dense<0xFF800000> : vector<8xf32>
    %36 = vector.multi_reduction <maximumf>, %35, %cst_15 [1] : vector<8x8xf32> to vector<8xf32>
    %37 = vector.shape_cast %36 : vector<8xf32> to vector<8x1xf32>
    %38 = vector.broadcast %37 : vector<8x1xf32> to vector<8x8xf32>
    %39 = arith.subf %35, %38 : vector<8x8xf32>
    %40 = math.exp %39 : vector<8x8xf32>
    %cst_16 = arith.constant dense<0.000000e+00> : vector<8xf32>
    %41 = vector.multi_reduction <add>, %40, %cst_16 [1] : vector<8x8xf32> to vector<8xf32>
    %42 = vector.shape_cast %41 : vector<8xf32> to vector<8x1xf32>
    %43 = tpu.reciprocal %42 {approx = true} : vector<8x1xf32> -> vector<8x1xf32>
    %44 = vector.broadcast %43 : vector<8x1xf32> to vector<8x8xf32>
    %45 = arith.mulf %40, %44 : vector<8x8xf32>
    %cst_17 = arith.constant dense<0.000000e+00> : vector<8x8xf32>
    %46 = tpu.matmul %45, %32, %cst_17 {dimension_numbers = #tpu.dot_dimension_numbers<[1], [0], [0], [1], [0, 0, 1, 1], [], []>} : vector<8x8xf32>, vector<8x8xf32>, vector<8x8xf32> -> vector<8x8xf32>
    %c0_18 = arith.constant 0 : index
    %c0_19 = arith.constant 0 : index
    %47 = vector.load %arg18[%c0_18, %c0_19] : memref<8x32xf32, #tpu.memory_space<vmem>>, vector<8x8xf32>
    tpu.vector_store %arg18[%c0_18, %c0_19], %46 {strides = array<i32>} : memref<8x32xf32, #tpu.memory_space<vmem>>, vector<8x8xf32>,
    %48 = vector.extract_strided_slice %27 {offsets = [0, 8], sizes = [8, 8], strides = [1, 1]} : vector<8x32xf32> to vector<8x8xf32>
    %49 = vector.extract_strided_slice %28 {offsets = [0, 8], sizes = [8, 8], strides = [1, 1]} : vector<8x32xf32> to vector<8x8xf32>
    %50 = vector.extract_strided_slice %29 {offsets = [0, 8], sizes = [8, 8], strides = [1, 1]} : vector<8x32xf32> to vector<8x8xf32>
    %cst_20 = arith.constant dense<0.000000e+00> : vector<8x8xf32>
    %51 = tpu.matmul %48, %49, %cst_20 {dimension_numbers = #tpu.dot_dimension_numbers<[1], [1], [0], [0], [0, 0, 1, 0], [], []>} : vector<8x8xf32>, vector<8x8xf32>, vector<8x8xf32> -> vector<8x8xf32>
    %cst_21 = arith.constant 0.353553385 : f32
    %52 = vector.broadcast %cst_21 : f32 to vector<8x8xf32>
    %53 = arith.mulf %51, %52 : vector<8x8xf32>
    %cst_22 = arith.constant dense<0xFF800000> : vector<8xf32>
    %54 = vector.multi_reduction <maximumf>, %53, %cst_22 [1] : vector<8x8xf32> to vector<8xf32>
    %55 = vector.shape_cast %54 : vector<8xf32> to vector<8x1xf32>
    %56 = vector.broadcast %55 : vector<8x1xf32> to vector<8x8xf32>
    %57 = arith.subf %53, %56 : vector<8x8xf32>
    %58 = math.exp %57 : vector<8x8xf32>
    %cst_23 = arith.constant dense<0.000000e+00> : vector<8xf32>
    %59 = vector.multi_reduction <add>, %58, %cst_23 [1] : vector<8x8xf32> to vector<8xf32>
    %60 = vector.shape_cast %59 : vector<8xf32> to vector<8x1xf32>
    %61 = tpu.reciprocal %60 {approx = true} : vector<8x1xf32> -> vector<8x1xf32>
    %62 = vector.broadcast %61 : vector<8x1xf32> to vector<8x8xf32>
    %63 = arith.mulf %58, %62 : vector<8x8xf32>
    %cst_24 = arith.constant dense<0.000000e+00> : vector<8x8xf32>
    %64 = tpu.matmul %63, %50, %cst_24 {dimension_numbers = #tpu.dot_dimension_numbers<[1], [0], [0], [1], [0, 0, 1, 1], [], []>} : vector<8x8xf32>, vector<8x8xf32>, vector<8x8xf32> -> vector<8x8xf32>
    %c0_25 = arith.constant 0 : index
    %c8 = arith.constant 8 : index
    %65 = vector.load %arg18[%c0_25, %c8] : memref<8x32xf32, #tpu.memory_space<vmem>>, vector<8x8xf32>
    tpu.vector_store %arg18[%c0_25, %c8], %64 {strides = array<i32>} : memref<8x32xf32, #tpu.memory_space<vmem>>, vector<8x8xf32>,
    %66 = vector.extract_strided_slice %27 {offsets = [0, 16], sizes = [8, 8], strides = [1, 1]} : vector<8x32xf32> to vector<8x8xf32>
    %67 = vector.extract_strided_slice %28 {offsets = [0, 16], sizes = [8, 8], strides = [1, 1]} : vector<8x32xf32> to vector<8x8xf32>
    %68 = vector.extract_strided_slice %29 {offsets = [0, 16], sizes = [8, 8], strides = [1, 1]} : vector<8x32xf32> to vector<8x8xf32>
    %cst_26 = arith.constant dense<0.000000e+00> : vector<8x8xf32>
    %69 = tpu.matmul %66, %67, %cst_26 {dimension_numbers = #tpu.dot_dimension_numbers<[1], [1], [0], [0], [0, 0, 1, 0], [], []>} : vector<8x8xf32>, vector<8x8xf32>, vector<8x8xf32> -> vector<8x8xf32>
    %cst_27 = arith.constant 0.353553385 : f32
    %70 = vector.broadcast %cst_27 : f32 to vector<8x8xf32>
    %71 = arith.mulf %69, %70 : vector<8x8xf32>
    %cst_28 = arith.constant dense<0xFF800000> : vector<8xf32>
    %72 = vector.multi_reduction <maximumf>, %71, %cst_28 [1] : vector<8x8xf32> to vector<8xf32>
    %73 = vector.shape_cast %72 : vector<8xf32> to vector<8x1xf32>
    %74 = vector.broadcast %73 : vector<8x1xf32> to vector<8x8xf32>
    %75 = arith.subf %71, %74 : vector<8x8xf32>
    %76 = math.exp %75 : vector<8x8xf32>
    %cst_29 = arith.constant dense<0.000000e+00> : vector<8xf32>
    %77 = vector.multi_reduction <add>, %76, %cst_29 [1] : vector<8x8xf32> to vector<8xf32>
    %78 = vector.shape_cast %77 : vector<8xf32> to vector<8x1xf32>
    %79 = tpu.reciprocal %78 {approx = true} : vector<8x1xf32> -> vector<8x1xf32>
    %80 = vector.broadcast %79 : vector<8x1xf32> to vector<8x8xf32>
    %81 = arith.mulf %76, %80 : vector<8x8xf32>
    %cst_30 = arith.constant dense<0.000000e+00> : vector<8x8xf32>
    %82 = tpu.matmul %81, %68, %cst_30 {dimension_numbers = #tpu.dot_dimension_numbers<[1], [0], [0], [1], [0, 0, 1, 1], [], []>} : vector<8x8xf32>, vector<8x8xf32>, vector<8x8xf32> -> vector<8x8xf32>
    %c0_31 = arith.constant 0 : index
    %c16 = arith.constant 16 : index
    %83 = vector.load %arg18[%c0_31, %c16] : memref<8x32xf32, #tpu.memory_space<vmem>>, vector<8x8xf32>
    tpu.vector_store %arg18[%c0_31, %c16], %82 {strides = array<i32>} : memref<8x32xf32, #tpu.memory_space<vmem>>, vector<8x8xf32>,
    %84 = vector.extract_strided_slice %27 {offsets = [0, 24], sizes = [8, 8], strides = [1, 1]} : vector<8x32xf32> to vector<8x8xf32>
    %85 = vector.extract_strided_slice %28 {offsets = [0, 24], sizes = [8, 8], strides = [1, 1]} : vector<8x32xf32> to vector<8x8xf32>
    %86 = vector.extract_strided_slice %29 {offsets = [0, 24], sizes = [8, 8], strides = [1, 1]} : vector<8x32xf32> to vector<8x8xf32>
    %cst_32 = arith.constant dense<0.000000e+00> : vector<8x8xf32>
    %87 = tpu.matmul %84, %85, %cst_32 {dimension_numbers = #tpu.dot_dimension_numbers<[1], [1], [0], [0], [0, 0, 1, 0], [], []>} : vector<8x8xf32>, vector<8x8xf32>, vector<8x8xf32> -> vector<8x8xf32>
    %cst_33 = arith.constant 0.353553385 : f32
    %88 = vector.broadcast %cst_33 : f32 to vector<8x8xf32>
    %89 = arith.mulf %87, %88 : vector<8x8xf32>
    %cst_34 = arith.constant dense<0xFF800000> : vector<8xf32>
    %90 = vector.multi_reduction <maximumf>, %89, %cst_34 [1] : vector<8x8xf32> to vector<8xf32>
    %91 = vector.shape_cast %90 : vector<8xf32> to vector<8x1xf32>
    %92 = vector.broadcast %91 : vector<8x1xf32> to vector<8x8xf32>
    %93 = arith.subf %89, %92 : vector<8x8xf32>
    %94 = math.exp %93 : vector<8x8xf32>
    %cst_35 = arith.constant dense<0.000000e+00> : vector<8xf32>
    %95 = vector.multi_reduction <add>, %94, %cst_35 [1] : vector<8x8xf32> to vector<8xf32>
    %96 = vector.shape_cast %95 : vector<8xf32> to vector<8x1xf32>
    %97 = tpu.reciprocal %96 {approx = true} : vector<8x1xf32> -> vector<8x1xf32>
    %98 = vector.broadcast %97 : vector<8x1xf32> to vector<8x8xf32>
    %99 = arith.mulf %94, %98 : vector<8x8xf32>
    %cst_36 = arith.constant dense<0.000000e+00> : vector<8x8xf32>
    %100 = tpu.matmul %99, %86, %cst_36 {dimension_numbers = #tpu.dot_dimension_numbers<[1], [0], [0], [1], [0, 0, 1, 1], [], []>} : vector<8x8xf32>, vector<8x8xf32>, vector<8x8xf32> -> vector<8x8xf32>
    %c0_37 = arith.constant 0 : index
    %c24 = arith.constant 24 : index
    %101 = vector.load %arg18[%c0_37, %c24] : memref<8x32xf32, #tpu.memory_space<vmem>>, vector<8x8xf32>
    tpu.vector_store %arg18[%c0_37, %c24], %100 {strides = array<i32>} : memref<8x32xf32, #tpu.memory_space<vmem>>, vector<8x8xf32>,
    %c0_38 = arith.constant 0 : index
    %c0_39 = arith.constant 0 : index
    %102 = vector.load %arg18[%c0_38, %c0_39] : memref<8x32xf32, #tpu.memory_space<vmem>>, vector<8x32xf32>
    %c0_40 = arith.constant 0 : index
    %c0_41 = arith.constant 0 : index
    %103 = vector.load %arg5[%c0_40, %c0_41] : memref<32x32xbf16, #tpu.memory_space<vmem>>, vector<32x32xbf16>
    %104 = arith.truncf %102 : vector<8x32xf32> to vector<8x32xbf16>
    %cst_42 = arith.constant dense<0.000000e+00> : vector<8x32xf32>
    %105 = tpu.matmul %104, %103, %cst_42 {dimension_numbers = #tpu.dot_dimension_numbers<[1], [0], [0], [1], [0, 0, 1, 1], [], []>} : vector<8x32xbf16>, vector<32x32xbf16>, vector<8x32xf32> -> vector<8x32xf32>
    %c0_43 = arith.constant 0 : index
    %c0_44 = arith.constant 0 : index
    %106 = vector.load %arg6[%c0_43, %c0_44] : memref<1x32xf32, #tpu.memory_space<vmem>>, vector<1x32xf32>
    %107 = vector.broadcast %106 : vector<1x32xf32> to vector<8x32xf32>
    %108 = arith.addf %105, %107 : vector<8x32xf32>
    %109 = arith.addf %20, %108 : vector<8x32xf32>
    %c0_45 = arith.constant 0 : index
    %c0_46 = arith.constant 0 : index
    %110 = vector.load %arg7[%c0_45, %c0_46] : memref<1x32xf32, #tpu.memory_space<vmem>>, vector<1x32xf32>
    %c0_47 = arith.constant 0 : index
    %c0_48 = arith.constant 0 : index
    %111 = vector.load %arg8[%c0_47, %c0_48] : memref<1x32xf32, #tpu.memory_space<vmem>>, vector<1x32xf32>
    %cst_49 = arith.constant dense<0.000000e+00> : vector<8xf32>
    %112 = vector.multi_reduction <add>, %109, %cst_49 [1] : vector<8x32xf32> to vector<8xf32>
    %113 = vector.shape_cast %112 : vector<8xf32> to vector<8x1xf32>
    %cst_50 = arith.constant 3.200000e+01 : f32
    %114 = vector.broadcast %cst_50 : f32 to vector<8x1xf32>
    %115 = arith.divf %113, %114 : vector<8x1xf32>
    %116 = vector.broadcast %115 : vector<8x1xf32> to vector<8x32xf32>
    %117 = arith.subf %109, %116 : vector<8x32xf32>
    %118 = arith.mulf %117, %117 : vector<8x32xf32>
    %cst_51 = arith.constant dense<0.000000e+00> : vector<8xf32>
    %119 = vector.multi_reduction <add>, %118, %cst_51 [1] : vector<8x32xf32> to vector<8xf32>
    %120 = vector.shape_cast %119 : vector<8xf32> to vector<8x1xf32>
    %cst_52 = arith.constant 3.200000e+01 : f32
    %121 = vector.broadcast %cst_52 : f32 to vector<8x1xf32>
    %122 = arith.divf %120, %121 : vector<8x1xf32>
    %cst_53 = arith.constant 9.99999974E-6 : f32
    %123 = vector.broadcast %cst_53 : f32 to vector<8x1xf32>
    %124 = arith.addf %122, %123 : vector<8x1xf32>
    %125 = math.rsqrt %124 : vector<8x1xf32>
    %126 = vector.broadcast %125 : vector<8x1xf32> to vector<8x32xf32>
    %127 = arith.mulf %117, %126 : vector<8x32xf32>
    %128 = vector.broadcast %110 : vector<1x32xf32> to vector<8x32xf32>
    %129 = arith.mulf %127, %128 : vector<8x32xf32>
    %130 = vector.broadcast %111 : vector<1x32xf32> to vector<8x32xf32>
    %131 = arith.addf %129, %130 : vector<8x32xf32>
    %c0_54 = arith.constant 0 : index
    %c0_55 = arith.constant 0 : index
    %132 = vector.load %arg9[%c0_54, %c0_55] : memref<32x64xbf16, #tpu.memory_space<vmem>>, vector<32x64xbf16>
    %133 = arith.truncf %131 : vector<8x32xf32> to vector<8x32xbf16>
    %cst_56 = arith.constant dense<0.000000e+00> : vector<8x64xf32>
    %134 = tpu.matmul %133, %132, %cst_56 {dimension_numbers = #tpu.dot_dimension_numbers<[1], [0], [0], [1], [0, 0, 1, 1], [], []>} : vector<8x32xbf16>, vector<32x64xbf16>, vector<8x64xf32> -> vector<8x64xf32>
    %c0_57 = arith.constant 0 : index
    %c0_58 = arith.constant 0 : index
    %135 = vector.load %arg10[%c0_57, %c0_58] : memref<1x64xf32, #tpu.memory_space<vmem>>, vector<1x64xf32>
    %136 = vector.broadcast %135 : vector<1x64xf32> to vector<8x64xf32>
    %137 = arith.addf %134, %136 : vector<8x64xf32>
    %cst_59 = arith.constant 0.000000e+00 : f32
    %138 = vector.broadcast %cst_59 : f32 to vector<8x64xf32>
    %139 = arith.maximumf %137, %138 : vector<8x64xf32>
    %c0_60 = arith.constant 0 : index
    %c0_61 = arith.constant 0 : index
    %140 = vector.load %arg11[%c0_60, %c0_61] : memref<64x32xbf16, #tpu.memory_space<vmem>>, vector<64x32xbf16>
    %141 = arith.truncf %139 : vector<8x64xf32> to vector<8x64xbf16>
    %cst_62 = arith.constant dense<0.000000e+00> : vector<8x32xf32>
    %142 = tpu.matmul %141, %140, %cst_62 {dimension_numbers = #tpu.dot_dimension_numbers<[1], [0], [0], [1], [0, 0, 1, 1], [], []>} : vector<8x64xbf16>, vector<64x32xbf16>, vector<8x32xf32> -> vector<8x32xf32>
    %c0_63 = arith.constant 0 : index
    %c0_64 = arith.constant 0 : index
    %143 = vector.load %arg12[%c0_63, %c0_64] : memref<1x32xf32, #tpu.memory_space<vmem>>, vector<1x32xf32>
    %144 = vector.broadcast %143 : vector<1x32xf32> to vector<8x32xf32>
    %145 = arith.addf %142, %144 : vector<8x32xf32>
    %146 = arith.addf %131, %145 : vector<8x32xf32>
    %c0_65 = arith.constant 0 : index
    %c0_66 = arith.constant 0 : index
    %147 = vector.load %arg13[%c0_65, %c0_66] : memref<1x32xf32, #tpu.memory_space<vmem>>, vector<1x32xf32>
    %c0_67 = arith.constant 0 : index
    %c0_68 = arith.constant 0 : index
    %148 = vector.load %arg14[%c0_67, %c0_68] : memref<1x32xf32, #tpu.memory_space<vmem>>, vector<1x32xf32>
    %cst_69 = arith.constant dense<0.000000e+00> : vector<8xf32>
    %149 = vector.multi_reduction <add>, %146, %cst_69 [1] : vector<8x32xf32> to vector<8xf32>
    %150 = vector.shape_cast %149 : vector<8xf32> to vector<8x1xf32>
    %cst_70 = arith.constant 3.200000e+01 : f32
    %151 = vector.broadcast %cst_70 : f32 to vector<8x1xf32>
    %152 = arith.divf %150, %151 : vector<8x1xf32>
    %153 = vector.broadcast %152 : vector<8x1xf32> to vector<8x32xf32>
    %154 = arith.subf %146, %153 : vector<8x32xf32>
    %155 = arith.mulf %154, %154 : vector<8x32xf32>
    %cst_71 = arith.constant dense<0.000000e+00> : vector<8xf32>
    %156 = vector.multi_reduction <add>, %155, %cst_71 [1] : vector<8x32xf32> to vector<8xf32>
    %157 = vector.shape_cast %156 : vector<8xf32> to vector<8x1xf32>
    %cst_72 = arith.constant 3.200000e+01 : f32
    %158 = vector.broadcast %cst_72 : f32 to vector<8x1xf32>
    %159 = arith.divf %157, %158 : vector<8x1xf32>
    %cst_73 = arith.constant 9.99999974E-6 : f32
    %160 = vector.broadcast %cst_73 : f32 to vector<8x1xf32>
    %161 = arith.addf %159, %160 : vector<8x1xf32>
    %162 = math.rsqrt %161 : vector<8x1xf32>
    %163 = vector.broadcast %162 : vector<8x1xf32> to vector<8x32xf32>
    %164 = arith.mulf %154, %163 : vector<8x32xf32>
    %165 = vector.broadcast %147 : vector<1x32xf32> to vector<8x32xf32>
    %166 = arith.mulf %164, %165 : vector<8x32xf32>
    %167 = vector.broadcast %148 : vector<1x32xf32> to vector<8x32xf32>
    %168 = arith.addf %166, %167 : vector<8x32xf32>
    %169 = vector.extract_strided_slice %168 {offsets = [7, 0], sizes = [1, 32], strides = [1, 1]} : vector<8x32xf32> to vector<1x32xf32>
    %c0_74 = arith.constant 0 : index
    %c0_75 = arith.constant 0 : index
    %170 = vector.load %arg15[%c0_74, %c0_75] : memref<32x128xbf16, #tpu.memory_space<vmem>>, vector<32x128xbf16>
    %171 = arith.truncf %169 : vector<1x32xf32> to vector<1x32xbf16>
    %cst_76 = arith.constant dense<0.000000e+00> : vector<1x128xf32>
    %172 = tpu.matmul %171, %170, %cst_76 {dimension_numbers = #tpu.dot_dimension_numbers<[1], [0], [0], [1], [0, 0, 1, 1], [], []>} : vector<1x32xbf16>, vector<32x128xbf16>, vector<1x128xf32> -> vector<1x128xf32>
    %c0_77 = arith.constant 0 : index
    %c0_78 = arith.constant 0 : index
    %173 = vector.load %arg16[%c0_77, %c0_78] : memref<1x128xf32, #tpu.memory_space<vmem>>, vector<1x128xf32>
    %174 = arith.addf %172, %173 : vector<1x128xf32>
    %c0_79 = arith.constant 0 : index
    %c0_80 = arith.constant 0 : index
    %c0_81 = arith.constant 0 : index
    %175 = vector.load %arg17[%c0_79, %c0_80, %c0_81] : memref<1x1x128xf32, #tpu.memory_space<vmem>>, vector<1x1x128xf32>
    %176 = vector.shape_cast %175 : vector<1x1x128xf32> to vector<1x128xf32>
    %177 = vector.shape_cast %174 : vector<1x128xf32> to vector<1x1x128xf32>
    tpu.vector_store %arg17[%c0_79, %c0_80, %c0_81], %177 {strides = array<i32>} : memref<1x1x128xf32, #tpu.memory_space<vmem>>, vector<1x1x128xf32>,
    return
  }
  func.func @transform_0(%arg0: i32) -> (i32, i32, i32) {
    %c0_i32 = arith.constant 0 : i32
    %c0_i32_0 = arith.constant 0 : i32
    %c0_i32_1 = arith.constant 0 : i32
    return %arg0, %c0_i32, %c0_i32_0 : i32, i32, i32
  }
  func.func @transform_1(%arg0: i32) -> (i32, i32) {
    %c0_i32 = arith.constant 0 : i32
    %c0_i32_0 = arith.constant 0 : i32
    %c0_i32_1 = arith.constant 0 : i32
    return %c0_i32, %c0_i32_0 : i32, i32
  }
  func.func @transform_2(%arg0: i32) -> (i32, i32) {
    %c0_i32 = arith.constant 0 : i32
    %c0_i32_0 = arith.constant 0 : i32
    %c0_i32_1 = arith.constant 0 : i32
    return %c0_i32, %c0_i32_0 : i32, i32
  }
  func.func @transform_3(%arg0: i32) -> (i32, i32) {
    %c0_i32 = arith.constant 0 : i32
    %c0_i32_0 = arith.constant 0 : i32
    %c0_i32_1 = arith.constant 0 : i32
    return %c0_i32, %c0_i32_0 : i32, i32
  }
  func.func @transform_4(%arg0: i32) -> (i32, i32) {
    %c0_i32 = arith.constant 0 : i32
    %c0_i32_0 = arith.constant 0 : i32
    %c0_i32_1 = arith.constant 0 : i32
    return %c0_i32, %c0_i32_0 : i32, i32
  }
  func.func @transform_5(%arg0: i32) -> (i32, i32) {
    %c0_i32 = arith.constant 0 : i32
    %c0_i32_0 = arith.constant 0 : i32
    %c0_i32_1 = arith.constant 0 : i32
    return %c0_i32, %c0_i32_0 : i32, i32
  }
  func.func @transform_6(%arg0: i32) -> (i32, i32) {
    %c0_i32 = arith.constant 0 : i32
    %c0_i32_0 = arith.constant 0 : i32
    %c0_i32_1 = arith.constant 0 : i32
    return %c0_i32, %c0_i32_0 : i32, i32
  }
  func.func @transform_7(%arg0: i32) -> (i32, i32) {
    %c0_i32 = arith.constant 0 : i32
    %c0_i32_0 = arith.constant 0 : i32
    %c0_i32_1 = arith.constant 0 : i32
    return %c0_i32, %c0_i32_0 : i32, i32
  }
  func.func @transform_8(%arg0: i32) -> (i32, i32) {
    %c0_i32 = arith.constant 0 : i32
    %c0_i32_0 = arith.constant 0 : i32
    %c0_i32_1 = arith.constant 0 : i32
    return %c0_i32, %c0_i32_0 : i32, i32
  }
  func.func @transform_9(%arg0: i32) -> (i32, i32) {
    %c0_i32 = arith.constant 0 : i32
    %c0_i32_0 = arith.constant 0 : i32
    %c0_i32_1 = arith.constant 0 : i32
    return %c0_i32, %c0_i32_0 : i32, i32
  }
  func.func @transform_10(%arg0: i32) -> (i32, i32) {
    %c0_i32 = arith.constant 0 : i32
    %c0_i32_0 = arith.constant 0 : i32
    %c0_i32_1 = arith.constant 0 : i32
    return %c0_i32, %c0_i32_0 : i32, i32
  }
  func.func @transform_11(%arg0: i32) -> (i32, i32) {
    %c0_i32 = arith.constant 0 : i32
    %c0_i32_0 = arith.constant 0 : i32
    %c0_i32_1 = arith.constant 0 : i32
    return %c0_i32, %c0_i32_0 : i32, i32
  }
  func.func @transform_12(%arg0: i32) -> (i32, i32) {
    %c0_i32 = arith.constant 0 : i32
    %c0_i32_0 = arith.constant 0 : i32
    %c0_i32_1 = arith.constant 0 : i32
    return %c0_i32, %c0_i32_0 : i32, i32
  }
  func.func @transform_13(%arg0: i32) -> (i32, i32) {
    %c0_i32 = arith.constant 0 : i32
    %c0_i32_0 = arith.constant 0 : i32
    %c0_i32_1 = arith.constant 0 : i32
    return %c0_i32, %c0_i32_0 : i32, i32
  }
  func.func @transform_14(%arg0: i32) -> (i32, i32) {
    %c0_i32 = arith.constant 0 : i32
    %c0_i32_0 = arith.constant 0 : i32
    %c0_i32_1 = arith.constant 0 : i32
    return %c0_i32, %c0_i32_0 : i32, i32
  }
  func.func @transform_15(%arg0: i32) -> (i32, i32) {
    %c0_i32 = arith.constant 0 : i32
    %c0_i32_0 = arith.constant 0 : i32
    %c0_i32_1 = arith.constant 0 : i32
    return %c0_i32, %c0_i32_0 : i32, i32
  }
  func.func @transform_16(%arg0: i32) -> (i32, i32, i32) {
    %c0_i32 = arith.constant 0 : i32
    %c0_i32_0 = arith.constant 0 : i32
    %c0_i32_1 = arith.constant 0 : i32
    return %arg0, %c0_i32, %c0_i32_0 : i32, i32, i32
  }
}

</mosaic_0001>

<llo_original>
// kernel: _lambda_.4
$region0: #{_lambda_.4}
  #allocation0 [shape = 'u32[]', space=smem, size = 0x4, offset = 0x4, fixed_abs, tag = 'smem constant byte address 0x4 - core index']
  #allocation1 [shape = 'u32[72,128]{1,0:T(1,128)}', space=vmem, size = 0x9000, scoped, tag = 'internal scratch']
  #allocation2 [shape = 'f32[8,32]{1,0:T(8,128)}', space=vmem, size = 0x1000, scoped, tag = 'scratch operand']
  #allocation3 [shape = 'f32[8,128]{1,0:T(8,128)}', space=vmem, size = 0x1000, scoped, tag = 'scratch operand']
  #allocation4 [shape = 'f32[8,32]{1,0:T(8,128)}', space=vmem, size = 0x1000, scoped, tag = 'scratch operand']
  %s0 = inlined_call_operand.vmem [shape: f32[2,8,32], index: 0, kind: input, shape index: {}]
  %s1 = inlined_call_operand.hbm [shape: f32[1,32], index: 1, kind: input, shape index: {}]
  %s2 = inlined_call_operand.hbm [shape: f32[4,32], index: 2, kind: input, shape index: {}]
  %s3 = inlined_call_operand.hbm [shape: f32[1,32], index: 3, kind: input, shape index: {}]
  %s4 = inlined_call_operand.vmem [shape: bf16[32,64], index: 4, kind: input, shape index: {}]
  %s5 = inlined_call_operand.vmem [shape: bf16[32,64], index: 5, kind: input, shape index: {}]
  %s6 = inlined_call_operand.vmem [shape: bf16[32,128], index: 6, kind: input, shape index: {}]
  %s7 = inlined_call_operand.hbm [shape: f32[1,128], index: 7, kind: input, shape index: {}]
  %s8 = inlined_call_operand.hbm [shape: f32[1,32], index: 8, kind: input, shape index: {}]
  %s9 = inlined_call_operand.hbm [shape: f32[1,32], index: 9, kind: input, shape index: {}]
  %s10 = inlined_call_operand.hbm [shape: bf16[32,128], index: 10, kind: input, shape index: {}]
  %s11 = inlined_call_operand.vmem [shape: bf16[64,32], index: 11, kind: input, shape index: {}]
  %s12 = inlined_call_operand.vmem [shape: f32[2,8,32], index: 12, kind: output, shape index: {}]
  %s13 = sld [smem:[#allocation0]]
  $region116: #{_lambda_.4} parent=0
    _
  %s15 = ssub.s32 1, %s13
  %s16 = scalar_select 0, %s15, %s13
  $region1: #{_lambda_.4} parent=0
    #allocation5 [shape = 'u8[512]{0}', space=vmem, size = 0x400, scoped, tag = 'input window, operand 1, single buffered']
    #allocation6 [shape = 's32[2]{0}', space=sflag, size = 0x8, scoped, tag = 'scoped memory for _lambda_.4']
    #allocation7 [shape = 'u8[2048]{0}', space=vmem, size = 0x800, scoped, tag = 'input window, operand 2, single buffered']
    #allocation8 [shape = 's32[1]{0}', space=sflag, size = 0x4, scoped, tag = 'scoped memory for _lambda_.4']
    #allocation9 [shape = 'u8[512]{0}', space=vmem, size = 0x400, scoped, tag = 'input window, operand 3, single buffered']
    #allocation10 [shape = 'u8[512]{0}', space=vmem, size = 0x400, scoped, tag = 'input window, operand 7, single buffered']
    #allocation11 [shape = 's32[1]{0}', space=sflag, size = 0x4, scoped, tag = 'scoped memory for _lambda_.4']
    #allocation12 [shape = 'u8[512]{0}', space=vmem, size = 0x400, scoped, tag = 'input window, operand 8, single buffered']
    #allocation13 [shape = 'u8[512]{0}', space=vmem, size = 0x400, scoped, tag = 'input window, operand 9, single buffered']
    #allocation14 [shape = 's32[1]{0}', space=sflag, size = 0x4, scoped, tag = 'scoped memory for _lambda_.4']
    #allocation15 [shape = 'u8[8192]{0}', space=vmem, size = 0x2000, scoped, tag = 'input window, operand 10, single buffered']
    %17 = vsyncpa [#allocation6], 0
    %18 = vsyncpa [#allocation8], 0
    %19 = vsyncpa [#allocation11], 0
    %20 = vsyncpa [#allocation14], 0
    loop: start=0, step=1, limit=4
    $region2: #{_lambda_.4} parent=1 // loop_pre_header
      _
    $region3: #{_lambda_.4} parent=1 // loop_header
      %s22 = sphi 0, %s26
      %p23 = scmp.ge.s32.totalorder %s22, 4
      %s32 = sphi 0, %s34
      %s35 = sphi 0, %s32
      %s36 = sphi 0, %s35
      %s52 = sphi 0, %s36
      %s56 = sphi 0, %s56
      %s58 = sphi 0, %s56
      %s59 = sphi 0, %s58
      %s73 = sphi 0, %s59
      %s77 = sphi 0, %s77
      %s79 = sphi 0, %s77
      %s80 = sphi 0, %s79
      %s94 = sphi 0, %s80
      %s98 = sphi 0, %s98
      %s100 = sphi 0, %s98
      %s101 = sphi 0, %s100
      %s115 = sphi 0, %s101
      %s119 = sphi 0, %s119
      %s121 = sphi 0, %s119
      %s122 = sphi 0, %s121
      %s136 = sphi 0, %s122
      %s140 = sphi 0, %s140
      %s142 = sphi 0, %s140
      %s143 = sphi 0, %s142
      %s157 = sphi 0, %s143
      %s161 = sphi 0, %s161
      %s163 = sphi 0, %s161
      %s164 = sphi 0, %s163
      %s178 = sphi 0, %s164
      %s182 = sphi 0, %s182
      %s184 = sphi 0, %s182
      %s185 = sphi 0, %s184
      %s199 = sphi 0, %s185
      %s203 = sphi 0, %s203
      %s205 = sphi 0, %s203
      %s206 = sphi 0, %s205
      %s220 = sphi 0, %s206
      %s224 = sphi 0, %s224
      %s226 = sphi 0, %s224
      %s227 = sphi 0, %s226
      %s241 = sphi 0, %s227
      %s245 = sphi 0, %s245
      %s247 = sphi 0, %s245
      %s248 = sphi 0, %s247
      %s262 = sphi 0, %s248
      %s266 = sphi 0, %s266
      %s268 = sphi 0, %s266
      %s269 = sphi 0, %s268
      %s283 = sphi 0, %s269
      %s289 = sphi 0, %s291
      %s292 = sphi 0, %s289
      %s293 = sphi 0, %s292
      %s309 = sphi 0, %s293
    $region4: #{_lambda_.4} parent=1 // loop_header_branch
      %25 = sbr.rel (%p23) target = $region8
    $region5: #{_lambda_.4} parent=1 // loop_body
      %s27 = ssub.s32 %s22, 1
      %s28 = ssub.s32 %s22, 2
      %s29 = sadd.s32 %s22, 1
      %s30 = ssub.s32 %s22, %s29
      %p31 = scmp.eq.s32.totalorder %s30, 0
      %s33 = sadd.s32 %s32, 1
      %s34 = scalar_select %p31, %s32, %s33
      %p37 = pneg %p31
      %p38 = scmp.eq.s32.totalorder %s22, 1
      %p39 = por %p37, %p38
      %p40 = scmp.ne.s32.totalorder %s32, %s35
      %p41 = scmp.eq.s32.totalorder %s22, 0
      %p42 = por %p40, %p41
      %p43 = scmp.ne.s32.totalorder %s32, %s35
      %p44 = scmp.eq.s32.totalorder %s27, 1
      %p45 = por %p43, %p44
      %p46 = scmp.ne.s32.totalorder %s35, %s36
      %p47 = scmp.eq.s32.totalorder %s27, 0
      %p48 = por %p46, %p47
      %p49 = scmp.ne.s32.totalorder %s35, %s36
      %p50 = scmp.eq.s32.totalorder %s28, 1
      %p51 = por %p49, %p50
      %p53 = scmp.ne.s32.totalorder %s36, %s52
      %p54 = scmp.eq.s32.totalorder %s28, 0
      %p55 = por %p53, %p54
      %s57 = sadd.s32 %s56, 1
      %p60 = scmp.eq.s32.totalorder %s22, 1
      %p61 = scmp.ne.s32.totalorder %s56, %s58
      %p62 = scmp.eq.s32.totalorder %s22, 0
      %p63 = por %p61, %p62
      %p64 = scmp.ne.s32.totalorder %s56, %s58
      %p65 = scmp.eq.s32.totalorder %s27, 1
      %p66 = por %p64, %p65
      %p67 = scmp.ne.s32.totalorder %s58, %s59
      %p68 = scmp.eq.s32.totalorder %s27, 0
      %p69 = por %p67, %p68
      %p70 = scmp.ne.s32.totalorder %s58, %s59
      %p71 = scmp.eq.s32.totalorder %s28, 1
      %p72 = por %p70, %p71
      %p74 = scmp.ne.s32.totalorder %s59, %s73
      %p75 = scmp.eq.s32.totalorder %s28, 0
      %p76 = por %p74, %p75
      %s78 = sadd.s32 %s77, 1
      %p81 = scmp.eq.s32.totalorder %s22, 1
      %p82 = scmp.ne.s32.totalorder %s77, %s79
      %p83 = scmp.eq.s32.totalorder %s22, 0
      %p84 = por %p82, %p83
      %p85 = scmp.ne.s32.totalorder %s77, %s79
      %p86 = scmp.eq.s32.totalorder %s27, 1
      %p87 = por %p85, %p86
      %p88 = scmp.ne.s32.totalorder %s79, %s80
      %p89 = scmp.eq.s32.totalorder %s27, 0
      %p90 = por %p88, %p89
      %p91 = scmp.ne.s32.totalorder %s79, %s80
      %p92 = scmp.eq.s32.totalorder %s28, 1
      %p93 = por %p91, %p92
      %p95 = scmp.ne.s32.totalorder %s80, %s94
      %p96 = scmp.eq.s32.totalorder %s28, 0
      %p97 = por %p95, %p96
      %s99 = sadd.s32 %s98, 1
      %p102 = scmp.eq.s32.totalorder %s22, 1
      %p103 = scmp.ne.s32.totalorder %s98, %s100
      %p104 = scmp.eq.s32.totalorder %s22, 0
      %p105 = por %p103, %p104
      %p106 = scmp.ne.s32.totalorder %s98, %s100
      %p107 = scmp.eq.s32.totalorder %s27, 1
      %p108 = por %p106, %p107
      %p109 = scmp.ne.s32.totalorder %s100, %s101
      %p110 = scmp.eq.s32.totalorder %s27, 0
      %p111 = por %p109, %p110
      %p112 = scmp.ne.s32.totalorder %s100, %s101
      %p113 = scmp.eq.s32.totalorder %s28, 1
      %p114 = por %p112, %p113
      %p116 = scmp.ne.s32.totalorder %s101, %s115
      %p117 = scmp.eq.s32.totalorder %s28, 0
      %p118 = por %p116, %p117
      %s120 = sadd.s32 %s119, 1
      %p123 = scmp.eq.s32.totalorder %s22, 1
      %p124 = scmp.ne.s32.totalorder %s119, %s121
      %p125 = scmp.eq.s32.totalorder %s22, 0
      %p126 = por %p124, %p125
      %p127 = scmp.ne.s32.totalorder %s119, %s121
      %p128 = scmp.eq.s32.totalorder %s27, 1
      %p129 = por %p127, %p128
      %p130 = scmp.ne.s32.totalorder %s121, %s122
      %p131 = scmp.eq.s32.totalorder %s27, 0
      %p132 = por %p130, %p131
      %p133 = scmp.ne.s32.totalorder %s121, %s122
      %p134 = scmp.eq.s32.totalorder %s28, 1
      %p135 = por %p133, %p134
      %p137 = scmp.ne.s32.totalorder %s122, %s136
      %p138 = scmp.eq.s32.totalorder %s28, 0
      %p139 = por %p137, %p138
      %s141 = sadd.s32 %s140, 1
      %p144 = scmp.eq.s32.totalorder %s22, 1
      %p145 = scmp.ne.s32.totalorder %s140, %s142
      %p146 = scmp.eq.s32.totalorder %s22, 0
      %p147 = por %p145, %p146
      %p148 = scmp.ne.s32.totalorder %s140, %s142
      %p149 = scmp.eq.s32.totalorder %s27, 1
      %p150 = por %p148, %p149
      %p151 = scmp.ne.s32.totalorder %s142, %s143
      %p152 = scmp.eq.s32.totalorder %s27, 0
      %p153 = por %p151, %p152
      %p154 = scmp.ne.s32.totalorder %s142, %s143
      %p155 = scmp.eq.s32.totalorder %s28, 1
      %p156 = por %p154, %p155
      %p158 = scmp.ne.s32.totalorder %s143, %s157
      %p159 = scmp.eq.s32.totalorder %s28, 0
      %p160 = por %p158, %p159
      %s162 = sadd.s32 %s161, 1
      %p165 = scmp.eq.s32.totalorder %s22, 1
      %p166 = scmp.ne.s32.totalorder %s161, %s163
      %p167 = scmp.eq.s32.totalorder %s22, 0
      %p168 = por %p166, %p167
      %p169 = scmp.ne.s32.totalorder %s161, %s163
      %p170 = scmp.eq.s32.totalorder %s27, 1
      %p171 = por %p169, %p170
      %p172 = scmp.ne.s32.totalorder %s163, %s164
      %p173 = scmp.eq.s32.totalorder %s27, 0
      %p174 = por %p172, %p173
      %p175 = scmp.ne.s32.totalorder %s163, %s164
      %p176 = scmp.eq.s32.totalorder %s28, 1
      %p177 = por %p175, %p176
      %p179 = scmp.ne.s32.totalorder %s164, %s178
      %p180 = scmp.eq.s32.totalorder %s28, 0
      %p181 = por %p179, %p180
      %s183 = sadd.s32 %s182, 1
      %p186 = scmp.eq.s32.totalorder %s22, 1
      %p187 = scmp.ne.s32.totalorder %s182, %s184
      %p188 = scmp.eq.s32.totalorder %s22, 0
      %p189 = por %p187, %p188
      %p190 = scmp.ne.s32.totalorder %s182, %s184
      %p191 = scmp.eq.s32.totalorder %s27, 1
      %p192 = por %p190, %p191
      %p193 = scmp.ne.s32.totalorder %s184, %s185
      %p194 = scmp.eq.s32.totalorder %s27, 0
      %p195 = por %p193, %p194
      %p196 = scmp.ne.s32.totalorder %s184, %s185
      %p197 = scmp.eq.s32.totalorder %s28, 1
      %p198 = por %p196, %p197
      %p200 = scmp.ne.s32.totalorder %s185, %s199
      %p201 = scmp.eq.s32.totalorder %s28, 0
      %p202 = por %p200, %p201
      %s204 = sadd.s32 %s203, 1
      %p207 = scmp.eq.s32.totalorder %s22, 1
      %p208 = scmp.ne.s32.totalorder %s203, %s205
      %p209 = scmp.eq.s32.totalorder %s22, 0
      %p210 = por %p208, %p209
      %p211 = scmp.ne.s32.totalorder %s203, %s205
      %p212 = scmp.eq.s32.totalorder %s27, 1
      %p213 = por %p211, %p212
      %p214 = scmp.ne.s32.totalorder %s205, %s206
      %p215 = scmp.eq.s32.totalorder %s27, 0
      %p216 = por %p214, %p215
      %p217 = scmp.ne.s32.totalorder %s205, %s206
      %p218 = scmp.eq.s32.totalorder %s28, 1
      %p219 = por %p217, %p218
      %p221 = scmp.ne.s32.totalorder %s206, %s220
      %p222 = scmp.eq.s32.totalorder %s28, 0
      %p223 = por %p221, %p222
      %s225 = sadd.s32 %s224, 1
      %p228 = scmp.eq.s32.totalorder %s22, 1
      %p229 = scmp.ne.s32.totalorder %s224, %s226
      %p230 = scmp.eq.s32.totalorder %s22, 0
      %p231 = por %p229, %p230
      %p232 = scmp.ne.s32.totalorder %s224, %s226
      %p233 = scmp.eq.s32.totalorder %s27, 1
      %p234 = por %p232, %p233
      %p235 = scmp.ne.s32.totalorder %s226, %s227
      %p236 = scmp.eq.s32.totalorder %s27, 0
      %p237 = por %p235, %p236
      %p238 = scmp.ne.s32.totalorder %s226, %s227
      %p239 = scmp.eq.s32.totalorder %s28, 1
      %p240 = por %p238, %p239
      %p242 = scmp.ne.s32.totalorder %s227, %s241
      %p243 = scmp.eq.s32.totalorder %s28, 0
      %p244 = por %p242, %p243
      %s246 = sadd.s32 %s245, 1
      %p249 = scmp.eq.s32.totalorder %s22, 1
      %p250 = scmp.ne.s32.totalorder %s245, %s247
      %p251 = scmp.eq.s32.totalorder %s22, 0
      %p252 = por %p250, %p251
      %p253 = scmp.ne.s32.totalorder %s245, %s247
      %p254 = scmp.eq.s32.totalorder %s27, 1
      %p255 = por %p253, %p254
      %p256 = scmp.ne.s32.totalorder %s247, %s248
      %p257 = scmp.eq.s32.totalorder %s27, 0
      %p258 = por %p256, %p257
      %p259 = scmp.ne.s32.totalorder %s247, %s248
      %p260 = scmp.eq.s32.totalorder %s28, 1
      %p261 = por %p259, %p260
      %p263 = scmp.ne.s32.totalorder %s248, %s262
      %p264 = scmp.eq.s32.totalorder %s28, 0
      %p265 = por %p263, %p264
      %s267 = sadd.s32 %s266, 1
      %p270 = scmp.eq.s32.totalorder %s22, 1
      %p271 = scmp.ne.s32.totalorder %s266, %s268
      %p272 = scmp.eq.s32.totalorder %s22, 0
      %p273 = por %p271, %p272
      %p274 = scmp.ne.s32.totalorder %s266, %s268
      %p275 = scmp.eq.s32.totalorder %s27, 1
      %p276 = por %p274, %p275
      %p277 = scmp.ne.s32.totalorder %s268, %s269
      %p278 = scmp.eq.s32.totalorder %s27, 0
      %p279 = por %p277, %p278
      %p280 = scmp.ne.s32.totalorder %s268, %s269
      %p281 = scmp.eq.s32.totalorder %s28, 1
      %p282 = por %p280, %p281
      %p284 = scmp.ne.s32.totalorder %s269, %s283
      %p285 = scmp.eq.s32.totalorder %s28, 0
      %p286 = por %p284, %p285
      %s287 = ssub.s32 %s22, %s29
      %p288 = scmp.eq.s32.totalorder %s287, 0
      %s290 = sadd.s32 %s289, 1
      %s291 = scalar_select %p288, %s289, %s290
      %p294 = pneg %p288
      %p295 = scmp.eq.s32.totalorder %s22, 1
      %p296 = por %p294, %p295
      %p297 = scmp.ne.s32.totalorder %s289, %s292
      %p298 = scmp.eq.s32.totalorder %s22, 0
      %p299 = por %p297, %p298
      %p300 = scmp.ne.s32.totalorder %s289, %s292
      %p301 = scmp.eq.s32.totalorder %s27, 1
      %p302 = por %p300, %p301
      %p303 = scmp.ne.s32.totalorder %s292, %s293
      %p304 = scmp.eq.s32.totalorder %s27, 0
      %p305 = por %p303, %p304
      %p306 = scmp.ne.s32.totalorder %s292, %s293
      %p307 = scmp.eq.s32.totalorder %s28, 1
      %p308 = por %p306, %p307
      %p310 = scmp.ne.s32.totalorder %s293, %s309
      %p311 = scmp.eq.s32.totalorder %s28, 0
      %p312 = por %p310, %p311
      %p313 = scmp.le.s32.totalorder 1, %s22
      %p314 = scmp.lt.s32.totalorder %s22, 3
      %p315 = pnand %p313, %p314
      %p316 = pneg %p315
      // Predicated region
      $region9: #{_lambda_.4} parent=5 // pred_check
        _
      $region10: #{_lambda_.4} parent=5 // pred_check_branch
        %318 = sbr.rel (%p315) target = $region12
      $region11: #{_lambda_.4} parent=5 // pred_region
        %s319 = ssub.s32 %s22, 1
        // Predicated region
        $region13: #{_lambda_.4} parent=11 // pred_check
          %p320 = pneg %p69
        $region14: #{_lambda_.4} parent=11 // pred_check_branch
          %322 = sbr.rel (%p320) target = $region16
        $region15: #{_lambda_.4} parent=11 // pred_region
          %324 = vsyncadd [#allocation6], 0
          %s326 = sshll.u32 %s1, 4
          %s327 = int_to_ptr.hbm [resolvable:$true] %s326
          %s328 = sshll.u32 [#allocation5], 4
          %s329 = int_to_ptr.vmem [resolvable:$true] %s328
          %331 = dma.hbm_to_vmem [thread:$0]  %s327, 16, %s329, [#allocation6]
        $region16: #{_lambda_.4} parent=11 // pred_fallthru
          _
        // Predicated region
        $region17: #{_lambda_.4} parent=11 // pred_check
          %p332 = pneg %p90
        $region18: #{_lambda_.4} parent=11 // pred_check_branch
          %334 = sbr.rel (%p332) target = $region20
        $region19: #{_lambda_.4} parent=11 // pred_region
          %336 = vsyncadd [#allocation8], 0
          %s338 = sshll.u32 %s2, 4
          %s339 = int_to_ptr.hbm [resolvable:$true] %s338
          %s340 = sshll.u32 [#allocation7], 4
          %s341 = int_to_ptr.vmem [resolvable:$true] %s340
          %343 = dma.hbm_to_vmem [thread:$0]  %s339, 64, %s341, [#allocation8]
        $region20: #{_lambda_.4} parent=11 // pred_fallthru
          _
        // Predicated region
        $region21: #{_lambda_.4} parent=11 // pred_check
          %p344 = pneg %p111
        $region22: #{_lambda_.4} parent=11 // pred_check_branch
          %346 = sbr.rel (%p344) target = $region24
        $region23: #{_lambda_.4} parent=11 // pred_region
          %348 = vsyncadd [#allocation8], 0
          %s350 = sshll.u32 %s3, 4
          %s351 = int_to_ptr.hbm [resolvable:$true] %s350
          %s352 = sshll.u32 [#allocation9], 4
          %s353 = int_to_ptr.vmem [resolvable:$true] %s352
          %355 = dma.hbm_to_vmem [thread:$0]  %s351, 16, %s353, [#allocation8]
        $region24: #{_lambda_.4} parent=11 // pred_fallthru
          _
        // Predicated region
        $region25: #{_lambda_.4} parent=11 // pred_check
          %p356 = pneg %p132
        $region26: #{_lambda_.4} parent=11 // pred_check_branch
          %358 = sbr.rel (%p356) target = $region28
        $region27: #{_lambda_.4} parent=11 // pred_region
          _
        $region28: #{_lambda_.4} parent=11 // pred_fallthru
          _
        // Predicated region
        $region29: #{_lambda_.4} parent=11 // pred_check
          %p359 = pneg %p153
        $region30: #{_lambda_.4} parent=11 // pred_check_branch
          %361 = sbr.rel (%p359) target = $region32
        $region31: #{_lambda_.4} parent=11 // pred_region
          _
        $region32: #{_lambda_.4} parent=11 // pred_fallthru
          _
        // Predicated region
        $region33: #{_lambda_.4} parent=11 // pred_check
          %p362 = pneg %p174
        $region34: #{_lambda_.4} parent=11 // pred_check_branch
          %364 = sbr.rel (%p362) target = $region36
        $region35: #{_lambda_.4} parent=11 // pred_region
          _
        $region36: #{_lambda_.4} parent=11 // pred_fallthru
          _
        // Predicated region
        $region37: #{_lambda_.4} parent=11 // pred_check
          %p365 = pneg %p195
        $region38: #{_lambda_.4} parent=11 // pred_check_branch
          %367 = sbr.rel (%p365) target = $region40
        $region39: #{_lambda_.4} parent=11 // pred_region
          %369 = vsyncadd [#allocation11], 0
          %s371 = sshll.u32 %s7, 4
          %s372 = int_to_ptr.hbm [resolvable:$true] %s371
          %s373 = sshll.u32 [#allocation10], 4
          %s374 = int_to_ptr.vmem [resolvable:$true] %s373
          %376 = dma.hbm_to_vmem [thread:$0]  %s372, 16, %s374, [#allocation11]
        $region40: #{_lambda_.4} parent=11 // pred_fallthru
          _
        // Predicated region
        $region41: #{_lambda_.4} parent=11 // pred_check
          %p377 = pneg %p216
        $region42: #{_lambda_.4} parent=11 // pred_check_branch
          %379 = sbr.rel (%p377) target = $region44
        $region43: #{_lambda_.4} parent=11 // pred_region
          %381 = vsyncadd [#allocation11], 0
          %s383 = sshll.u32 %s8, 4
          %s384 = int_to_ptr.hbm [resolvable:$true] %s383
          %s385 = sshll.u32 [#allocation12], 4
          %s386 = int_to_ptr.vmem [resolvable:$true] %s385
          %388 = dma.hbm_to_vmem [thread:$0]  %s384, 16, %s386, [#allocation11]
        $region44: #{_lambda_.4} parent=11 // pred_fallthru
          _
        // Predicated region
        $region45: #{_lambda_.4} parent=11 // pred_check
          %p389 = pneg %p237
        $region46: #{_lambda_.4} parent=11 // pred_check_branch
          %391 = sbr.rel (%p389) target = $region48
        $region47: #{_lambda_.4} parent=11 // pred_region
          %393 = vsyncadd [#allocation14], 0
          %s395 = sshll.u32 %s9, 4
          %s396 = int_to_ptr.hbm [resolvable:$true] %s395
          %s397 = sshll.u32 [#allocation13], 4
          %s398 = int_to_ptr.vmem [resolvable:$true] %s397
          %400 = dma.hbm_to_vmem [thread:$0]  %s396, 16, %s398, [#allocation14]
        $region48: #{_lambda_.4} parent=11 // pred_fallthru
          _
        // Predicated region
        $region49: #{_lambda_.4} parent=11 // pred_check
          %p401 = pneg %p258
        $region50: #{_lambda_.4} parent=11 // pred_check_branch
          %403 = sbr.rel (%p401) target = $region52
        $region51: #{_lambda_.4} parent=11 // pred_region
          %405 = vsyncadd [#allocation14], 0
          %s406 = sshll.u32 %s10, 4
          %s407 = int_to_ptr.hbm [resolvable:$true] %s406
          %s408 = sshll.u32 [#allocation15], 4
          %s409 = int_to_ptr.vmem [resolvable:$true] %s408
          %414 = dma.hbm_to_vmem [thread:$0]  %s407, 256, %s409, [#allocation14], 64, 64, 4
        $region52: #{_lambda_.4} parent=11 // pred_fallthru
          _
        // Predicated region
        $region53: #{_lambda_.4} parent=11 // pred_check
          %p415 = pneg %p279
        $region54: #{_lambda_.4} parent=11 // pred_check_branch
          %417 = sbr.rel (%p415) target = $region56
        $region55: #{_lambda_.4} parent=11 // pred_region
          _
        $region56: #{_lambda_.4} parent=11 // pred_fallthru
          _
      $region12: #{_lambda_.4} parent=5 // pred_fallthru
        _
      %p418 = scmp.lt.s32.totalorder %s22, 2
      // Predicated region
      $region57: #{_lambda_.4} parent=5 // pred_check
        %p419 = pneg %p418
      $region58: #{_lambda_.4} parent=5 // pred_check_branch
        %421 = sbr.rel (%p419) target = $region60
      $region59: #{_lambda_.4} parent=5 // pred_region
        // Predicated region
        $region61: #{_lambda_.4} parent=59 // pred_check
          %p422 = pneg %p42
        $region62: #{_lambda_.4} parent=59 // pred_check_branch
          %424 = sbr.rel (%p422) target = $region64
        $region63: #{_lambda_.4} parent=59 // pred_region
          %p425 = scmp.lt.s32.totalorder %s22, 1
          %s426 = scalar_select %p425, %s22, 1
          %s427 = smul.addr %s426, 8
          %s428 = scalar_lea.vmem %s0, %s427
        $region64: #{_lambda_.4} parent=59 // pred_fallthru
          _
      $region60: #{_lambda_.4} parent=5 // pred_fallthru
        _
      %p429 = scmp.le.s32.totalorder 1, %s22
      %p430 = scmp.lt.s32.totalorder %s22, 3
      %p431 = pnand %p429, %p430
      %p432 = pneg %p431
      // Predicated region
      $region65: #{_lambda_.4} parent=5 // pred_check
        _
      $region66: #{_lambda_.4} parent=5 // pred_check_branch
        %434 = sbr.rel (%p431) target = $region68
      $region67: #{_lambda_.4} parent=5 // pred_region
        %s435 = ssub.s32 %s22, 1
        // Predicated region
        $region69: #{_lambda_.4} parent=67 // pred_check
          %p436 = pneg %p69
        $region70: #{_lambda_.4} parent=67 // pred_check_branch
          %438 = sbr.rel (%p436) target = $region72
        $region71: #{_lambda_.4} parent=67 // pred_region
          %440 = dma.done [#allocation6], 16
        $region72: #{_lambda_.4} parent=67 // pred_fallthru
          _
        // Predicated region
        $region73: #{_lambda_.4} parent=67 // pred_check
          %p441 = pneg %p90
        $region74: #{_lambda_.4} parent=67 // pred_check_branch
          %443 = sbr.rel (%p441) target = $region76
        $region75: #{_lambda_.4} parent=67 // pred_region
          %445 = dma.done [#allocation8], 64
        $region76: #{_lambda_.4} parent=67 // pred_fallthru
          _
        // Predicated region
        $region77: #{_lambda_.4} parent=67 // pred_check
          %p446 = pneg %p111
        $region78: #{_lambda_.4} parent=67 // pred_check_branch
          %448 = sbr.rel (%p446) target = $region80
        $region79: #{_lambda_.4} parent=67 // pred_region
          %450 = dma.done [#allocation8], 16
        $region80: #{_lambda_.4} parent=67 // pred_fallthru
          _
        // Predicated region
        $region81: #{_lambda_.4} parent=67 // pred_check
          %p451 = pneg %p195
        $region82: #{_lambda_.4} parent=67 // pred_check_branch
          %453 = sbr.rel (%p451) target = $region84
        $region83: #{_lambda_.4} parent=67 // pred_region
          %455 = dma.done [#allocation11], 16
        $region84: #{_lambda_.4} parent=67 // pred_fallthru
          _
        // Predicated region
        $region85: #{_lambda_.4} parent=67 // pred_check
          %p456 = pneg %p216
        $region86: #{_lambda_.4} parent=67 // pred_check_branch
          %458 = sbr.rel (%p456) target = $region88
        $region87: #{_lambda_.4} parent=67 // pred_region
          %460 = dma.done [#allocation11], 16
        $region88: #{_lambda_.4} parent=67 // pred_fallthru
          _
        // Predicated region
        $region89: #{_lambda_.4} parent=67 // pred_check
          %p461 = pneg %p237
        $region90: #{_lambda_.4} parent=67 // pred_check_branch
          %463 = sbr.rel (%p461) target = $region92
        $region91: #{_lambda_.4} parent=67 // pred_region
          %465 = dma.done [#allocation14], 16
        $region92: #{_lambda_.4} parent=67 // pred_fallthru
          _
        // Predicated region
        $region93: #{_lambda_.4} parent=67 // pred_check
          %p466 = pneg %p258
        $region94: #{_lambda_.4} parent=67 // pred_check_branch
          %468 = sbr.rel (%p466) target = $region96
        $region95: #{_lambda_.4} parent=67 // pred_region
          %470 = dma.done [#allocation14], 256
        $region96: #{_lambda_.4} parent=67 // pred_fallthru
          _
        %p471 = scmp.lt.s32.totalorder %s27, 1
        %s472 = scalar_select %p471, %s27, 1
        %s473 = smul.addr %s472, 8
        %s474 = scalar_lea.vmem %s0, %s473
        %p475 = pneg %p48
        %p476 = pneg %p45
        %p477 = pneg %p69
        %p478 = pneg %p66
        %p479 = pneg %p90
        %p480 = pneg %p87
        %p481 = pneg %p111
        %p482 = pneg %p108
        %p483 = pneg %p132
        %p484 = pneg %p129
        %p485 = pneg %p153
        %p486 = pneg %p150
        %p487 = pneg %p174
        %p488 = pneg %p171
        %p489 = pneg %p195
        %p490 = pneg %p192
        %p491 = pneg %p216
        %p492 = pneg %p213
        %p493 = pneg %p237
        %p494 = pneg %p234
        %p495 = pneg %p258
        %p496 = pneg %p255
        %p497 = pneg %p279
        %p498 = pneg %p276
        %p499 = pneg %p305
        %p500 = pneg %p302
        %p501 = scmp.lt.s32.totalorder %s27, 1
        %s502 = scalar_select %p501, %s27, 1
        %s503 = smul.addr %s502, 8
        %s504 = scalar_lea.vmem %s12, %s503
        %p505 = scmp.lt.s32.totalorder %s27, 1
        %s506 = scalar_select %p505, %s27, 1
        %s507 = smul.addr %s506, 8
        %s508 = scalar_lea.vmem %s0, %s507
        %p509 = scmp.lt.s32.totalorder %s27, 1
        %s510 = scalar_select %p509, %s27, 1
        %s511 = smul.addr %s510, 8
        %s512 = scalar_lea.vmem %s12, %s511
        %v514 = vld [vmem:[%s508] sm:$0xff]
        %v515 = vld [vmem:[#allocation5] sm:$0x1]
        %vm516 = vcmask 261120
        %v517 = vsel %vm516, %v514, 0.0
        %518 = vadd.xlane.f32.xlu0 %v517
        %v519 = vpop.xlane.xlu0 %518
        %v520 = vrcp.pop 32.0
        %v521 = vmul.f32 32.0, %v520
        %v522 = vsub.f32 1.0, %v521
        %v523 = vmul.f32 %v520, %v522
        %v524 = vadd.f32 %v520, %v523
        %vm525 = vweird.f32 %v520
        %v526 = vsel %vm525, %v520, %v524
        %v527 = vmul.f32 %v519, %v526
        %v528 = vsub.f32 %v514, %v527
        %v529 = vmul.f32 %v528, %v528
        %v530 = vsel %vm516, %v529, 0.0
        %531 = vadd.xlane.f32.xlu0 %v530
        %v532 = vpop.xlane.xlu0 %531
        %v533 = vmul.f32 %v532, %v526
        %v534 = vadd.f32 %v533, 1e-05
        %v535 = vrsqrt.pop %v534
        %v536 = vmul.f32 %v535, %v534
        %v537 = vmul.f32 %v536, %v535
        %v538 = vmul.f32 0.5, %v537
        %v539 = vsub.f32 1.5, %v538
        %v540 = vmul.f32 %v535, %v539
        %vm541 = vweird.f32 %v534
        %vm542 = vweird.f32 %v535
        %vm543 = vmor %vm541, %vm542
        %v544 = vsel %vm543, %v535, %v540
        %v545 = vmul.f32 %v528, %v544
        %v547 = vperm.slane %v515, 0
        %v549 = vmul.f32 %v545, %v547
        %v550 = vld [vmem:[#allocation9] sm:$0x1]
        %v551 = vld [vmem:[#allocation7 + $0x3] sm:$0x1]
        %v552 = vperm.slane %v551, 0
        %v553 = vmul.f32 %v549, %v552
        %554 = vst.msk [vmem:[#allocation2] sm:$0xff] %vm516, %v553
        %v555 = vld [vmem:[#allocation2 + $0x3] sm:$0x1f]
        %v556 = vld [vmem:[#allocation7] sm:$0x1]
        %v557 = vperm.slane %v556, 0
        %v558 = vmul.f32 %v549, %v557
        %v559 = vadd.f32 %v555, %v558
        %vm560 = vcmask 258048
        %561 = vst.msk [vmem:[#allocation2 + $0x3] sm:$0x1f] %vm560, %v559
        %v562 = vld [vmem:[#allocation2 + $0x2] sm:$0x3f]
        %v563 = vld [vmem:[#allocation7 + $0x1] sm:$0x1]
        %v564 = vperm.slane %v563, 0
        %v565 = vmul.f32 %v549, %v564
        %v566 = vadd.f32 %v562, %v565
        %vm567 = vcmask 259072
        %568 = vst.msk [vmem:[#allocation2 + $0x2] sm:$0x3f] %vm567, %v566
        %v569 = vld [vmem:[#allocation2 + $0x1] sm:$0x7f]
        %v570 = vld [vmem:[#allocation7 + $0x2] sm:$0x1]
        %v571 = vperm.slane %v570, 0
        %v572 = vmul.f32 %v549, %v571
        %v573 = vadd.f32 %v569, %v572
        %vm574 = vcmask 260096
        %575 = vst.msk [vmem:[#allocation2 + $0x1] sm:$0x7f] %vm574, %v573
        %v576 = vld [vmem:[#allocation2] sm:$0xff]
        %v578 = vperm.slane %v550, 0
        %v580 = vadd.f32 %v576, %v578
        %v581 = vsub.f32 0.0, %v580
        %v582 = vmul.f32 %v581, 1.442695
        %v583 = vpow.pop %v582
        %v584 = vadd.f32 %v583, 1.0
        %v585 = vrcp.pop %v584
        %v586 = vmul.f32 %v584, %v585
        %v587 = vsub.f32 1.0, %v586
        %v588 = vmul.f32 %v585, %v587
        %v589 = vadd.f32 %v585, %v588
        %vm590 = vweird.f32 %v584
        %vm591 = vweird.f32 %v585
        %vm592 = vmor %vm590, %vm591
        %v593 = vsel %vm592, %v585, %v589
        %v594 = vand.u32 2147483647, %v584
        %vm595 = vcmp.eq.f32.partialorder %v594, 8.507059e+37
        %v596 = vand.u32 %v584, 2147483648
        %v597 = vor.u32 1.1754944e-38, %v596
        %v598 = vsel %vm595, %v597, %v593
        %v599 = vmul.f32 1.0, %v598
        %v600 = vmul.f32 %v580, %v599
        %v601 = vld [vmem:[#allocation10] sm:$0x1]
        %v602 = vld [vmem:[%s4] sm:$0xf]
        %v603 = vld [vmem:[%s4 + $0x4] sm:$0xf]
        %v604 = vld [vmem:[%s4 + $0x8] sm:$0xf]
        %v605 = vld [vmem:[%s4 + $0xc] sm:$0xf]
        %v606 = vpack.c.bf16 %v600, %v600
        %v608 = vperm.slane %v601, 0
        %v614 = vunpack.c.l.b16 %v602
        %v615 = vunpack.c.l.b16 %v603
        %v616 = vunpack.c.l.b16 %v604
        %v617 = vunpack.c.l.b16 %v605
        %v618 = vpack.c.b16 %v615, %v614
        %v619 = vpack.c.b16 %v617, %v616
        %v623 = vsel %vm516, %v606, 0
        %625 = vmatpush.bf16.msra.mxu0 0
        %626 = vmatpush.bf16.msra.mxu0 0
        %627 = vmatpush.bf16.msra.mxu0 0
        %628 = vmatpush.bf16.msra.mxu0 0
        %629 = vmatpush.bf16.msra.mxu0 0
        %630 = vmatpush.bf16.msra.mxu0 0
        %631 = vmatpush.bf16.msra.mxu0 %v619
        %632 = vmatpush.bf16.msra.mxu0 %v618
        %633 = vmatmul.bf16.gmra.mxu0 %v623
        %v634 = vpop.f32.mrf.mxu0
        %v635 = vadd.f32 %v608, %v634
        %v636 = vpop.f32.mrf.mxu0
        %637 = vdwg.mxu0
        %vm638 = vcmask 523264
        %639 = vst.msk [vmem:[#allocation3] sm:$0xff] %vm638, %v635
        %v640 = vld [vmem:[%s5] sm:$0xf]
        %v641 = vld [vmem:[%s5 + $0x4] sm:$0xf]
        %v642 = vld [vmem:[%s5 + $0x8] sm:$0xf]
        %v643 = vld [vmem:[%s5 + $0xc] sm:$0xf]
        %v644 = vpack.c.bf16 %v549, %v549
        %v649 = vunpack.c.l.b16 %v640
        %v650 = vunpack.c.l.b16 %v641
        %v651 = vunpack.c.l.b16 %v642
        %v652 = vunpack.c.l.b16 %v643
        %v653 = vpack.c.b16 %v650, %v649
        %v654 = vpack.c.b16 %v652, %v651
        %657 = vrot.lane.b32.xlu0 %v608, 64
        %v658 = vpop.permute.xlu0 %657
        %v661 = vsel %vm516, %v644, 0
        %663 = vmatpush.bf16.msra.mxu0 0
        %664 = vmatpush.bf16.msra.mxu0 0
        %665 = vmatpush.bf16.msra.mxu0 0
        %666 = vmatpush.bf16.msra.mxu0 0
        %667 = vmatpush.bf16.msra.mxu0 0
        %668 = vmatpush.bf16.msra.mxu0 0
        %669 = vmatpush.bf16.msra.mxu0 %v654
        %670 = vmatpush.bf16.msra.mxu0 %v653
        %671 = vmatmul.bf16.gmra.mxu0 %v661
        %v672 = vpop.f32.mrf.mxu0
        %v673 = vadd.f32 %v658, %v672
        %v674 = vpop.f32.mrf.mxu0
        %675 = vdwg.mxu0
        %677 = vrot.lane.b32.xlu0 %v673, 64
        %v678 = vpop.permute.xlu0 %677
        %vm680 = vcmask 1048064
        %681 = vst.msk [vmem:[#allocation3] sm:$0xff] %vm680, %v678
        %v682 = vld [vmem:[%s6] sm:$0xf]
        %v683 = vld [vmem:[%s6 + $0x4] sm:$0xf]
        %v684 = vld [vmem:[%s6 + $0x8] sm:$0xf]
        %v685 = vld [vmem:[%s6 + $0xc] sm:$0xf]
        loop: start=0, step=1, limit=8
        $region97: #{_lambda_.4} parent=67 // loop_pre_header
          _
        $region98: #{_lambda_.4} parent=67 // loop_header
          %s687 = sphi 0, %s691
          %p688 = scmp.ge.s32.totalorder %s687, 8
          %v692 = vphi 0.0, %v808
          %v693 = vphi 0.0, %v818
          %v694 = vphi 0.0, %v822
          %v695 = vphi -inf, %v745
        $region99: #{_lambda_.4} parent=67 // loop_header_branch
          %690 = sbr.rel (%p688) target = $region103
        $region100: #{_lambda_.4} parent=67 // loop_body
          %s696 = scalar_lea.vmem [#allocation3], %s687
          %v697 = vld [vmem:[%s696] sm:$0x1]
          %v698 = vpack.c.bf16 %v692, %v692
          %700 = vrot.lane.b32.xlu0 %v698, 32
          %v701 = vpop.permute.xlu0 %700
          %v706 = vunpack.c.l.b16 %v682
          %v707 = vunpack.c.l.b16 %v683
          %v708 = vunpack.c.l.b16 %v684
          %v709 = vunpack.c.l.b16 %v685
          %v710 = vpack.c.b16 %v707, %v706
          %v711 = vpack.c.b16 %v709, %v708
          %v715 = vsel %vm516, %v701, 0
          %717 = vmatpush.bf16.msra.mxu0 0
          %718 = vmatpush.bf16.msra.mxu0 0
          %719 = vmatpush.bf16.msra.mxu0 0
          %720 = vmatpush.bf16.msra.mxu0 0
          %721 = vmatpush.bf16.msra.mxu0 0
          %722 = vmatpush.bf16.msra.mxu0 0
          %723 = vmatpush.bf16.msra.mxu0 %v711
          %724 = vmatpush.bf16.msra.mxu0 %v710
          %725 = vmatmul.bf16.gmra.mxu0 %v715
          %v726 = vpop.f32.mrf.mxu0
          %v727 = vadd.f32 0.0, %v726
          %v728 = vpop.f32.mrf.mxu0
          %729 = vdwg.mxu0
          %v730 = vadd.f32 %v697, %v727
          %v731 = vmin.f32 %v730, 0.0
          %v732 = vand.u32 2147483647, %v730
          %v733 = vsub.f32 0.0, %v732
          %v734 = vmul.f32 %v733, 1.442695
          %v735 = vpow.pop %v734
          %v736 = vadd.f32 %v735, 1.0
          %v737 = vlog2.pop %v736
          %v738 = vmul.f32 %v737, 0.6931472
          %v739 = vsub.f32 %v731, %v738
          %741 = vrot.lane.b32.xlu0 %v739, 96
          %v742 = vpop.permute.xlu0 %741
          %v744 = vadd.f32 %v695, %v742
          %v745 = vmax.f32 %v730, %v744
          %v746 = vsub.f32 %v730, %v745
          %v747 = vmul.f32 %v746, 1.442695
          %v748 = vpow.pop %v747
          %v749 = vsub.f32 %v744, %v745
          %v750 = vmul.f32 %v749, 1.442695
          %v751 = vpow.pop %v750
          %v752 = vsub.f32 0.0, %v730
          %v753 = vmul.f32 %v752, 1.442695
          %v754 = vpow.pop %v753
          %v755 = vadd.f32 %v754, 1.0
          %v756 = vrcp.pop %v755
          %v757 = vmul.f32 %v755, %v756
          %v758 = vsub.f32 1.0, %v757
          %v759 = vmul.f32 %v756, %v758
          %v760 = vadd.f32 %v756, %v759
          %vm761 = vweird.f32 %v755
          %vm762 = vweird.f32 %v756
          %vm763 = vmor %vm761, %vm762
          %v764 = vsel %vm763, %v756, %v760
          %v765 = vand.u32 2147483647, %v755
          %vm766 = vcmp.eq.f32.partialorder %v765, 8.507059e+37
          %v767 = vand.u32 %v755, 2147483648
          %v768 = vor.u32 1.1754944e-38, %v767
          %v769 = vsel %vm766, %v768, %v764
          %v770 = vmul.f32 1.0, %v769
          %772 = vrot.lane.b32.xlu0 %v693, 96
          %v773 = vpop.permute.xlu0 %772
          %v775 = vmul.f32 %v751, %v773
          %v776 = vtanh.pop %v730
          %778 = vrot.lane.b32.xlu0 %v776, 64
          %v779 = vpop.permute.xlu0 %778
          %v781 = vmul.f32 %v748, %v779
          %v782 = vadd.f32 %v775, %v781
          %784 = vrot.lane.b32.xlu0 %v694, 96
          %v785 = vpop.permute.xlu0 %784
          %v787 = vmul.f32 %v751, %v785
          %v788 = vadd.f32 %v787, %v748
          %v789 = vrcp.pop %v788
          %v790 = vmul.f32 %v788, %v789
          %v791 = vsub.f32 1.0, %v790
          %v792 = vmul.f32 %v789, %v791
          %v793 = vadd.f32 %v789, %v792
          %vm794 = vweird.f32 %v788
          %vm795 = vweird.f32 %v789
          %vm796 = vmor %vm794, %vm795
          %v797 = vsel %vm796, %v789, %v793
          %v798 = vand.u32 2147483647, %v788
          %vm799 = vcmp.eq.f32.partialorder %v798, 8.507059e+37
          %v800 = vand.u32 %v788, 2147483648
          %v801 = vor.u32 1.1754944e-38, %v800
          %v802 = vsel %vm799, %v801, %v797
          %v803 = vmul.f32 %v782, %v802
          %805 = vrot.lane.b32.xlu0 %v803, 96
          %v806 = vpop.permute.xlu0 %805
          %v808 = vmul.f32 %v770, %v806
          %810 = vrot.lane.b32.xlu0 %v808, 32
          %v811 = vpop.permute.xlu0 %810
          %s813 = scalar_lea.vmem [#allocation4], %s687
          %vm814 = vcmask 253952
          %815 = vst.msk [vmem:[%s813] sm:$0x1] %vm814, %v811
          %817 = vrot.lane.b32.xlu0 %v782, 32
          %v818 = vpop.permute.xlu0 %817
          %821 = vrot.lane.b32.xlu0 %v788, 32
          %v822 = vpop.permute.xlu0 %821
        $region101: #{_lambda_.4} parent=67 // loop_footer
          %s691 = sadd.s32 1, %s687
        $region102: #{_lambda_.4} parent=67 // loop_footer_branch
          %686 = sbr.rel target = $region98
        $region103: #{_lambda_.4} parent=67 // loop_exit
          _
        %v824 = vld [vmem:[#allocation4] sm:$0xff]
        %vm825 = vcmask 64512
        %v826 = vsel %vm825, %v824, 0.0
        %827 = vadd.xlane.f32.xlu0 %v826
        %v828 = vpop.xlane.xlu0 %827
        %v829 = vrcp.pop 8.0
        %v830 = vmul.f32 8.0, %v829
        %v831 = vsub.f32 1.0, %v830
        %v832 = vmul.f32 %v829, %v831
        %v833 = vadd.f32 %v829, %v832
        %vm834 = vweird.f32 %v829
        %v835 = vsel %vm834, %v829, %v833
        %v836 = vmul.f32 %v828, %v835
        %v837 = vsub.f32 %v824, %v836
        %v838 = vmul.f32 %v837, %v837
        %v839 = vsel %vm825, %v838, 0.0
        %840 = vadd.xlane.f32.xlu0 %v839
        %v841 = vpop.xlane.xlu0 %840
        %v842 = vmul.f32 %v841, %v835
        %v843 = vadd.f32 %v842, 1e-05
        %v844 = vrsqrt.pop %v843
        %v845 = vmul.f32 %v844, %v843
        %v846 = vmul.f32 %v845, %v844
        %v847 = vmul.f32 0.5, %v846
        %v848 = vsub.f32 1.5, %v847
        %v849 = vmul.f32 %v844, %v848
        %vm850 = vweird.f32 %v843
        %vm851 = vweird.f32 %v844
        %vm852 = vmor %vm850, %vm851
        %v853 = vsel %vm852, %v844, %v849
        %v854 = vmul.f32 %v837, %v853
        %v855 = vld [vmem:[#allocation12] sm:$0x1]
        %v857 = vperm.slane %v855, 0
        %v859 = vmul.f32 %v854, %v857
        %860 = vst.msk [vmem:[#allocation2] sm:$0xff] %vm825, %v859
        %862 = vrot.lane.b32.xlu0 %v824, 120
        %v863 = vpop.permute.xlu0 %862
        %v865 = vsel %vm825, %v863, 0.0
        %866 = vadd.xlane.f32.xlu0 %v865
        %v867 = vpop.xlane.xlu0 %866
        %v868 = vmul.f32 %v867, %v835
        %v869 = vsub.f32 %v824, %v868
        %v870 = vmul.f32 %v869, %v869
        %872 = vrot.lane.b32.xlu0 %v870, 120
        %v873 = vpop.permute.xlu0 %872
        %v875 = vsel %vm825, %v873, 0.0
        %876 = vadd.xlane.f32.xlu0 %v875
        %v877 = vpop.xlane.xlu0 %876
        %v878 = vmul.f32 %v877, %v835
        %v879 = vadd.f32 %v878, 1e-05
        %v880 = vrsqrt.pop %v879
        %v881 = vmul.f32 %v880, %v879
        %v882 = vmul.f32 %v881, %v880
        %v883 = vmul.f32 0.5, %v882
        %v884 = vsub.f32 1.5, %v883
        %v885 = vmul.f32 %v880, %v884
        %vm886 = vweird.f32 %v879
        %vm887 = vweird.f32 %v880
        %vm888 = vmor %vm886, %vm887
        %v889 = vsel %vm888, %v880, %v885
        %v890 = vmul.f32 %v869, %v889
        %v891 = vld [vmem:[#allocation12] sm:$0x1]
        %v893 = vperm.slane %v891, 0
        %v895 = vmul.f32 %v890, %v893
        %vm896 = vcmask 130112
        %897 = vst.msk [vmem:[#allocation2] sm:$0xff] %vm896, %v895
        %898 = vrot.lane.b32.xlu0 %v824, 112
        %v899 = vpop.permute.xlu0 %898
        %v901 = vsel %vm825, %v899, 0.0
        %902 = vadd.xlane.f32.xlu0 %v901
        %v903 = vpop.xlane.xlu0 %902
        %v904 = vmul.f32 %v903, %v835
        %v905 = vsub.f32 %v824, %v904
        %v906 = vmul.f32 %v905, %v905
        %908 = vrot.lane.b32.xlu0 %v906, 112
        %v909 = vpop.permute.xlu0 %908
        %v911 = vsel %vm825, %v909, 0.0
        %912 = vadd.xlane.f32.xlu0 %v911
        %v913 = vpop.xlane.xlu0 %912
        %v914 = vmul.f32 %v913, %v835
        %v915 = vadd.f32 %v914, 1e-05
        %v916 = vrsqrt.pop %v915
        %v917 = vmul.f32 %v916, %v915
        %v918 = vmul.f32 %v917, %v916
        %v919 = vmul.f32 0.5, %v918
        %v920 = vsub.f32 1.5, %v919
        %v921 = vmul.f32 %v916, %v920
        %vm922 = vweird.f32 %v915
        %vm923 = vweird.f32 %v916
        %vm924 = vmor %vm922, %vm923
        %v925 = vsel %vm924, %v916, %v921
        %v926 = vmul.f32 %v905, %v925
        %v927 = vld [vmem:[#allocation12] sm:$0x1]
        %v929 = vperm.slane %v927, 0
        %v931 = vmul.f32 %v926, %v929
        %vm932 = vcmask 195712
        %933 = vst.msk [vmem:[#allocation2] sm:$0xff] %vm932, %v931
        %934 = vrot.lane.b32.xlu0 %v824, 104
        %v935 = vpop.permute.xlu0 %934
        %v937 = vsel %vm825, %v935, 0.0
        %938 = vadd.xlane.f32.xlu0 %v937
        %v939 = vpop.xlane.xlu0 %938
        %v940 = vmul.f32 %v939, %v835
        %v941 = vsub.f32 %v824, %v940
        %v942 = vmul.f32 %v941, %v941
        %944 = vrot.lane.b32.xlu0 %v942, 104
        %v945 = vpop.permute.xlu0 %944
        %v947 = vsel %vm825, %v945, 0.0
        %948 = vadd.xlane.f32.xlu0 %v947
        %v949 = vpop.xlane.xlu0 %948
        %v950 = vmul.f32 %v949, %v835
        %v951 = vadd.f32 %v950, 1e-05
        %v952 = vrsqrt.pop %v951
        %v953 = vmul.f32 %v952, %v951
        %v954 = vmul.f32 %v953, %v952
        %v955 = vmul.f32 0.5, %v954
        %v956 = vsub.f32 1.5, %v955
        %v957 = vmul.f32 %v952, %v956
        %vm958 = vweird.f32 %v951
        %vm959 = vweird.f32 %v952
        %vm960 = vmor %vm958, %vm959
        %v961 = vsel %vm960, %v952, %v957
        %v962 = vmul.f32 %v941, %v961
        %v963 = vld [vmem:[#allocation12] sm:$0x1]
        %v965 = vperm.slane %v963, 0
        %v967 = vmul.f32 %v962, %v965
        %vm968 = vcmask 261312
        %969 = vst.msk [vmem:[#allocation2] sm:$0xff] %vm968, %v967
        %v970 = vld [vmem:[#allocation2] sm:$0xff]
        %v971 = vadd.f32 %v514, %v970
        %v972 = vld [vmem:[#allocation13] sm:$0x1]
        %v973 = vsel %vm516, %v971, 0.0
        %974 = vadd.xlane.f32.xlu0 %v973
        %v975 = vpop.xlane.xlu0 %974
        %v976 = vmul.f32 %v975, %v526
        %v977 = vsub.f32 %v971, %v976
        %v978 = vmul.f32 %v977, %v977
        %v979 = vsel %vm516, %v978, 0.0
        %980 = vadd.xlane.f32.xlu0 %v979
        %v981 = vpop.xlane.xlu0 %980
        %v982 = vmul.f32 %v981, %v526
        %v983 = vadd.f32 %v982, 1e-05
        %v984 = vrsqrt.pop %v983
        %v985 = vmul.f32 %v984, %v983
        %v986 = vmul.f32 %v985, %v984
        %v987 = vmul.f32 0.5, %v986
        %v988 = vsub.f32 1.5, %v987
        %v989 = vmul.f32 %v984, %v988
        %vm990 = vweird.f32 %v983
        %vm991 = vweird.f32 %v984
        %vm992 = vmor %vm990, %vm991
        %v993 = vsel %vm992, %v984, %v989
        %v994 = vmul.f32 %v977, %v993
        %v996 = vperm.slane %v972, 0
        %v998 = vmul.f32 %v994, %v996
        %v999 = vld [vmem:[#allocation15] sm:$0xf]
        %v1000 = vld [vmem:[#allocation15 + $0x4] sm:$0xf]
        %v1001 = vld [vmem:[#allocation15 + $0x8] sm:$0xf]
        %v1002 = vld [vmem:[#allocation15 + $0xc] sm:$0xf]
        %v1003 = vpack.c.bf16 %v998, %v998
        %v1008 = vunpack.c.l.b16 %v999
        %v1009 = vunpack.c.l.b16 %v1000
        %v1010 = vunpack.c.l.b16 %v1001
        %v1011 = vunpack.c.l.b16 %v1002
        %v1012 = vpack.c.b16 %v1009, %v1008
        %v1013 = vpack.c.b16 %v1011, %v1010
        %v1017 = vsel %vm516, %v1003, 0
        %1019 = vmatpush.bf16.msra.mxu0 0
        %1020 = vmatpush.bf16.msra.mxu0 0
        %1021 = vmatpush.bf16.msra.mxu0 0
        %1022 = vmatpush.bf16.msra.mxu0 0
        %1023 = vmatpush.bf16.msra.mxu0 0
        %1024 = vmatpush.bf16.msra.mxu0 0
        %1025 = vmatpush.bf16.msra.mxu0 %v1013
        %1026 = vmatpush.bf16.msra.mxu0 %v1012
        %1027 = vmatmul.bf16.gmra.mxu0 %v1017
        %v1028 = vpop.f32.mrf.mxu0
        %v1029 = vadd.f32 0.0, %v1028
        %v1030 = vpop.f32.mrf.mxu0
        %1031 = vdwg.mxu0
        %v1032 = vmul.f32 %v1029, 0.5
        %v1033 = vmul.f32 %v1029, 0.70710677
        %vm1034 = vcmp.ge.f32.partialorder %v1033, 0.0
        %v1035 = vsel %vm1034, 1.0, -1.0
        %v1036 = vand.u32 2147483647, %v1033
        %v1037 = vmul.f32 %v1036, 0.3275911
        %v1038 = vadd.f32 %v1037, 1.0
        %v1039 = vrcp.pop %v1038
        %v1040 = vmul.f32 %v1038, %v1039
        %v1041 = vsub.f32 1.0, %v1040
        %v1042 = vmul.f32 %v1039, %v1041
        %v1043 = vadd.f32 %v1039, %v1042
        %vm1044 = vweird.f32 %v1038
        %vm1045 = vweird.f32 %v1039
        %vm1046 = vmor %vm1044, %vm1045
        %v1047 = vsel %vm1046, %v1039, %v1043
        %v1048 = vand.u32 2147483647, %v1038
        %vm1049 = vcmp.eq.f32.partialorder %v1048, 8.507059e+37
        %v1050 = vand.u32 %v1038, 2147483648
        %v1051 = vor.u32 1.1754944e-38, %v1050
        %v1052 = vsel %vm1049, %v1051, %v1047
        %v1053 = vmul.f32 1.0, %v1052
        %v1054 = vmul.f32 %v1053, 1.0614054
        %v1055 = vadd.f32 %v1054, -1.4531521
        %v1056 = vmul.f32 %v1055, %v1053
        %v1057 = vadd.f32 %v1056, 1.4214138
        %v1058 = vmul.f32 %v1057, %v1053
        %v1059 = vadd.f32 %v1058, -0.28449672
        %v1060 = vmul.f32 %v1059, %v1053
        %v1061 = vadd.f32 %v1060, 0.2548296
        %v1062 = vmul.f32 %v1061, %v1053
        %v1063 = vsub.f32 0.0, %v1036
        %v1064 = vmul.f32 %v1063, %v1036
        %v1065 = vmul.f32 %v1064, 1.442695
        %v1066 = vpow.pop %v1065
        %v1067 = vmul.f32 %v1062, %v1066
        %v1068 = vsub.f32 1.0, %v1067
        %v1069 = vmul.f32 %v1035, %v1068
        %v1070 = vadd.f32 %v1069, 1.0
        %v1071 = vmul.f32 %v1032, %v1070
        %1073 = vrot.lane.b32.xlu0 %v1029, 64
        %v1074 = vpop.permute.xlu0 %1073
        %v1076 = vmul.f32 %v1071, %v1074
        %v1077 = vld [vmem:[%s11] sm:$0xf]
        %v1078 = vld [vmem:[%s11 + $0x4] sm:$0xf]
        %v1079 = vld [vmem:[%s11 + $0x8] sm:$0xf]
        %v1080 = vld [vmem:[%s11 + $0xc] sm:$0xf]
        %v1081 = vld [vmem:[%s11 + $0x10] sm:$0xf]
        %v1082 = vld [vmem:[%s11 + $0x14] sm:$0xf]
        %v1083 = vld [vmem:[%s11 + $0x18] sm:$0xf]
        %v1084 = vld [vmem:[%s11 + $0x1c] sm:$0xf]
        %v1085 = vpack.c.bf16 %v1076, %v1076
        %v1094 = vunpack.c.l.b16 %v1077
        %v1095 = vunpack.c.l.b16 %v1078
        %v1096 = vunpack.c.l.b16 %v1079
        %v1097 = vunpack.c.l.b16 %v1080
        %v1098 = vunpack.c.l.b16 %v1081
        %v1099 = vunpack.c.l.b16 %v1082
        %v1100 = vunpack.c.l.b16 %v1083
        %v1101 = vunpack.c.l.b16 %v1084
        %v1102 = vpack.c.b16 %v1095, %v1094
        %v1103 = vpack.c.b16 %v1097, %v1096
        %v1104 = vpack.c.b16 %v1099, %v1098
        %v1105 = vpack.c.b16 %v1101, %v1100
        %v1111 = vsel %vm638, %v1085, 0
        %1113 = vmatpush.bf16.msra.mxu0 0
        %1114 = vmatpush.bf16.msra.mxu0 0
        %1115 = vmatpush.bf16.msra.mxu0 0
        %1116 = vmatpush.bf16.msra.mxu0 0
        %1117 = vmatpush.bf16.msra.mxu0 %v1105
        %1118 = vmatpush.bf16.msra.mxu0 %v1104
        %1119 = vmatpush.bf16.msra.mxu0 %v1103
        %1120 = vmatpush.bf16.msra.mxu0 %v1102
        %1121 = vmatmul.bf16.gmra.mxu0 %v1111
        %v1122 = vpop.f32.mrf.mxu0
        %v1123 = vadd.f32 0.0, %v1122
        %v1124 = vpop.f32.mrf.mxu0
        %1125 = vdwg.mxu0
        %v1126 = vadd.f32 %v971, %v1123
        %1127 = vst.msk [vmem:[%s512] sm:$0xff] %vm516, %v1126
        %p1128 = scmp.lt.s32.totalorder %s27, 1
        %s1129 = scalar_select %p1128, %s27, 1
        %s1130 = smul.addr %s1129, 8
        %s1131 = scalar_lea.vmem %s12, %s1130
        // Predicated region
        $region104: #{_lambda_.4} parent=67 // pred_check
          %p1132 = pneg %p302
        $region105: #{_lambda_.4} parent=67 // pred_check_branch
          %1134 = sbr.rel (%p1132) target = $region107
        $region106: #{_lambda_.4} parent=67 // pred_region
          _
        $region107: #{_lambda_.4} parent=67 // pred_fallthru
          _
      $region68: #{_lambda_.4} parent=5 // pred_fallthru
        _
      %p1135 = scmp.le.s32.totalorder 2, %s22
      // Predicated region
      $region108: #{_lambda_.4} parent=5 // pred_check
        %p1136 = pneg %p1135
      $region109: #{_lambda_.4} parent=5 // pred_check_branch
        %1138 = sbr.rel (%p1136) target = $region111
      $region110: #{_lambda_.4} parent=5 // pred_region
        %s1139 = ssub.s32 %s22, 2
        // Predicated region
        $region112: #{_lambda_.4} parent=110 // pred_check
          %p1140 = pneg %p308
        $region113: #{_lambda_.4} parent=110 // pred_check_branch
          %1142 = sbr.rel (%p1140) target = $region115
        $region114: #{_lambda_.4} parent=110 // pred_region
          %p1143 = scmp.lt.s32.totalorder %s28, 1
          %s1144 = scalar_select %p1143, %s28, 1
          %s1145 = smul.addr %s1144, 8
          %s1146 = scalar_lea.vmem %s12, %s1145
        $region115: #{_lambda_.4} parent=110 // pred_fallthru
          _
      $region111: #{_lambda_.4} parent=5 // pred_fallthru
        _
    $region6: #{_lambda_.4} parent=1 // loop_footer
      %s26 = sadd.s32 1, %s22
    $region7: #{_lambda_.4} parent=1 // loop_footer_branch
      %21 = sbr.rel target = $region3
    $region8: #{_lambda_.4} parent=1 // loop_exit
      _
    %1147 = vsyncpa [#allocation6], 1
    %s1148 = scalar_lea.sflag [#allocation6], 1
    %1149 = vsyncpa %s1148, 1
    %1150 = vsyncpa [#allocation8], 1
    %1151 = vsyncpa [#allocation11], 1
    %1152 = vsyncpa [#allocation14], 1

// kernel: _lambda_.5
$region0: #{_lambda_.5}
  #allocation0 [shape = 'u32[]', space=smem, size = 0x4, offset = 0x4, fixed_abs, tag = 'smem constant byte address 0x4 - core index']
  #allocation1 [shape = 'u32[72,128]{1,0:T(1,128)}', space=vmem, size = 0x9000, scoped, tag = 'internal scratch']
  #allocation2 [shape = 'f32[8,32]{1,0:T(8,128)}', space=vmem, size = 0x1000, scoped, tag = 'scratch operand']
  %s0 = inlined_call_operand.vmem [shape: f32[2,8,32], index: 0, kind: input, shape index: {}]
  %s1 = inlined_call_operand.vmem [shape: f32[1,32], index: 1, kind: input, shape index: {}]
  %s2 = inlined_call_operand.vmem [shape: bf16[32,96], index: 2, kind: input, shape index: {}]
  %s3 = inlined_call_operand.vmem [shape: f32[1,96], index: 3, kind: input, shape index: {}]
  %s4 = inlined_call_operand.vmem [shape: bf16[32,32], index: 4, kind: input, shape index: {}]
  %s5 = inlined_call_operand.vmem [shape: f32[1,32], index: 5, kind: input, shape index: {}]
  %s6 = inlined_call_operand.vmem [shape: f32[1,32], index: 6, kind: input, shape index: {}]
  %s7 = inlined_call_operand.vmem [shape: f32[1,32], index: 7, kind: input, shape index: {}]
  %s8 = inlined_call_operand.vmem [shape: bf16[32,64], index: 8, kind: input, shape index: {}]
  %s9 = inlined_call_operand.hbm [shape: f32[1,64], index: 9, kind: input, shape index: {}]
  %s10 = inlined_call_operand.vmem [shape: bf16[64,32], index: 10, kind: input, shape index: {}]
  %s11 = inlined_call_operand.vmem [shape: f32[1,32], index: 11, kind: input, shape index: {}]
  %s12 = inlined_call_operand.vmem [shape: f32[1,32], index: 12, kind: input, shape index: {}]
  %s13 = inlined_call_operand.vmem [shape: f32[1,32], index: 13, kind: input, shape index: {}]
  %s14 = inlined_call_operand.hbm [shape: bf16[32,128], index: 14, kind: input, shape index: {}]
  %s15 = inlined_call_operand.hbm [shape: f32[1,128], index: 15, kind: input, shape index: {}]
  %s16 = inlined_call_operand.hbm [shape: f32[2,1,128], index: 16, kind: output, shape index: {}]
  %s17 = sld [smem:[#allocation0]]
  $region109: #{_lambda_.5} parent=0
    _
  %s19 = ssub.s32 1, %s17
  %s20 = scalar_select 0, %s19, %s17
  $region1: #{_lambda_.5} parent=0
    #allocation3 [shape = 'u8[512]{0}', space=vmem, size = 0x400, scoped, tag = 'input window, operand 9, single buffered']
    #allocation4 [shape = 's32[2]{0}', space=sflag, size = 0x8, scoped, tag = 'scoped memory for _lambda_.5']
    #allocation5 [shape = 's32[2]{0}', space=sflag, size = 0x8, scoped, tag = 'scoped memory for _lambda_.5']
    #allocation6 [shape = 'u8[8192]{0}', space=vmem, size = 0x2000, scoped, tag = 'input window, operand 14, single buffered']
    #allocation7 [shape = 's32[1]{0}', space=sflag, size = 0x4, scoped, tag = 'scoped memory for _lambda_.5']
    #allocation8 [shape = 'u8[512]{0}', space=vmem, size = 0x400, scoped, tag = 'input window, operand 15, single buffered']
    #allocation9 [shape = 'u8[1024]{0}', space=vmem, size = 0x400, scoped, tag = 'output window, operand 0']
    %21 = vsyncpa [#allocation4], 0
    %22 = vsyncpa [#allocation7], 0
    %23 = vsyncpa [#allocation5], 0
    %s24 = scalar_lea.sflag [#allocation5], 1
    %25 = vsyncpa %s24, 0
    loop: start=0, step=1, limit=4
    $region2: #{_lambda_.5} parent=1 // loop_pre_header
      _
    $region3: #{_lambda_.5} parent=1 // loop_header
      %s27 = sphi 0, %s31
      %p28 = scmp.ge.s32.totalorder %s27, 4
      %s37 = sphi 0, %s39
      %s40 = sphi 0, %s37
      %s41 = sphi 0, %s40
      %s57 = sphi 0, %s41
      %s61 = sphi 0, %s61
      %s63 = sphi 0, %s61
      %s64 = sphi 0, %s63
      %s78 = sphi 0, %s64
      %s82 = sphi 0, %s82
      %s84 = sphi 0, %s82
      %s85 = sphi 0, %s84
      %s99 = sphi 0, %s85
      %s103 = sphi 0, %s103
      %s105 = sphi 0, %s103
      %s106 = sphi 0, %s105
      %s120 = sphi 0, %s106
      %s124 = sphi 0, %s124
      %s126 = sphi 0, %s124
      %s127 = sphi 0, %s126
      %s141 = sphi 0, %s127
      %s145 = sphi 0, %s145
      %s147 = sphi 0, %s145
      %s148 = sphi 0, %s147
      %s162 = sphi 0, %s148
      %s166 = sphi 0, %s166
      %s168 = sphi 0, %s166
      %s169 = sphi 0, %s168
      %s183 = sphi 0, %s169
      %s187 = sphi 0, %s187
      %s189 = sphi 0, %s187
      %s190 = sphi 0, %s189
      %s204 = sphi 0, %s190
      %s208 = sphi 0, %s208
      %s210 = sphi 0, %s208
      %s211 = sphi 0, %s210
      %s225 = sphi 0, %s211
      %s229 = sphi 0, %s229
      %s231 = sphi 0, %s229
      %s232 = sphi 0, %s231
      %s246 = sphi 0, %s232
      %s250 = sphi 0, %s250
      %s252 = sphi 0, %s250
      %s253 = sphi 0, %s252
      %s267 = sphi 0, %s253
      %s271 = sphi 0, %s271
      %s273 = sphi 0, %s271
      %s274 = sphi 0, %s273
      %s288 = sphi 0, %s274
      %s292 = sphi 0, %s292
      %s294 = sphi 0, %s292
      %s295 = sphi 0, %s294
      %s309 = sphi 0, %s295
      %s313 = sphi 0, %s313
      %s315 = sphi 0, %s313
      %s316 = sphi 0, %s315
      %s330 = sphi 0, %s316
      %s334 = sphi 0, %s334
      %s336 = sphi 0, %s334
      %s337 = sphi 0, %s336
      %s351 = sphi 0, %s337
      %s355 = sphi 0, %s355
      %s357 = sphi 0, %s355
      %s358 = sphi 0, %s357
      %s372 = sphi 0, %s358
      %s378 = sphi 0, %s380
      %s381 = sphi 0, %s378
      %s382 = sphi 0, %s381
      %s398 = sphi 0, %s382
    $region4: #{_lambda_.5} parent=1 // loop_header_branch
      %30 = sbr.rel (%p28) target = $region8
    $region5: #{_lambda_.5} parent=1 // loop_body
      %s32 = ssub.s32 %s27, 1
      %s33 = ssub.s32 %s27, 2
      %s34 = sadd.s32 %s27, 1
      %s35 = ssub.s32 %s27, %s34
      %p36 = scmp.eq.s32.totalorder %s35, 0
      %s38 = sadd.s32 %s37, 1
      %s39 = scalar_select %p36, %s37, %s38
      %p42 = pneg %p36
      %p43 = scmp.eq.s32.totalorder %s27, 1
      %p44 = por %p42, %p43
      %p45 = scmp.ne.s32.totalorder %s37, %s40
      %p46 = scmp.eq.s32.totalorder %s27, 0
      %p47 = por %p45, %p46
      %p48 = scmp.ne.s32.totalorder %s37, %s40
      %p49 = scmp.eq.s32.totalorder %s32, 1
      %p50 = por %p48, %p49
      %p51 = scmp.ne.s32.totalorder %s40, %s41
      %p52 = scmp.eq.s32.totalorder %s32, 0
      %p53 = por %p51, %p52
      %p54 = scmp.ne.s32.totalorder %s40, %s41
      %p55 = scmp.eq.s32.totalorder %s33, 1
      %p56 = por %p54, %p55
      %p58 = scmp.ne.s32.totalorder %s41, %s57
      %p59 = scmp.eq.s32.totalorder %s33, 0
      %p60 = por %p58, %p59
      %s62 = sadd.s32 %s61, 1
      %p65 = scmp.eq.s32.totalorder %s27, 1
      %p66 = scmp.ne.s32.totalorder %s61, %s63
      %p67 = scmp.eq.s32.totalorder %s27, 0
      %p68 = por %p66, %p67
      %p69 = scmp.ne.s32.totalorder %s61, %s63
      %p70 = scmp.eq.s32.totalorder %s32, 1
      %p71 = por %p69, %p70
      %p72 = scmp.ne.s32.totalorder %s63, %s64
      %p73 = scmp.eq.s32.totalorder %s32, 0
      %p74 = por %p72, %p73
      %p75 = scmp.ne.s32.totalorder %s63, %s64
      %p76 = scmp.eq.s32.totalorder %s33, 1
      %p77 = por %p75, %p76
      %p79 = scmp.ne.s32.totalorder %s64, %s78
      %p80 = scmp.eq.s32.totalorder %s33, 0
      %p81 = por %p79, %p80
      %s83 = sadd.s32 %s82, 1
      %p86 = scmp.eq.s32.totalorder %s27, 1
      %p87 = scmp.ne.s32.totalorder %s82, %s84
      %p88 = scmp.eq.s32.totalorder %s27, 0
      %p89 = por %p87, %p88
      %p90 = scmp.ne.s32.totalorder %s82, %s84
      %p91 = scmp.eq.s32.totalorder %s32, 1
      %p92 = por %p90, %p91
      %p93 = scmp.ne.s32.totalorder %s84, %s85
      %p94 = scmp.eq.s32.totalorder %s32, 0
      %p95 = por %p93, %p94
      %p96 = scmp.ne.s32.totalorder %s84, %s85
      %p97 = scmp.eq.s32.totalorder %s33, 1
      %p98 = por %p96, %p97
      %p100 = scmp.ne.s32.totalorder %s85, %s99
      %p101 = scmp.eq.s32.totalorder %s33, 0
      %p102 = por %p100, %p101
      %s104 = sadd.s32 %s103, 1
      %p107 = scmp.eq.s32.totalorder %s27, 1
      %p108 = scmp.ne.s32.totalorder %s103, %s105
      %p109 = scmp.eq.s32.totalorder %s27, 0
      %p110 = por %p108, %p109
      %p111 = scmp.ne.s32.totalorder %s103, %s105
      %p112 = scmp.eq.s32.totalorder %s32, 1
      %p113 = por %p111, %p112
      %p114 = scmp.ne.s32.totalorder %s105, %s106
      %p115 = scmp.eq.s32.totalorder %s32, 0
      %p116 = por %p114, %p115
      %p117 = scmp.ne.s32.totalorder %s105, %s106
      %p118 = scmp.eq.s32.totalorder %s33, 1
      %p119 = por %p117, %p118
      %p121 = scmp.ne.s32.totalorder %s106, %s120
      %p122 = scmp.eq.s32.totalorder %s33, 0
      %p123 = por %p121, %p122
      %s125 = sadd.s32 %s124, 1
      %p128 = scmp.eq.s32.totalorder %s27, 1
      %p129 = scmp.ne.s32.totalorder %s124, %s126
      %p130 = scmp.eq.s32.totalorder %s27, 0
      %p131 = por %p129, %p130
      %p132 = scmp.ne.s32.totalorder %s124, %s126
      %p133 = scmp.eq.s32.totalorder %s32, 1
      %p134 = por %p132, %p133
      %p135 = scmp.ne.s32.totalorder %s126, %s127
      %p136 = scmp.eq.s32.totalorder %s32, 0
      %p137 = por %p135, %p136
      %p138 = scmp.ne.s32.totalorder %s126, %s127
      %p139 = scmp.eq.s32.totalorder %s33, 1
      %p140 = por %p138, %p139
      %p142 = scmp.ne.s32.totalorder %s127, %s141
      %p143 = scmp.eq.s32.totalorder %s33, 0
      %p144 = por %p142, %p143
      %s146 = sadd.s32 %s145, 1
      %p149 = scmp.eq.s32.totalorder %s27, 1
      %p150 = scmp.ne.s32.totalorder %s145, %s147
      %p151 = scmp.eq.s32.totalorder %s27, 0
      %p152 = por %p150, %p151
      %p153 = scmp.ne.s32.totalorder %s145, %s147
      %p154 = scmp.eq.s32.totalorder %s32, 1
      %p155 = por %p153, %p154
      %p156 = scmp.ne.s32.totalorder %s147, %s148
      %p157 = scmp.eq.s32.totalorder %s32, 0
      %p158 = por %p156, %p157
      %p159 = scmp.ne.s32.totalorder %s147, %s148
      %p160 = scmp.eq.s32.totalorder %s33, 1
      %p161 = por %p159, %p160
      %p163 = scmp.ne.s32.totalorder %s148, %s162
      %p164 = scmp.eq.s32.totalorder %s33, 0
      %p165 = por %p163, %p164
      %s167 = sadd.s32 %s166, 1
      %p170 = scmp.eq.s32.totalorder %s27, 1
      %p171 = scmp.ne.s32.totalorder %s166, %s168
      %p172 = scmp.eq.s32.totalorder %s27, 0
      %p173 = por %p171, %p172
      %p174 = scmp.ne.s32.totalorder %s166, %s168
      %p175 = scmp.eq.s32.totalorder %s32, 1
      %p176 = por %p174, %p175
      %p177 = scmp.ne.s32.totalorder %s168, %s169
      %p178 = scmp.eq.s32.totalorder %s32, 0
      %p179 = por %p177, %p178
      %p180 = scmp.ne.s32.totalorder %s168, %s169
      %p181 = scmp.eq.s32.totalorder %s33, 1
      %p182 = por %p180, %p181
      %p184 = scmp.ne.s32.totalorder %s169, %s183
      %p185 = scmp.eq.s32.totalorder %s33, 0
      %p186 = por %p184, %p185
      %s188 = sadd.s32 %s187, 1
      %p191 = scmp.eq.s32.totalorder %s27, 1
      %p192 = scmp.ne.s32.totalorder %s187, %s189
      %p193 = scmp.eq.s32.totalorder %s27, 0
      %p194 = por %p192, %p193
      %p195 = scmp.ne.s32.totalorder %s187, %s189
      %p196 = scmp.eq.s32.totalorder %s32, 1
      %p197 = por %p195, %p196
      %p198 = scmp.ne.s32.totalorder %s189, %s190
      %p199 = scmp.eq.s32.totalorder %s32, 0
      %p200 = por %p198, %p199
      %p201 = scmp.ne.s32.totalorder %s189, %s190
      %p202 = scmp.eq.s32.totalorder %s33, 1
      %p203 = por %p201, %p202
      %p205 = scmp.ne.s32.totalorder %s190, %s204
      %p206 = scmp.eq.s32.totalorder %s33, 0
      %p207 = por %p205, %p206
      %s209 = sadd.s32 %s208, 1
      %p212 = scmp.eq.s32.totalorder %s27, 1
      %p213 = scmp.ne.s32.totalorder %s208, %s210
      %p214 = scmp.eq.s32.totalorder %s27, 0
      %p215 = por %p213, %p214
      %p216 = scmp.ne.s32.totalorder %s208, %s210
      %p217 = scmp.eq.s32.totalorder %s32, 1
      %p218 = por %p216, %p217
      %p219 = scmp.ne.s32.totalorder %s210, %s211
      %p220 = scmp.eq.s32.totalorder %s32, 0
      %p221 = por %p219, %p220
      %p222 = scmp.ne.s32.totalorder %s210, %s211
      %p223 = scmp.eq.s32.totalorder %s33, 1
      %p224 = por %p222, %p223
      %p226 = scmp.ne.s32.totalorder %s211, %s225
      %p227 = scmp.eq.s32.totalorder %s33, 0
      %p228 = por %p226, %p227
      %s230 = sadd.s32 %s229, 1
      %p233 = scmp.eq.s32.totalorder %s27, 1
      %p234 = scmp.ne.s32.totalorder %s229, %s231
      %p235 = scmp.eq.s32.totalorder %s27, 0
      %p236 = por %p234, %p235
      %p237 = scmp.ne.s32.totalorder %s229, %s231
      %p238 = scmp.eq.s32.totalorder %s32, 1
      %p239 = por %p237, %p238
      %p240 = scmp.ne.s32.totalorder %s231, %s232
      %p241 = scmp.eq.s32.totalorder %s32, 0
      %p242 = por %p240, %p241
      %p243 = scmp.ne.s32.totalorder %s231, %s232
      %p244 = scmp.eq.s32.totalorder %s33, 1
      %p245 = por %p243, %p244
      %p247 = scmp.ne.s32.totalorder %s232, %s246
      %p248 = scmp.eq.s32.totalorder %s33, 0
      %p249 = por %p247, %p248
      %s251 = sadd.s32 %s250, 1
      %p254 = scmp.eq.s32.totalorder %s27, 1
      %p255 = scmp.ne.s32.totalorder %s250, %s252
      %p256 = scmp.eq.s32.totalorder %s27, 0
      %p257 = por %p255, %p256
      %p258 = scmp.ne.s32.totalorder %s250, %s252
      %p259 = scmp.eq.s32.totalorder %s32, 1
      %p260 = por %p258, %p259
      %p261 = scmp.ne.s32.totalorder %s252, %s253
      %p262 = scmp.eq.s32.totalorder %s32, 0
      %p263 = por %p261, %p262
      %p264 = scmp.ne.s32.totalorder %s252, %s253
      %p265 = scmp.eq.s32.totalorder %s33, 1
      %p266 = por %p264, %p265
      %p268 = scmp.ne.s32.totalorder %s253, %s267
      %p269 = scmp.eq.s32.totalorder %s33, 0
      %p270 = por %p268, %p269
      %s272 = sadd.s32 %s271, 1
      %p275 = scmp.eq.s32.totalorder %s27, 1
      %p276 = scmp.ne.s32.totalorder %s271, %s273
      %p277 = scmp.eq.s32.totalorder %s27, 0
      %p278 = por %p276, %p277
      %p279 = scmp.ne.s32.totalorder %s271, %s273
      %p280 = scmp.eq.s32.totalorder %s32, 1
      %p281 = por %p279, %p280
      %p282 = scmp.ne.s32.totalorder %s273, %s274
      %p283 = scmp.eq.s32.totalorder %s32, 0
      %p284 = por %p282, %p283
      %p285 = scmp.ne.s32.totalorder %s273, %s274
      %p286 = scmp.eq.s32.totalorder %s33, 1
      %p287 = por %p285, %p286
      %p289 = scmp.ne.s32.totalorder %s274, %s288
      %p290 = scmp.eq.s32.totalorder %s33, 0
      %p291 = por %p289, %p290
      %s293 = sadd.s32 %s292, 1
      %p296 = scmp.eq.s32.totalorder %s27, 1
      %p297 = scmp.ne.s32.totalorder %s292, %s294
      %p298 = scmp.eq.s32.totalorder %s27, 0
      %p299 = por %p297, %p298
      %p300 = scmp.ne.s32.totalorder %s292, %s294
      %p301 = scmp.eq.s32.totalorder %s32, 1
      %p302 = por %p300, %p301
      %p303 = scmp.ne.s32.totalorder %s294, %s295
      %p304 = scmp.eq.s32.totalorder %s32, 0
      %p305 = por %p303, %p304
      %p306 = scmp.ne.s32.totalorder %s294, %s295
      %p307 = scmp.eq.s32.totalorder %s33, 1
      %p308 = por %p306, %p307
      %p310 = scmp.ne.s32.totalorder %s295, %s309
      %p311 = scmp.eq.s32.totalorder %s33, 0
      %p312 = por %p310, %p311
      %s314 = sadd.s32 %s313, 1
      %p317 = scmp.eq.s32.totalorder %s27, 1
      %p318 = scmp.ne.s32.totalorder %s313, %s315
      %p319 = scmp.eq.s32.totalorder %s27, 0
      %p320 = por %p318, %p319
      %p321 = scmp.ne.s32.totalorder %s313, %s315
      %p322 = scmp.eq.s32.totalorder %s32, 1
      %p323 = por %p321, %p322
      %p324 = scmp.ne.s32.totalorder %s315, %s316
      %p325 = scmp.eq.s32.totalorder %s32, 0
      %p326 = por %p324, %p325
      %p327 = scmp.ne.s32.totalorder %s315, %s316
      %p328 = scmp.eq.s32.totalorder %s33, 1
      %p329 = por %p327, %p328
      %p331 = scmp.ne.s32.totalorder %s316, %s330
      %p332 = scmp.eq.s32.totalorder %s33, 0
      %p333 = por %p331, %p332
      %s335 = sadd.s32 %s334, 1
      %p338 = scmp.eq.s32.totalorder %s27, 1
      %p339 = scmp.ne.s32.totalorder %s334, %s336
      %p340 = scmp.eq.s32.totalorder %s27, 0
      %p341 = por %p339, %p340
      %p342 = scmp.ne.s32.totalorder %s334, %s336
      %p343 = scmp.eq.s32.totalorder %s32, 1
      %p344 = por %p342, %p343
      %p345 = scmp.ne.s32.totalorder %s336, %s337
      %p346 = scmp.eq.s32.totalorder %s32, 0
      %p347 = por %p345, %p346
      %p348 = scmp.ne.s32.totalorder %s336, %s337
      %p349 = scmp.eq.s32.totalorder %s33, 1
      %p350 = por %p348, %p349
      %p352 = scmp.ne.s32.totalorder %s337, %s351
      %p353 = scmp.eq.s32.totalorder %s33, 0
      %p354 = por %p352, %p353
      %s356 = sadd.s32 %s355, 1
      %p359 = scmp.eq.s32.totalorder %s27, 1
      %p360 = scmp.ne.s32.totalorder %s355, %s357
      %p361 = scmp.eq.s32.totalorder %s27, 0
      %p362 = por %p360, %p361
      %p363 = scmp.ne.s32.totalorder %s355, %s357
      %p364 = scmp.eq.s32.totalorder %s32, 1
      %p365 = por %p363, %p364
      %p366 = scmp.ne.s32.totalorder %s357, %s358
      %p367 = scmp.eq.s32.totalorder %s32, 0
      %p368 = por %p366, %p367
      %p369 = scmp.ne.s32.totalorder %s357, %s358
      %p370 = scmp.eq.s32.totalorder %s33, 1
      %p371 = por %p369, %p370
      %p373 = scmp.ne.s32.totalorder %s358, %s372
      %p374 = scmp.eq.s32.totalorder %s33, 0
      %p375 = por %p373, %p374
      %s376 = ssub.s32 %s27, %s34
      %p377 = scmp.eq.s32.totalorder %s376, 0
      %s379 = sadd.s32 %s378, 1
      %s380 = scalar_select %p377, %s378, %s379
      %p383 = pneg %p377
      %p384 = scmp.eq.s32.totalorder %s27, 1
      %p385 = por %p383, %p384
      %p386 = scmp.ne.s32.totalorder %s378, %s381
      %p387 = scmp.eq.s32.totalorder %s27, 0
      %p388 = por %p386, %p387
      %p389 = scmp.ne.s32.totalorder %s378, %s381
      %p390 = scmp.eq.s32.totalorder %s32, 1
      %p391 = por %p389, %p390
      %p392 = scmp.ne.s32.totalorder %s381, %s382
      %p393 = scmp.eq.s32.totalorder %s32, 0
      %p394 = por %p392, %p393
      %p395 = scmp.ne.s32.totalorder %s381, %s382
      %p396 = scmp.eq.s32.totalorder %s33, 1
      %p397 = por %p395, %p396
      %p399 = scmp.ne.s32.totalorder %s382, %s398
      %p400 = scmp.eq.s32.totalorder %s33, 0
      %p401 = por %p399, %p400
      %p402 = scmp.le.s32.totalorder 1, %s27
      %p403 = scmp.lt.s32.totalorder %s27, 3
      %p404 = pnand %p402, %p403
      %p405 = pneg %p404
      // Predicated region
      $region9: #{_lambda_.5} parent=5 // pred_check
        _
      $region10: #{_lambda_.5} parent=5 // pred_check_branch
        %407 = sbr.rel (%p404) target = $region12
      $region11: #{_lambda_.5} parent=5 // pred_region
        %s408 = ssub.s32 %s27, 1
        // Predicated region
        $region13: #{_lambda_.5} parent=11 // pred_check
          %p409 = pneg %p74
        $region14: #{_lambda_.5} parent=11 // pred_check_branch
          %411 = sbr.rel (%p409) target = $region16
        $region15: #{_lambda_.5} parent=11 // pred_region
          _
        $region16: #{_lambda_.5} parent=11 // pred_fallthru
          _
        // Predicated region
        $region17: #{_lambda_.5} parent=11 // pred_check
          %p412 = pneg %p95
        $region18: #{_lambda_.5} parent=11 // pred_check_branch
          %414 = sbr.rel (%p412) target = $region20
        $region19: #{_lambda_.5} parent=11 // pred_region
          _
        $region20: #{_lambda_.5} parent=11 // pred_fallthru
          _
        // Predicated region
        $region21: #{_lambda_.5} parent=11 // pred_check
          %p415 = pneg %p116
        $region22: #{_lambda_.5} parent=11 // pred_check_branch
          %417 = sbr.rel (%p415) target = $region24
        $region23: #{_lambda_.5} parent=11 // pred_region
          _
        $region24: #{_lambda_.5} parent=11 // pred_fallthru
          _
        // Predicated region
        $region25: #{_lambda_.5} parent=11 // pred_check
          %p418 = pneg %p137
        $region26: #{_lambda_.5} parent=11 // pred_check_branch
          %420 = sbr.rel (%p418) target = $region28
        $region27: #{_lambda_.5} parent=11 // pred_region
          _
        $region28: #{_lambda_.5} parent=11 // pred_fallthru
          _
        // Predicated region
        $region29: #{_lambda_.5} parent=11 // pred_check
          %p421 = pneg %p158
        $region30: #{_lambda_.5} parent=11 // pred_check_branch
          %423 = sbr.rel (%p421) target = $region32
        $region31: #{_lambda_.5} parent=11 // pred_region
          _
        $region32: #{_lambda_.5} parent=11 // pred_fallthru
          _
        // Predicated region
        $region33: #{_lambda_.5} parent=11 // pred_check
          %p424 = pneg %p179
        $region34: #{_lambda_.5} parent=11 // pred_check_branch
          %426 = sbr.rel (%p424) target = $region36
        $region35: #{_lambda_.5} parent=11 // pred_region
          _
        $region36: #{_lambda_.5} parent=11 // pred_fallthru
          _
        // Predicated region
        $region37: #{_lambda_.5} parent=11 // pred_check
          %p427 = pneg %p200
        $region38: #{_lambda_.5} parent=11 // pred_check_branch
          %429 = sbr.rel (%p427) target = $region40
        $region39: #{_lambda_.5} parent=11 // pred_region
          _
        $region40: #{_lambda_.5} parent=11 // pred_fallthru
          _
        // Predicated region
        $region41: #{_lambda_.5} parent=11 // pred_check
          %p430 = pneg %p221
        $region42: #{_lambda_.5} parent=11 // pred_check_branch
          %432 = sbr.rel (%p430) target = $region44
        $region43: #{_lambda_.5} parent=11 // pred_region
          _
        $region44: #{_lambda_.5} parent=11 // pred_fallthru
          _
        // Predicated region
        $region45: #{_lambda_.5} parent=11 // pred_check
          %p433 = pneg %p242
        $region46: #{_lambda_.5} parent=11 // pred_check_branch
          %435 = sbr.rel (%p433) target = $region48
        $region47: #{_lambda_.5} parent=11 // pred_region
          %437 = vsyncadd [#allocation4], 0
          %s439 = sshll.u32 %s9, 4
          %s440 = int_to_ptr.hbm [resolvable:$true] %s439
          %s441 = sshll.u32 [#allocation3], 4
          %s442 = int_to_ptr.vmem [resolvable:$true] %s441
          %444 = dma.hbm_to_vmem [thread:$0]  %s440, 16, %s442, [#allocation4]
        $region48: #{_lambda_.5} parent=11 // pred_fallthru
          _
        // Predicated region
        $region49: #{_lambda_.5} parent=11 // pred_check
          %p445 = pneg %p263
        $region50: #{_lambda_.5} parent=11 // pred_check_branch
          %447 = sbr.rel (%p445) target = $region52
        $region51: #{_lambda_.5} parent=11 // pred_region
          _
        $region52: #{_lambda_.5} parent=11 // pred_fallthru
          _
        // Predicated region
        $region53: #{_lambda_.5} parent=11 // pred_check
          %p448 = pneg %p284
        $region54: #{_lambda_.5} parent=11 // pred_check_branch
          %450 = sbr.rel (%p448) target = $region56
        $region55: #{_lambda_.5} parent=11 // pred_region
          _
        $region56: #{_lambda_.5} parent=11 // pred_fallthru
          _
        // Predicated region
        $region57: #{_lambda_.5} parent=11 // pred_check
          %p451 = pneg %p305
        $region58: #{_lambda_.5} parent=11 // pred_check_branch
          %453 = sbr.rel (%p451) target = $region60
        $region59: #{_lambda_.5} parent=11 // pred_region
          _
        $region60: #{_lambda_.5} parent=11 // pred_fallthru
          _
        // Predicated region
        $region61: #{_lambda_.5} parent=11 // pred_check
          %p454 = pneg %p326
        $region62: #{_lambda_.5} parent=11 // pred_check_branch
          %456 = sbr.rel (%p454) target = $region64
        $region63: #{_lambda_.5} parent=11 // pred_region
          _
        $region64: #{_lambda_.5} parent=11 // pred_fallthru
          _
        // Predicated region
        $region65: #{_lambda_.5} parent=11 // pred_check
          %p457 = pneg %p347
        $region66: #{_lambda_.5} parent=11 // pred_check_branch
          %459 = sbr.rel (%p457) target = $region68
        $region67: #{_lambda_.5} parent=11 // pred_region
          %461 = vsyncadd [#allocation7], 0
          %s462 = sshll.u32 %s14, 4
          %s463 = int_to_ptr.hbm [resolvable:$true] %s462
          %s464 = sshll.u32 [#allocation6], 4
          %s465 = int_to_ptr.vmem [resolvable:$true] %s464
          %470 = dma.hbm_to_vmem [thread:$0]  %s463, 256, %s465, [#allocation7], 64, 64, 4
        $region68: #{_lambda_.5} parent=11 // pred_fallthru
          _
        // Predicated region
        $region69: #{_lambda_.5} parent=11 // pred_check
          %p471 = pneg %p368
        $region70: #{_lambda_.5} parent=11 // pred_check_branch
          %473 = sbr.rel (%p471) target = $region72
        $region71: #{_lambda_.5} parent=11 // pred_region
          %475 = vsyncadd [#allocation7], 0
          %s477 = sshll.u32 %s15, 4
          %s478 = int_to_ptr.hbm [resolvable:$true] %s477
          %s479 = sshll.u32 [#allocation8], 4
          %s480 = int_to_ptr.vmem [resolvable:$true] %s479
          %482 = dma.hbm_to_vmem [thread:$0]  %s478, 16, %s480, [#allocation7]
        $region72: #{_lambda_.5} parent=11 // pred_fallthru
          _
      $region12: #{_lambda_.5} parent=5 // pred_fallthru
        _
      %p483 = scmp.lt.s32.totalorder %s27, 2
      // Predicated region
      $region73: #{_lambda_.5} parent=5 // pred_check
        %p484 = pneg %p483
      $region74: #{_lambda_.5} parent=5 // pred_check_branch
        %486 = sbr.rel (%p484) target = $region76
      $region75: #{_lambda_.5} parent=5 // pred_region
        // Predicated region
        $region77: #{_lambda_.5} parent=75 // pred_check
          %p487 = pneg %p47
        $region78: #{_lambda_.5} parent=75 // pred_check_branch
          %489 = sbr.rel (%p487) target = $region80
        $region79: #{_lambda_.5} parent=75 // pred_region
          %p490 = scmp.lt.s32.totalorder %s27, 1
          %s491 = scalar_select %p490, %s27, 1
          %s492 = smul.addr %s491, 8
          %s493 = scalar_lea.vmem %s0, %s492
        $region80: #{_lambda_.5} parent=75 // pred_fallthru
          _
      $region76: #{_lambda_.5} parent=5 // pred_fallthru
        _
      %p494 = scmp.le.s32.totalorder 1, %s27
      %p495 = scmp.lt.s32.totalorder %s27, 3
      %p496 = pnand %p494, %p495
      %p497 = pneg %p496
      // Predicated region
      $region81: #{_lambda_.5} parent=5 // pred_check
        _
      $region82: #{_lambda_.5} parent=5 // pred_check_branch
        %499 = sbr.rel (%p496) target = $region84
      $region83: #{_lambda_.5} parent=5 // pred_region
        %s500 = ssub.s32 %s27, 1
        // Predicated region
        $region85: #{_lambda_.5} parent=83 // pred_check
          %p501 = pneg %p242
        $region86: #{_lambda_.5} parent=83 // pred_check_branch
          %503 = sbr.rel (%p501) target = $region88
        $region87: #{_lambda_.5} parent=83 // pred_region
          %505 = dma.done [#allocation4], 16
        $region88: #{_lambda_.5} parent=83 // pred_fallthru
          _
        // Predicated region
        $region89: #{_lambda_.5} parent=83 // pred_check
          %p506 = pneg %p347
        $region90: #{_lambda_.5} parent=83 // pred_check_branch
          %508 = sbr.rel (%p506) target = $region92
        $region91: #{_lambda_.5} parent=83 // pred_region
          %510 = dma.done [#allocation7], 256
        $region92: #{_lambda_.5} parent=83 // pred_fallthru
          _
        // Predicated region
        $region93: #{_lambda_.5} parent=83 // pred_check
          %p511 = pneg %p368
        $region94: #{_lambda_.5} parent=83 // pred_check_branch
          %513 = sbr.rel (%p511) target = $region96
        $region95: #{_lambda_.5} parent=83 // pred_region
          %515 = dma.done [#allocation7], 16
        $region96: #{_lambda_.5} parent=83 // pred_fallthru
          _
        %p516 = scmp.lt.s32.totalorder %s32, 1
        %s517 = scalar_select %p516, %s32, 1
        %s518 = smul.addr %s517, 8
        %s519 = scalar_lea.vmem %s0, %s518
        %p520 = pneg %p53
        %p521 = pneg %p50
        %p522 = pneg %p74
        %p523 = pneg %p71
        %p524 = pneg %p95
        %p525 = pneg %p92
        %p526 = pneg %p116
        %p527 = pneg %p113
        %p528 = pneg %p137
        %p529 = pneg %p134
        %p530 = pneg %p158
        %p531 = pneg %p155
        %p532 = pneg %p179
        %p533 = pneg %p176
        %p534 = pneg %p200
        %p535 = pneg %p197
        %p536 = pneg %p221
        %p537 = pneg %p218
        %p538 = pneg %p242
        %p539 = pneg %p239
        %p540 = pneg %p263
        %p541 = pneg %p260
        %p542 = pneg %p284
        %p543 = pneg %p281
        %p544 = pneg %p305
        %p545 = pneg %p302
        %p546 = pneg %p326
        %p547 = pneg %p323
        %p548 = pneg %p347
        %p549 = pneg %p344
        %p550 = pneg %p368
        %p551 = pneg %p365
        %p552 = pneg %p394
        %p553 = pneg %p391
        %s554 = sand.u32 %s381, 1
        %s555 = scalar_lea.sflag [#allocation5], %s554
        %s556 = sand.u32 %s381, 1
        %s557 = scalar_lea.vmem [#allocation9], %s556
        %p558 = scmp.lt.s32.totalorder %s32, 1
        %s559 = scalar_select %p558, %s32, 1
        %s560 = smul.addr %s559, 8
        %s561 = scalar_lea.vmem %s0, %s560
        %v563 = vld [vmem:[%s561] sm:$0xff]
        %v564 = vld [vmem:[%s1] sm:$0x1]
        %vm565 = vcmask 261120
        %v566 = vsel %vm565, %v563, 0.0
        %567 = vadd.xlane.f32.xlu0 %v566
        %v568 = vpop.xlane.xlu0 %567
        %v569 = vrcp.pop 32.0
        %v570 = vmul.f32 32.0, %v569
        %v571 = vsub.f32 1.0, %v570
        %v572 = vmul.f32 %v569, %v571
        %v573 = vadd.f32 %v569, %v572
        %vm574 = vweird.f32 %v569
        %v575 = vsel %vm574, %v569, %v573
        %v576 = vmul.f32 %v568, %v575
        %v577 = vsub.f32 %v563, %v576
        %v578 = vmul.f32 %v577, %v577
        %v579 = vsel %vm565, %v578, 0.0
        %580 = vadd.xlane.f32.xlu0 %v579
        %v581 = vpop.xlane.xlu0 %580
        %v582 = vmul.f32 %v581, %v575
        %v583 = vadd.f32 %v582, 1e-05
        %v584 = vrsqrt.pop %v583
        %v585 = vmul.f32 %v584, %v583
        %v586 = vmul.f32 %v585, %v584
        %v587 = vmul.f32 0.5, %v586
        %v588 = vsub.f32 1.5, %v587
        %v589 = vmul.f32 %v584, %v588
        %vm590 = vweird.f32 %v583
        %vm591 = vweird.f32 %v584
        %vm592 = vmor %vm590, %vm591
        %v593 = vsel %vm592, %v584, %v589
        %v594 = vmul.f32 %v577, %v593
        %v596 = vperm.slane %v564, 0
        %v598 = vmul.f32 %v594, %v596
        %v599 = vld [vmem:[%s2] sm:$0xf]
        %v600 = vld [vmem:[%s2 + $0x4] sm:$0xf]
        %v601 = vld [vmem:[%s2 + $0x8] sm:$0xf]
        %v602 = vld [vmem:[%s2 + $0xc] sm:$0xf]
        %v603 = vpack.c.bf16 %v598, %v598
        %v604 = vld [vmem:[%s3] sm:$0x1]
        %v606 = vperm.slane %v604, 0
        %v612 = vunpack.c.l.b16 %v599
        %v613 = vunpack.c.l.b16 %v600
        %v614 = vunpack.c.l.b16 %v601
        %v615 = vunpack.c.l.b16 %v602
        %v616 = vpack.c.b16 %v613, %v612
        %v617 = vpack.c.b16 %v615, %v614
        %v621 = vsel %vm565, %v603, 0
        %623 = vmatpush.bf16.msra.mxu0 0
        %624 = vmatpush.bf16.msra.mxu0 0
        %625 = vmatpush.bf16.msra.mxu0 0
        %626 = vmatpush.bf16.msra.mxu0 0
        %627 = vmatpush.bf16.msra.mxu0 0
        %628 = vmatpush.bf16.msra.mxu0 0
        %629 = vmatpush.bf16.msra.mxu0 %v617
        %630 = vmatpush.bf16.msra.mxu0 %v616
        %631 = vmatmul.bf16.gmra.mxu0 %v621
        %v632 = vpop.f32.mrf.mxu0
        %v633 = vadd.f32 %v606, %v632
        %v634 = vpop.f32.mrf.mxu0
        %635 = vdwg.mxu0
        %637 = vrot.lane.b32.xlu0 %v633, 96
        %v638 = vpop.permute.xlu0 %637
        %vm639 = vcmask 64512
        %v640 = vsel %vm639, %v633, 0
        %v642 = vsel %vm639, %v638, 0
        %644 = vmatpush.xpose.msra.mxu0 0.0
        %645 = vmatpush.xpose.msra.mxu0 0.0
        %646 = vmatpush.xpose.msra.mxu0 0.0
        %647 = vmatpush.xpose.msra.mxu0 0.0
        %648 = vmatpush.xpose.msra.mxu0 0.0
        %649 = vmatpush.xpose.msra.mxu0 0.0
        %650 = vmatpush.xpose.msra.mxu0 0.0
        %651 = vmatpush.xpose.msra.mxu0 0.0
        %652 = vmatpush.xpose.msra.mxu0 0.0
        %653 = vmatpush.xpose.msra.mxu0 0.0
        %654 = vmatpush.xpose.msra.mxu0 0.0
        %655 = vmatpush.xpose.msra.mxu0 0.0
        %656 = vmatpush.xpose.msra.mxu0 0.0
        %657 = vmatpush.xpose.msra.mxu0 0.0
        %658 = vmatpush.xpose.msra.mxu0 0.0
        %659 = vmatpush.xpose.msra.mxu0 %v642
        %660 = vmatmul.f32.gmra.mxu0 %v640
        %v661 = vpop.f32.mrf.mxu0
        %v662 = vadd.f32 0.0, %v661
        %663 = vdwg.mxu0
        %v664 = vmul.f32 %v662, 0.35355338
        %v665 = vsel %vm639, %v664, -inf
        %666 = vmax.xlane.f32.xlu0 %v665
        %v667 = vpop.xlane.xlu0 %666
        %v668 = vsub.f32 %v664, %v667
        %v669 = vmul.f32 %v668, 1.442695
        %v670 = vpow.pop %v669
        %v671 = vsel %vm639, %v670, 0.0
        %672 = vadd.xlane.f32.xlu0 %v671
        %v673 = vpop.xlane.xlu0 %672
        %v674 = vrcp.pop %v673
        %v675 = vmul.f32 %v670, %v674
        %676 = vrot.lane.b32.xlu0 %v633, 64
        %v677 = vpop.permute.xlu0 %676
        %v680 = vsel %vm639, %v675, 0
        %682 = vmatpush.msra.mxu0 0.0
        %683 = vmatpush.msra.mxu0 0.0
        %684 = vmatpush.msra.mxu0 0.0
        %685 = vmatpush.msra.mxu0 0.0
        %686 = vmatpush.msra.mxu0 0.0
        %687 = vmatpush.msra.mxu0 0.0
        %688 = vmatpush.msra.mxu0 0.0
        %689 = vmatpush.msra.mxu0 0.0
        %690 = vmatpush.msra.mxu0 0.0
        %691 = vmatpush.msra.mxu0 0.0
        %692 = vmatpush.msra.mxu0 0.0
        %693 = vmatpush.msra.mxu0 0.0
        %694 = vmatpush.msra.mxu0 0.0
        %695 = vmatpush.msra.mxu0 0.0
        %696 = vmatpush.msra.mxu0 0.0
        %697 = vmatpush.msra.mxu0 %v677
        %698 = vmatmul.f32.gmra.mxu0 %v680
        %v699 = vpop.f32.mrf.mxu0
        %v700 = vadd.f32 0.0, %v699
        %701 = vdwg.mxu0
        %702 = vst.msk [vmem:[#allocation2] sm:$0xff] %vm639, %v700
        %703 = vrot.lane.b32.xlu0 %v633, 120
        %v704 = vpop.permute.xlu0 %703
        %705 = vrot.lane.b32.xlu0 %v633, 88
        %v706 = vpop.permute.xlu0 %705
        %v707 = vsel %vm639, %v704, 0
        %v709 = vsel %vm639, %v706, 0
        %711 = vmatpush.xpose.msra.mxu0 0.0
        %712 = vmatpush.xpose.msra.mxu0 0.0
        %713 = vmatpush.xpose.msra.mxu0 0.0
        %714 = vmatpush.xpose.msra.mxu0 0.0
        %715 = vmatpush.xpose.msra.mxu0 0.0
        %716 = vmatpush.xpose.msra.mxu0 0.0
        %717 = vmatpush.xpose.msra.mxu0 0.0
        %718 = vmatpush.xpose.msra.mxu0 0.0
        %719 = vmatpush.xpose.msra.mxu0 0.0
        %720 = vmatpush.xpose.msra.mxu0 0.0
        %721 = vmatpush.xpose.msra.mxu0 0.0
        %722 = vmatpush.xpose.msra.mxu0 0.0
        %723 = vmatpush.xpose.msra.mxu0 0.0
        %724 = vmatpush.xpose.msra.mxu0 0.0
        %725 = vmatpush.xpose.msra.mxu0 0.0
        %726 = vmatpush.xpose.msra.mxu0 %v709
        %727 = vmatmul.f32.gmra.mxu0 %v707
        %v728 = vpop.f32.mrf.mxu0
        %v729 = vadd.f32 0.0, %v728
        %730 = vdwg.mxu0
        %v731 = vmul.f32 %v729, 0.35355338
        %v732 = vsel %vm639, %v731, -inf
        %733 = vmax.xlane.f32.xlu0 %v732
        %v734 = vpop.xlane.xlu0 %733
        %v735 = vsub.f32 %v731, %v734
        %v736 = vmul.f32 %v735, 1.442695
        %v737 = vpow.pop %v736
        %v738 = vsel %vm639, %v737, 0.0
        %739 = vadd.xlane.f32.xlu0 %v738
        %v740 = vpop.xlane.xlu0 %739
        %v741 = vrcp.pop %v740
        %v742 = vmul.f32 %v737, %v741
        %743 = vrot.lane.b32.xlu0 %v633, 56
        %v744 = vpop.permute.xlu0 %743
        %v747 = vsel %vm639, %v742, 0
        %749 = vmatpush.msra.mxu0 0.0
        %750 = vmatpush.msra.mxu0 0.0
        %751 = vmatpush.msra.mxu0 0.0
        %752 = vmatpush.msra.mxu0 0.0
        %753 = vmatpush.msra.mxu0 0.0
        %754 = vmatpush.msra.mxu0 0.0
        %755 = vmatpush.msra.mxu0 0.0
        %756 = vmatpush.msra.mxu0 0.0
        %757 = vmatpush.msra.mxu0 0.0
        %758 = vmatpush.msra.mxu0 0.0
        %759 = vmatpush.msra.mxu0 0.0
        %760 = vmatpush.msra.mxu0 0.0
        %761 = vmatpush.msra.mxu0 0.0
        %762 = vmatpush.msra.mxu0 0.0
        %763 = vmatpush.msra.mxu0 0.0
        %764 = vmatpush.msra.mxu0 %v744
        %765 = vmatmul.f32.gmra.mxu0 %v747
        %v766 = vpop.f32.mrf.mxu0
        %v767 = vadd.f32 0.0, %v766
        %768 = vdwg.mxu0
        %770 = vrot.lane.b32.xlu0 %v767, 8
        %v771 = vpop.permute.xlu0 %770
        %vm773 = vcmask 130112
        %774 = vst.msk [vmem:[#allocation2] sm:$0xff] %vm773, %v771
        %775 = vrot.lane.b32.xlu0 %v633, 112
        %v776 = vpop.permute.xlu0 %775
        %777 = vrot.lane.b32.xlu0 %v633, 80
        %v778 = vpop.permute.xlu0 %777
        %v779 = vsel %vm639, %v776, 0
        %v781 = vsel %vm639, %v778, 0
        %783 = vmatpush.xpose.msra.mxu0 0.0
        %784 = vmatpush.xpose.msra.mxu0 0.0
        %785 = vmatpush.xpose.msra.mxu0 0.0
        %786 = vmatpush.xpose.msra.mxu0 0.0
        %787 = vmatpush.xpose.msra.mxu0 0.0
        %788 = vmatpush.xpose.msra.mxu0 0.0
        %789 = vmatpush.xpose.msra.mxu0 0.0
        %790 = vmatpush.xpose.msra.mxu0 0.0
        %791 = vmatpush.xpose.msra.mxu0 0.0
        %792 = vmatpush.xpose.msra.mxu0 0.0
        %793 = vmatpush.xpose.msra.mxu0 0.0
        %794 = vmatpush.xpose.msra.mxu0 0.0
        %795 = vmatpush.xpose.msra.mxu0 0.0
        %796 = vmatpush.xpose.msra.mxu0 0.0
        %797 = vmatpush.xpose.msra.mxu0 0.0
        %798 = vmatpush.xpose.msra.mxu0 %v781
        %799 = vmatmul.f32.gmra.mxu0 %v779
        %v800 = vpop.f32.mrf.mxu0
        %v801 = vadd.f32 0.0, %v800
        %802 = vdwg.mxu0
        %v803 = vmul.f32 %v801, 0.35355338
        %v804 = vsel %vm639, %v803, -inf
        %805 = vmax.xlane.f32.xlu0 %v804
        %v806 = vpop.xlane.xlu0 %805
        %v807 = vsub.f32 %v803, %v806
        %v808 = vmul.f32 %v807, 1.442695
        %v809 = vpow.pop %v808
        %v810 = vsel %vm639, %v809, 0.0
        %811 = vadd.xlane.f32.xlu0 %v810
        %v812 = vpop.xlane.xlu0 %811
        %v813 = vrcp.pop %v812
        %v814 = vmul.f32 %v809, %v813
        %815 = vrot.lane.b32.xlu0 %v633, 48
        %v816 = vpop.permute.xlu0 %815
        %v819 = vsel %vm639, %v814, 0
        %821 = vmatpush.msra.mxu0 0.0
        %822 = vmatpush.msra.mxu0 0.0
        %823 = vmatpush.msra.mxu0 0.0
        %824 = vmatpush.msra.mxu0 0.0
        %825 = vmatpush.msra.mxu0 0.0
        %826 = vmatpush.msra.mxu0 0.0
        %827 = vmatpush.msra.mxu0 0.0
        %828 = vmatpush.msra.mxu0 0.0
        %829 = vmatpush.msra.mxu0 0.0
        %830 = vmatpush.msra.mxu0 0.0
        %831 = vmatpush.msra.mxu0 0.0
        %832 = vmatpush.msra.mxu0 0.0
        %833 = vmatpush.msra.mxu0 0.0
        %834 = vmatpush.msra.mxu0 0.0
        %835 = vmatpush.msra.mxu0 0.0
        %836 = vmatpush.msra.mxu0 %v816
        %837 = vmatmul.f32.gmra.mxu0 %v819
        %v838 = vpop.f32.mrf.mxu0
        %v839 = vadd.f32 0.0, %v838
        %840 = vdwg.mxu0
        %842 = vrot.lane.b32.xlu0 %v839, 16
        %v843 = vpop.permute.xlu0 %842
        %vm845 = vcmask 195712
        %846 = vst.msk [vmem:[#allocation2] sm:$0xff] %vm845, %v843
        %847 = vrot.lane.b32.xlu0 %v633, 104
        %v848 = vpop.permute.xlu0 %847
        %849 = vrot.lane.b32.xlu0 %v633, 72
        %v850 = vpop.permute.xlu0 %849
        %v851 = vsel %vm639, %v848, 0
        %v853 = vsel %vm639, %v850, 0
        %855 = vmatpush.xpose.msra.mxu0 0.0
        %856 = vmatpush.xpose.msra.mxu0 0.0
        %857 = vmatpush.xpose.msra.mxu0 0.0
        %858 = vmatpush.xpose.msra.mxu0 0.0
        %859 = vmatpush.xpose.msra.mxu0 0.0
        %860 = vmatpush.xpose.msra.mxu0 0.0
        %861 = vmatpush.xpose.msra.mxu0 0.0
        %862 = vmatpush.xpose.msra.mxu0 0.0
        %863 = vmatpush.xpose.msra.mxu0 0.0
        %864 = vmatpush.xpose.msra.mxu0 0.0
        %865 = vmatpush.xpose.msra.mxu0 0.0
        %866 = vmatpush.xpose.msra.mxu0 0.0
        %867 = vmatpush.xpose.msra.mxu0 0.0
        %868 = vmatpush.xpose.msra.mxu0 0.0
        %869 = vmatpush.xpose.msra.mxu0 0.0
        %870 = vmatpush.xpose.msra.mxu0 %v853
        %871 = vmatmul.f32.gmra.mxu0 %v851
        %v872 = vpop.f32.mrf.mxu0
        %v873 = vadd.f32 0.0, %v872
        %874 = vdwg.mxu0
        %v875 = vmul.f32 %v873, 0.35355338
        %v876 = vsel %vm639, %v875, -inf
        %877 = vmax.xlane.f32.xlu0 %v876
        %v878 = vpop.xlane.xlu0 %877
        %v879 = vsub.f32 %v875, %v878
        %v880 = vmul.f32 %v879, 1.442695
        %v881 = vpow.pop %v880
        %v882 = vsel %vm639, %v881, 0.0
        %883 = vadd.xlane.f32.xlu0 %v882
        %v884 = vpop.xlane.xlu0 %883
        %v885 = vrcp.pop %v884
        %v886 = vmul.f32 %v881, %v885
        %887 = vrot.lane.b32.xlu0 %v633, 40
        %v888 = vpop.permute.xlu0 %887
        %v891 = vsel %vm639, %v886, 0
        %893 = vmatpush.msra.mxu0 0.0
        %894 = vmatpush.msra.mxu0 0.0
        %895 = vmatpush.msra.mxu0 0.0
        %896 = vmatpush.msra.mxu0 0.0
        %897 = vmatpush.msra.mxu0 0.0
        %898 = vmatpush.msra.mxu0 0.0
        %899 = vmatpush.msra.mxu0 0.0
        %900 = vmatpush.msra.mxu0 0.0
        %901 = vmatpush.msra.mxu0 0.0
        %902 = vmatpush.msra.mxu0 0.0
        %903 = vmatpush.msra.mxu0 0.0
        %904 = vmatpush.msra.mxu0 0.0
        %905 = vmatpush.msra.mxu0 0.0
        %906 = vmatpush.msra.mxu0 0.0
        %907 = vmatpush.msra.mxu0 0.0
        %908 = vmatpush.msra.mxu0 %v888
        %909 = vmatmul.f32.gmra.mxu0 %v891
        %v910 = vpop.f32.mrf.mxu0
        %v911 = vadd.f32 0.0, %v910
        %912 = vdwg.mxu0
        %914 = vrot.lane.b32.xlu0 %v911, 24
        %v915 = vpop.permute.xlu0 %914
        %vm917 = vcmask 261312
        %918 = vst.msk [vmem:[#allocation2] sm:$0xff] %vm917, %v915
        %v919 = vld [vmem:[#allocation2] sm:$0xff]
        %v920 = vld [vmem:[%s4] sm:$0xf]
        %v921 = vld [vmem:[%s4 + $0x4] sm:$0xf]
        %v922 = vld [vmem:[%s4 + $0x8] sm:$0xf]
        %v923 = vld [vmem:[%s4 + $0xc] sm:$0xf]
        %v924 = vpack.c.bf16 %v919, %v919
        %v925 = vld [vmem:[%s5] sm:$0x1]
        %v927 = vperm.slane %v925, 0
        %v933 = vunpack.c.l.b16 %v920
        %v934 = vunpack.c.l.b16 %v921
        %v935 = vunpack.c.l.b16 %v922
        %v936 = vunpack.c.l.b16 %v923
        %v937 = vpack.c.b16 %v934, %v933
        %v938 = vpack.c.b16 %v936, %v935
        %v942 = vsel %vm565, %v924, 0
        %944 = vmatpush.bf16.msra.mxu0 0
        %945 = vmatpush.bf16.msra.mxu0 0
        %946 = vmatpush.bf16.msra.mxu0 0
        %947 = vmatpush.bf16.msra.mxu0 0
        %948 = vmatpush.bf16.msra.mxu0 0
        %949 = vmatpush.bf16.msra.mxu0 0
        %950 = vmatpush.bf16.msra.mxu0 %v938
        %951 = vmatpush.bf16.msra.mxu0 %v937
        %952 = vmatmul.bf16.gmra.mxu0 %v942
        %v953 = vpop.f32.mrf.mxu0
        %v954 = vadd.f32 %v927, %v953
        %v955 = vpop.f32.mrf.mxu0
        %956 = vdwg.mxu0
        %v957 = vadd.f32 %v598, %v954
        %v958 = vld [vmem:[%s6] sm:$0x1]
        %v959 = vld [vmem:[%s7] sm:$0x1]
        %v960 = vsel %vm565, %v957, 0.0
        %961 = vadd.xlane.f32.xlu0 %v960
        %v962 = vpop.xlane.xlu0 %961
        %v963 = vmul.f32 %v962, %v575
        %v964 = vsub.f32 %v957, %v963
        %v965 = vmul.f32 %v964, %v964
        %v966 = vsel %vm565, %v965, 0.0
        %967 = vadd.xlane.f32.xlu0 %v966
        %v968 = vpop.xlane.xlu0 %967
        %v969 = vmul.f32 %v968, %v575
        %v970 = vadd.f32 %v969, 1e-05
        %v971 = vrsqrt.pop %v970
        %v972 = vmul.f32 %v971, %v970
        %v973 = vmul.f32 %v972, %v971
        %v974 = vmul.f32 0.5, %v973
        %v975 = vsub.f32 1.5, %v974
        %v976 = vmul.f32 %v971, %v975
        %vm977 = vweird.f32 %v970
        %vm978 = vweird.f32 %v971
        %vm979 = vmor %vm977, %vm978
        %v980 = vsel %vm979, %v971, %v976
        %v981 = vmul.f32 %v964, %v980
        %v983 = vperm.slane %v958, 0
        %v985 = vmul.f32 %v981, %v983
        %v987 = vperm.slane %v959, 0
        %v989 = vadd.f32 %v985, %v987
        %v990 = vld [vmem:[%s8] sm:$0xf]
        %v991 = vld [vmem:[%s8 + $0x4] sm:$0xf]
        %v992 = vld [vmem:[%s8 + $0x8] sm:$0xf]
        %v993 = vld [vmem:[%s8 + $0xc] sm:$0xf]
        %v994 = vpack.c.bf16 %v989, %v989
        %v995 = vld [vmem:[#allocation3] sm:$0x1]
        %v997 = vperm.slane %v995, 0
        %v1003 = vunpack.c.l.b16 %v990
        %v1004 = vunpack.c.l.b16 %v991
        %v1005 = vunpack.c.l.b16 %v992
        %v1006 = vunpack.c.l.b16 %v993
        %v1007 = vpack.c.b16 %v1004, %v1003
        %v1008 = vpack.c.b16 %v1006, %v1005
        %v1012 = vsel %vm565, %v994, 0
        %1014 = vmatpush.bf16.msra.mxu0 0
        %1015 = vmatpush.bf16.msra.mxu0 0
        %1016 = vmatpush.bf16.msra.mxu0 0
        %1017 = vmatpush.bf16.msra.mxu0 0
        %1018 = vmatpush.bf16.msra.mxu0 0
        %1019 = vmatpush.bf16.msra.mxu0 0
        %1020 = vmatpush.bf16.msra.mxu0 %v1008
        %1021 = vmatpush.bf16.msra.mxu0 %v1007
        %1022 = vmatmul.bf16.gmra.mxu0 %v1012
        %v1023 = vpop.f32.mrf.mxu0
        %v1024 = vadd.f32 %v997, %v1023
        %v1025 = vpop.f32.mrf.mxu0
        %1026 = vdwg.mxu0
        %v1027 = vmax.f32 %v1024, 0.0
        %v1028 = vld [vmem:[%s10] sm:$0xf]
        %v1029 = vld [vmem:[%s10 + $0x4] sm:$0xf]
        %v1030 = vld [vmem:[%s10 + $0x8] sm:$0xf]
        %v1031 = vld [vmem:[%s10 + $0xc] sm:$0xf]
        %v1032 = vld [vmem:[%s10 + $0x10] sm:$0xf]
        %v1033 = vld [vmem:[%s10 + $0x14] sm:$0xf]
        %v1034 = vld [vmem:[%s10 + $0x18] sm:$0xf]
        %v1035 = vld [vmem:[%s10 + $0x1c] sm:$0xf]
        %v1036 = vpack.c.bf16 %v1027, %v1027
        %v1037 = vld [vmem:[%s11] sm:$0x1]
        %v1039 = vperm.slane %v1037, 0
        %v1049 = vunpack.c.l.b16 %v1028
        %v1050 = vunpack.c.l.b16 %v1029
        %v1051 = vunpack.c.l.b16 %v1030
        %v1052 = vunpack.c.l.b16 %v1031
        %v1053 = vunpack.c.l.b16 %v1032
        %v1054 = vunpack.c.l.b16 %v1033
        %v1055 = vunpack.c.l.b16 %v1034
        %v1056 = vunpack.c.l.b16 %v1035
        %v1057 = vpack.c.b16 %v1050, %v1049
        %v1058 = vpack.c.b16 %v1052, %v1051
        %v1059 = vpack.c.b16 %v1054, %v1053
        %v1060 = vpack.c.b16 %v1056, %v1055
        %vm1065 = vcmask 523264
        %v1067 = vsel %vm1065, %v1036, 0
        %1069 = vmatpush.bf16.msra.mxu0 0
        %1070 = vmatpush.bf16.msra.mxu0 0
        %1071 = vmatpush.bf16.msra.mxu0 0
        %1072 = vmatpush.bf16.msra.mxu0 0
        %1073 = vmatpush.bf16.msra.mxu0 %v1060
        %1074 = vmatpush.bf16.msra.mxu0 %v1059
        %1075 = vmatpush.bf16.msra.mxu0 %v1058
        %1076 = vmatpush.bf16.msra.mxu0 %v1057
        %1077 = vmatmul.bf16.gmra.mxu0 %v1067
        %v1078 = vpop.f32.mrf.mxu0
        %v1079 = vadd.f32 %v1039, %v1078
        %v1080 = vpop.f32.mrf.mxu0
        %1081 = vdwg.mxu0
        %v1082 = vadd.f32 %v989, %v1079
        %v1083 = vld [vmem:[%s12] sm:$0x1]
        %v1084 = vld [vmem:[%s13] sm:$0x1]
        %v1085 = vsel %vm565, %v1082, 0.0
        %1086 = vadd.xlane.f32.xlu0 %v1085
        %v1087 = vpop.xlane.xlu0 %1086
        %v1088 = vmul.f32 %v1087, %v575
        %v1089 = vsub.f32 %v1082, %v1088
        %v1090 = vmul.f32 %v1089, %v1089
        %v1091 = vsel %vm565, %v1090, 0.0
        %1092 = vadd.xlane.f32.xlu0 %v1091
        %v1093 = vpop.xlane.xlu0 %1092
        %v1094 = vmul.f32 %v1093, %v575
        %v1095 = vadd.f32 %v1094, 1e-05
        %v1096 = vrsqrt.pop %v1095
        %v1097 = vmul.f32 %v1096, %v1095
        %v1098 = vmul.f32 %v1097, %v1096
        %v1099 = vmul.f32 0.5, %v1098
        %v1100 = vsub.f32 1.5, %v1099
        %v1101 = vmul.f32 %v1096, %v1100
        %vm1102 = vweird.f32 %v1095
        %vm1103 = vweird.f32 %v1096
        %vm1104 = vmor %vm1102, %vm1103
        %v1105 = vsel %vm1104, %v1096, %v1101
        %v1106 = vmul.f32 %v1089, %v1105
        %v1108 = vperm.slane %v1083, 0
        %v1110 = vmul.f32 %v1106, %v1108
        %v1112 = vperm.slane %v1084, 0
        %v1114 = vadd.f32 %v1110, %v1112
        %v1115 = vld [vmem:[#allocation6] sm:$0xf]
        %v1116 = vld [vmem:[#allocation6 + $0x4] sm:$0xf]
        %v1117 = vld [vmem:[#allocation6 + $0x8] sm:$0xf]
        %v1118 = vld [vmem:[#allocation6 + $0xc] sm:$0xf]
        %v1119 = vpack.c.bf16 %v1114, %v1114
        %v1120 = vld [vmem:[#allocation8] sm:$0x1]
        %v1122 = vshrl.u32 %v1119, 16
        %v1124 = vrot.slane %v1122, 3
        %v1129 = vunpack.c.l.b16 %v1115
        %v1130 = vunpack.c.l.b16 %v1116
        %v1131 = vunpack.c.l.b16 %v1117
        %v1132 = vunpack.c.l.b16 %v1118
        %v1133 = vpack.c.b16 %v1130, %v1129
        %v1134 = vpack.c.b16 %v1132, %v1131
        %v1138 = vsel %vm565, %v1124, 0
        %1140 = vmatpush.bf16.msra.mxu0 0
        %1141 = vmatpush.bf16.msra.mxu0 0
        %1142 = vmatpush.bf16.msra.mxu0 0
        %1143 = vmatpush.bf16.msra.mxu0 0
        %1144 = vmatpush.bf16.msra.mxu0 0
        %1145 = vmatpush.bf16.msra.mxu0 0
        %1146 = vmatpush.bf16.msra.mxu0 %v1134
        %1147 = vmatpush.bf16.msra.mxu0 %v1133
        %1148 = vmatmul.bf16.gmra.mxu0 %v1138
        %v1149 = vpop.f32.mrf.mxu0
        %v1150 = vadd.f32 %v1120, %v1149
        %v1151 = vpop.f32.mrf.mxu0
        %1152 = vdwg.mxu0
        %1153 = vst [vmem:[%s557] sm:$0x1] %v1150
        %s1154 = sand.u32 %s381, 1
        %s1155 = scalar_lea.sflag [#allocation5], %s1154
        %s1156 = sand.u32 %s381, 1
        %s1157 = scalar_lea.vmem [#allocation9], %s1156
        // Predicated region
        $region97: #{_lambda_.5} parent=83 // pred_check
          %p1158 = pneg %p391
        $region98: #{_lambda_.5} parent=83 // pred_check_branch
          %1160 = sbr.rel (%p1158) target = $region100
        $region99: #{_lambda_.5} parent=83 // pred_region
          %1162 = vsyncadd %s1155, 0
          %s1163 = scalar_lea.hbm %s16, %s32
          %s1165 = sshll.u32 %s1157, 4
          %s1166 = int_to_ptr.vmem [resolvable:$true] %s1165
          %s1167 = sshll.u32 %s1163, 4
          %s1168 = int_to_ptr.hbm [resolvable:$true] %s1167
          %1170 = dma.vmem_to_hbm [thread:$0]  %s1166, 16, %s1168, %s1155
        $region100: #{_lambda_.5} parent=83 // pred_fallthru
          _
      $region84: #{_lambda_.5} parent=5 // pred_fallthru
        _
      %p1171 = scmp.le.s32.totalorder 2, %s27
      // Predicated region
      $region101: #{_lambda_.5} parent=5 // pred_check
        %p1172 = pneg %p1171
      $region102: #{_lambda_.5} parent=5 // pred_check_branch
        %1174 = sbr.rel (%p1172) target = $region104
      $region103: #{_lambda_.5} parent=5 // pred_region
        %s1175 = ssub.s32 %s27, 2
        // Predicated region
        $region105: #{_lambda_.5} parent=103 // pred_check
          %p1176 = pneg %p397
        $region106: #{_lambda_.5} parent=103 // pred_check_branch
          %1178 = sbr.rel (%p1176) target = $region108
        $region107: #{_lambda_.5} parent=103 // pred_region
          %s1179 = sand.u32 %s382, 1
          %s1180 = scalar_lea.sflag [#allocation5], %s1179
          %s1181 = sand.u32 %s382, 1
          %s1182 = scalar_lea.vmem [#allocation9], %s1181
          %1184 = dma.done %s1180, 16
        $region108: #{_lambda_.5} parent=103 // pred_fallthru
          _
      $region104: #{_lambda_.5} parent=5 // pred_fallthru
        _
    $region6: #{_lambda_.5} parent=1 // loop_footer
      %s31 = sadd.s32 1, %s27
    $region7: #{_lambda_.5} parent=1 // loop_footer_branch
      %26 = sbr.rel target = $region3
    $region8: #{_lambda_.5} parent=1 // loop_exit
      _
    %1185 = vsyncpa [#allocation4], 1
    %s1186 = scalar_lea.sflag [#allocation4], 1
    %1187 = vsyncpa %s1186, 1
    %1188 = vsyncpa [#allocation7], 1
    %1189 = vsyncpa [#allocation5], 1
    %s1190 = scalar_lea.sflag [#allocation5], 1
    %1191 = vsyncpa %s1190, 1

// kernel: _lambda_.3
$region0: #{_lambda_.3}
  #allocation0 [shape = 'u32[]', space=smem, size = 0x4, offset = 0x4, fixed_abs, tag = 'smem constant byte address 0x4 - core index']
  #allocation1 [shape = 'u32[72,128]{1,0:T(1,128)}', space=vmem, size = 0x9000, scoped, tag = 'internal scratch']
  #allocation2 [shape = 'f32[8,64]{1,0:T(8,128)}', space=vmem, size = 0x1000, scoped, tag = 'scratch operand']
  #allocation3 [shape = 'f32[8,64]{1,0:T(8,128)}', space=vmem, size = 0x1000, scoped, tag = 'scratch operand']
  %s0 = inlined_call_operand.vmem [shape: f32[2,8,4], index: 0, kind: input, shape index: {}]
  %s1 = inlined_call_operand.vmem [shape: bf16[4,32], index: 1, kind: input, shape index: {}]
  %s2 = inlined_call_operand.vmem [shape: f32[1,32], index: 2, kind: input, shape index: {}]
  %s3 = inlined_call_operand.hbm [shape: f32[1,32], index: 3, kind: input, shape index: {}]
  %s4 = inlined_call_operand.hbm [shape: bf16[32,128], index: 4, kind: input, shape index: {}]
  %s5 = inlined_call_operand.hbm [shape: f32[4,64], index: 5, kind: input, shape index: {}]
  %s6 = inlined_call_operand.hbm [shape: f32[1,64], index: 6, kind: input, shape index: {}]
  %s7 = inlined_call_operand.hbm [shape: bf16[64,136], index: 7, kind: input, shape index: {}]
  %s8 = inlined_call_operand.vmem [shape: bf16[64,72], index: 8, kind: input, shape index: {}]
  %s9 = inlined_call_operand.hbm [shape: f32[1,8], index: 9, kind: input, shape index: {}]
  %s10 = inlined_call_operand.hbm [shape: f32[1,64], index: 10, kind: input, shape index: {}]
  %s11 = inlined_call_operand.hbm [shape: f32[1,64], index: 11, kind: input, shape index: {}]
  %s12 = inlined_call_operand.vmem [shape: bf16[64,32], index: 12, kind: input, shape index: {}]
  %s13 = inlined_call_operand.vmem [shape: f32[2,8,32], index: 13, kind: output, shape index: {}]
  %s14 = sld [smem:[#allocation0]]
  $region117: #{_lambda_.3} parent=0
    _
  %s16 = ssub.s32 1, %s14
  %s17 = scalar_select 0, %s16, %s14
  $region1: #{_lambda_.3} parent=0
    #allocation4 [shape = 'u8[512]{0}', space=vmem, size = 0x400, scoped, tag = 'input window, operand 3, single buffered']
    #allocation5 [shape = 's32[2]{0}', space=sflag, size = 0x8, scoped, tag = 'scoped memory for _lambda_.3']
    #allocation6 [shape = 'u8[8192]{0}', space=vmem, size = 0x2000, scoped, tag = 'input window, operand 4, single buffered']
    #allocation7 [shape = 's32[1]{0}', space=sflag, size = 0x4, scoped, tag = 'scoped memory for _lambda_.3']
    #allocation8 [shape = 'u8[2048]{0}', space=vmem, size = 0x800, scoped, tag = 'input window, operand 5, single buffered']
    #allocation9 [shape = 'u8[512]{0}', space=vmem, size = 0x400, scoped, tag = 'input window, operand 6, single buffered']
    #allocation10 [shape = 's32[1]{0}', space=sflag, size = 0x4, scoped, tag = 'scoped memory for _lambda_.3']
    #allocation11 [shape = 'u8[32768]{0}', space=vmem, size = 0x8000, scoped, tag = 'input window, operand 7, single buffered']
    #allocation12 [shape = 'u8[512]{0}', space=vmem, size = 0x400, scoped, tag = 'input window, operand 9, single buffered']
    #allocation13 [shape = 's32[1]{0}', space=sflag, size = 0x4, scoped, tag = 'scoped memory for _lambda_.3']
    #allocation14 [shape = 'u8[512]{0}', space=vmem, size = 0x400, scoped, tag = 'input window, operand 10, single buffered']
    #allocation15 [shape = 'u8[512]{0}', space=vmem, size = 0x400, scoped, tag = 'input window, operand 11, single buffered']
    #allocation16 [shape = 's32[1]{0}', space=sflag, size = 0x4, scoped, tag = 'scoped memory for _lambda_.3']
    %18 = vsyncpa [#allocation5], 0
    %19 = vsyncpa [#allocation7], 0
    %20 = vsyncpa [#allocation10], 0
    %21 = vsyncpa [#allocation13], 0
    %22 = vsyncpa [#allocation16], 0
    loop: start=0, step=1, limit=4
    $region2: #{_lambda_.3} parent=1 // loop_pre_header
      _
    $region3: #{_lambda_.3} parent=1 // loop_header
      %s24 = sphi 0, %s28
      %p25 = scmp.ge.s32.totalorder %s24, 4
      %s34 = sphi 0, %s36
      %s37 = sphi 0, %s34
      %s38 = sphi 0, %s37
      %s54 = sphi 0, %s38
      %s58 = sphi 0, %s58
      %s60 = sphi 0, %s58
      %s61 = sphi 0, %s60
      %s75 = sphi 0, %s61
      %s79 = sphi 0, %s79
      %s81 = sphi 0, %s79
      %s82 = sphi 0, %s81
      %s96 = sphi 0, %s82
      %s100 = sphi 0, %s100
      %s102 = sphi 0, %s100
      %s103 = sphi 0, %s102
      %s117 = sphi 0, %s103
      %s121 = sphi 0, %s121
      %s123 = sphi 0, %s121
      %s124 = sphi 0, %s123
      %s138 = sphi 0, %s124
      %s142 = sphi 0, %s142
      %s144 = sphi 0, %s142
      %s145 = sphi 0, %s144
      %s159 = sphi 0, %s145
      %s163 = sphi 0, %s163
      %s165 = sphi 0, %s163
      %s166 = sphi 0, %s165
      %s180 = sphi 0, %s166
      %s184 = sphi 0, %s184
      %s186 = sphi 0, %s184
      %s187 = sphi 0, %s186
      %s201 = sphi 0, %s187
      %s205 = sphi 0, %s205
      %s207 = sphi 0, %s205
      %s208 = sphi 0, %s207
      %s222 = sphi 0, %s208
      %s226 = sphi 0, %s226
      %s228 = sphi 0, %s226
      %s229 = sphi 0, %s228
      %s243 = sphi 0, %s229
      %s247 = sphi 0, %s247
      %s249 = sphi 0, %s247
      %s250 = sphi 0, %s249
      %s264 = sphi 0, %s250
      %s268 = sphi 0, %s268
      %s270 = sphi 0, %s268
      %s271 = sphi 0, %s270
      %s285 = sphi 0, %s271
      %s289 = sphi 0, %s289
      %s291 = sphi 0, %s289
      %s292 = sphi 0, %s291
      %s306 = sphi 0, %s292
      %s312 = sphi 0, %s314
      %s315 = sphi 0, %s312
      %s316 = sphi 0, %s315
      %s332 = sphi 0, %s316
    $region4: #{_lambda_.3} parent=1 // loop_header_branch
      %27 = sbr.rel (%p25) target = $region8
    $region5: #{_lambda_.3} parent=1 // loop_body
      %s29 = ssub.s32 %s24, 1
      %s30 = ssub.s32 %s24, 2
      %s31 = sadd.s32 %s24, 1
      %s32 = ssub.s32 %s24, %s31
      %p33 = scmp.eq.s32.totalorder %s32, 0
      %s35 = sadd.s32 %s34, 1
      %s36 = scalar_select %p33, %s34, %s35
      %p39 = pneg %p33
      %p40 = scmp.eq.s32.totalorder %s24, 1
      %p41 = por %p39, %p40
      %p42 = scmp.ne.s32.totalorder %s34, %s37
      %p43 = scmp.eq.s32.totalorder %s24, 0
      %p44 = por %p42, %p43
      %p45 = scmp.ne.s32.totalorder %s34, %s37
      %p46 = scmp.eq.s32.totalorder %s29, 1
      %p47 = por %p45, %p46
      %p48 = scmp.ne.s32.totalorder %s37, %s38
      %p49 = scmp.eq.s32.totalorder %s29, 0
      %p50 = por %p48, %p49
      %p51 = scmp.ne.s32.totalorder %s37, %s38
      %p52 = scmp.eq.s32.totalorder %s30, 1
      %p53 = por %p51, %p52
      %p55 = scmp.ne.s32.totalorder %s38, %s54
      %p56 = scmp.eq.s32.totalorder %s30, 0
      %p57 = por %p55, %p56
      %s59 = sadd.s32 %s58, 1
      %p62 = scmp.eq.s32.totalorder %s24, 1
      %p63 = scmp.ne.s32.totalorder %s58, %s60
      %p64 = scmp.eq.s32.totalorder %s24, 0
      %p65 = por %p63, %p64
      %p66 = scmp.ne.s32.totalorder %s58, %s60
      %p67 = scmp.eq.s32.totalorder %s29, 1
      %p68 = por %p66, %p67
      %p69 = scmp.ne.s32.totalorder %s60, %s61
      %p70 = scmp.eq.s32.totalorder %s29, 0
      %p71 = por %p69, %p70
      %p72 = scmp.ne.s32.totalorder %s60, %s61
      %p73 = scmp.eq.s32.totalorder %s30, 1
      %p74 = por %p72, %p73
      %p76 = scmp.ne.s32.totalorder %s61, %s75
      %p77 = scmp.eq.s32.totalorder %s30, 0
      %p78 = por %p76, %p77
      %s80 = sadd.s32 %s79, 1
      %p83 = scmp.eq.s32.totalorder %s24, 1
      %p84 = scmp.ne.s32.totalorder %s79, %s81
      %p85 = scmp.eq.s32.totalorder %s24, 0
      %p86 = por %p84, %p85
      %p87 = scmp.ne.s32.totalorder %s79, %s81
      %p88 = scmp.eq.s32.totalorder %s29, 1
      %p89 = por %p87, %p88
      %p90 = scmp.ne.s32.totalorder %s81, %s82
      %p91 = scmp.eq.s32.totalorder %s29, 0
      %p92 = por %p90, %p91
      %p93 = scmp.ne.s32.totalorder %s81, %s82
      %p94 = scmp.eq.s32.totalorder %s30, 1
      %p95 = por %p93, %p94
      %p97 = scmp.ne.s32.totalorder %s82, %s96
      %p98 = scmp.eq.s32.totalorder %s30, 0
      %p99 = por %p97, %p98
      %s101 = sadd.s32 %s100, 1
      %p104 = scmp.eq.s32.totalorder %s24, 1
      %p105 = scmp.ne.s32.totalorder %s100, %s102
      %p106 = scmp.eq.s32.totalorder %s24, 0
      %p107 = por %p105, %p106
      %p108 = scmp.ne.s32.totalorder %s100, %s102
      %p109 = scmp.eq.s32.totalorder %s29, 1
      %p110 = por %p108, %p109
      %p111 = scmp.ne.s32.totalorder %s102, %s103
      %p112 = scmp.eq.s32.totalorder %s29, 0
      %p113 = por %p111, %p112
      %p114 = scmp.ne.s32.totalorder %s102, %s103
      %p115 = scmp.eq.s32.totalorder %s30, 1
      %p116 = por %p114, %p115
      %p118 = scmp.ne.s32.totalorder %s103, %s117
      %p119 = scmp.eq.s32.totalorder %s30, 0
      %p120 = por %p118, %p119
      %s122 = sadd.s32 %s121, 1
      %p125 = scmp.eq.s32.totalorder %s24, 1
      %p126 = scmp.ne.s32.totalorder %s121, %s123
      %p127 = scmp.eq.s32.totalorder %s24, 0
      %p128 = por %p126, %p127
      %p129 = scmp.ne.s32.totalorder %s121, %s123
      %p130 = scmp.eq.s32.totalorder %s29, 1
      %p131 = por %p129, %p130
      %p132 = scmp.ne.s32.totalorder %s123, %s124
      %p133 = scmp.eq.s32.totalorder %s29, 0
      %p134 = por %p132, %p133
      %p135 = scmp.ne.s32.totalorder %s123, %s124
      %p136 = scmp.eq.s32.totalorder %s30, 1
      %p137 = por %p135, %p136
      %p139 = scmp.ne.s32.totalorder %s124, %s138
      %p140 = scmp.eq.s32.totalorder %s30, 0
      %p141 = por %p139, %p140
      %s143 = sadd.s32 %s142, 1
      %p146 = scmp.eq.s32.totalorder %s24, 1
      %p147 = scmp.ne.s32.totalorder %s142, %s144
      %p148 = scmp.eq.s32.totalorder %s24, 0
      %p149 = por %p147, %p148
      %p150 = scmp.ne.s32.totalorder %s142, %s144
      %p151 = scmp.eq.s32.totalorder %s29, 1
      %p152 = por %p150, %p151
      %p153 = scmp.ne.s32.totalorder %s144, %s145
      %p154 = scmp.eq.s32.totalorder %s29, 0
      %p155 = por %p153, %p154
      %p156 = scmp.ne.s32.totalorder %s144, %s145
      %p157 = scmp.eq.s32.totalorder %s30, 1
      %p158 = por %p156, %p157
      %p160 = scmp.ne.s32.totalorder %s145, %s159
      %p161 = scmp.eq.s32.totalorder %s30, 0
      %p162 = por %p160, %p161
      %s164 = sadd.s32 %s163, 1
      %p167 = scmp.eq.s32.totalorder %s24, 1
      %p168 = scmp.ne.s32.totalorder %s163, %s165
      %p169 = scmp.eq.s32.totalorder %s24, 0
      %p170 = por %p168, %p169
      %p171 = scmp.ne.s32.totalorder %s163, %s165
      %p172 = scmp.eq.s32.totalorder %s29, 1
      %p173 = por %p171, %p172
      %p174 = scmp.ne.s32.totalorder %s165, %s166
      %p175 = scmp.eq.s32.totalorder %s29, 0
      %p176 = por %p174, %p175
      %p177 = scmp.ne.s32.totalorder %s165, %s166
      %p178 = scmp.eq.s32.totalorder %s30, 1
      %p179 = por %p177, %p178
      %p181 = scmp.ne.s32.totalorder %s166, %s180
      %p182 = scmp.eq.s32.totalorder %s30, 0
      %p183 = por %p181, %p182
      %s185 = sadd.s32 %s184, 1
      %p188 = scmp.eq.s32.totalorder %s24, 1
      %p189 = scmp.ne.s32.totalorder %s184, %s186
      %p190 = scmp.eq.s32.totalorder %s24, 0
      %p191 = por %p189, %p190
      %p192 = scmp.ne.s32.totalorder %s184, %s186
      %p193 = scmp.eq.s32.totalorder %s29, 1
      %p194 = por %p192, %p193
      %p195 = scmp.ne.s32.totalorder %s186, %s187
      %p196 = scmp.eq.s32.totalorder %s29, 0
      %p197 = por %p195, %p196
      %p198 = scmp.ne.s32.totalorder %s186, %s187
      %p199 = scmp.eq.s32.totalorder %s30, 1
      %p200 = por %p198, %p199
      %p202 = scmp.ne.s32.totalorder %s187, %s201
      %p203 = scmp.eq.s32.totalorder %s30, 0
      %p204 = por %p202, %p203
      %s206 = sadd.s32 %s205, 1
      %p209 = scmp.eq.s32.totalorder %s24, 1
      %p210 = scmp.ne.s32.totalorder %s205, %s207
      %p211 = scmp.eq.s32.totalorder %s24, 0
      %p212 = por %p210, %p211
      %p213 = scmp.ne.s32.totalorder %s205, %s207
      %p214 = scmp.eq.s32.totalorder %s29, 1
      %p215 = por %p213, %p214
      %p216 = scmp.ne.s32.totalorder %s207, %s208
      %p217 = scmp.eq.s32.totalorder %s29, 0
      %p218 = por %p216, %p217
      %p219 = scmp.ne.s32.totalorder %s207, %s208
      %p220 = scmp.eq.s32.totalorder %s30, 1
      %p221 = por %p219, %p220
      %p223 = scmp.ne.s32.totalorder %s208, %s222
      %p224 = scmp.eq.s32.totalorder %s30, 0
      %p225 = por %p223, %p224
      %s227 = sadd.s32 %s226, 1
      %p230 = scmp.eq.s32.totalorder %s24, 1
      %p231 = scmp.ne.s32.totalorder %s226, %s228
      %p232 = scmp.eq.s32.totalorder %s24, 0
      %p233 = por %p231, %p232
      %p234 = scmp.ne.s32.totalorder %s226, %s228
      %p235 = scmp.eq.s32.totalorder %s29, 1
      %p236 = por %p234, %p235
      %p237 = scmp.ne.s32.totalorder %s228, %s229
      %p238 = scmp.eq.s32.totalorder %s29, 0
      %p239 = por %p237, %p238
      %p240 = scmp.ne.s32.totalorder %s228, %s229
      %p241 = scmp.eq.s32.totalorder %s30, 1
      %p242 = por %p240, %p241
      %p244 = scmp.ne.s32.totalorder %s229, %s243
      %p245 = scmp.eq.s32.totalorder %s30, 0
      %p246 = por %p244, %p245
      %s248 = sadd.s32 %s247, 1
      %p251 = scmp.eq.s32.totalorder %s24, 1
      %p252 = scmp.ne.s32.totalorder %s247, %s249
      %p253 = scmp.eq.s32.totalorder %s24, 0
      %p254 = por %p252, %p253
      %p255 = scmp.ne.s32.totalorder %s247, %s249
      %p256 = scmp.eq.s32.totalorder %s29, 1
      %p257 = por %p255, %p256
      %p258 = scmp.ne.s32.totalorder %s249, %s250
      %p259 = scmp.eq.s32.totalorder %s29, 0
      %p260 = por %p258, %p259
      %p261 = scmp.ne.s32.totalorder %s249, %s250
      %p262 = scmp.eq.s32.totalorder %s30, 1
      %p263 = por %p261, %p262
      %p265 = scmp.ne.s32.totalorder %s250, %s264
      %p266 = scmp.eq.s32.totalorder %s30, 0
      %p267 = por %p265, %p266
      %s269 = sadd.s32 %s268, 1
      %p272 = scmp.eq.s32.totalorder %s24, 1
      %p273 = scmp.ne.s32.totalorder %s268, %s270
      %p274 = scmp.eq.s32.totalorder %s24, 0
      %p275 = por %p273, %p274
      %p276 = scmp.ne.s32.totalorder %s268, %s270
      %p277 = scmp.eq.s32.totalorder %s29, 1
      %p278 = por %p276, %p277
      %p279 = scmp.ne.s32.totalorder %s270, %s271
      %p280 = scmp.eq.s32.totalorder %s29, 0
      %p281 = por %p279, %p280
      %p282 = scmp.ne.s32.totalorder %s270, %s271
      %p283 = scmp.eq.s32.totalorder %s30, 1
      %p284 = por %p282, %p283
      %p286 = scmp.ne.s32.totalorder %s271, %s285
      %p287 = scmp.eq.s32.totalorder %s30, 0
      %p288 = por %p286, %p287
      %s290 = sadd.s32 %s289, 1
      %p293 = scmp.eq.s32.totalorder %s24, 1
      %p294 = scmp.ne.s32.totalorder %s289, %s291
      %p295 = scmp.eq.s32.totalorder %s24, 0
      %p296 = por %p294, %p295
      %p297 = scmp.ne.s32.totalorder %s289, %s291
      %p298 = scmp.eq.s32.totalorder %s29, 1
      %p299 = por %p297, %p298
      %p300 = scmp.ne.s32.totalorder %s291, %s292
      %p301 = scmp.eq.s32.totalorder %s29, 0
      %p302 = por %p300, %p301
      %p303 = scmp.ne.s32.totalorder %s291, %s292
      %p304 = scmp.eq.s32.totalorder %s30, 1
      %p305 = por %p303, %p304
      %p307 = scmp.ne.s32.totalorder %s292, %s306
      %p308 = scmp.eq.s32.totalorder %s30, 0
      %p309 = por %p307, %p308
      %s310 = ssub.s32 %s24, %s31
      %p311 = scmp.eq.s32.totalorder %s310, 0
      %s313 = sadd.s32 %s312, 1
      %s314 = scalar_select %p311, %s312, %s313
      %p317 = pneg %p311
      %p318 = scmp.eq.s32.totalorder %s24, 1
      %p319 = por %p317, %p318
      %p320 = scmp.ne.s32.totalorder %s312, %s315
      %p321 = scmp.eq.s32.totalorder %s24, 0
      %p322 = por %p320, %p321
      %p323 = scmp.ne.s32.totalorder %s312, %s315
      %p324 = scmp.eq.s32.totalorder %s29, 1
      %p325 = por %p323, %p324
      %p326 = scmp.ne.s32.totalorder %s315, %s316
      %p327 = scmp.eq.s32.totalorder %s29, 0
      %p328 = por %p326, %p327
      %p329 = scmp.ne.s32.totalorder %s315, %s316
      %p330 = scmp.eq.s32.totalorder %s30, 1
      %p331 = por %p329, %p330
      %p333 = scmp.ne.s32.totalorder %s316, %s332
      %p334 = scmp.eq.s32.totalorder %s30, 0
      %p335 = por %p333, %p334
      %p336 = scmp.le.s32.totalorder 1, %s24
      %p337 = scmp.lt.s32.totalorder %s24, 3
      %p338 = pnand %p336, %p337
      %p339 = pneg %p338
      // Predicated region
      $region9: #{_lambda_.3} parent=5 // pred_check
        _
      $region10: #{_lambda_.3} parent=5 // pred_check_branch
        %341 = sbr.rel (%p338) target = $region12
      $region11: #{_lambda_.3} parent=5 // pred_region
        %s342 = ssub.s32 %s24, 1
        // Predicated region
        $region13: #{_lambda_.3} parent=11 // pred_check
          %p343 = pneg %p71
        $region14: #{_lambda_.3} parent=11 // pred_check_branch
          %345 = sbr.rel (%p343) target = $region16
        $region15: #{_lambda_.3} parent=11 // pred_region
          _
        $region16: #{_lambda_.3} parent=11 // pred_fallthru
          _
        // Predicated region
        $region17: #{_lambda_.3} parent=11 // pred_check
          %p346 = pneg %p92
        $region18: #{_lambda_.3} parent=11 // pred_check_branch
          %348 = sbr.rel (%p346) target = $region20
        $region19: #{_lambda_.3} parent=11 // pred_region
          _
        $region20: #{_lambda_.3} parent=11 // pred_fallthru
          _
        // Predicated region
        $region21: #{_lambda_.3} parent=11 // pred_check
          %p349 = pneg %p113
        $region22: #{_lambda_.3} parent=11 // pred_check_branch
          %351 = sbr.rel (%p349) target = $region24
        $region23: #{_lambda_.3} parent=11 // pred_region
          %353 = vsyncadd [#allocation5], 0
          %s355 = sshll.u32 %s3, 4
          %s356 = int_to_ptr.hbm [resolvable:$true] %s355
          %s357 = sshll.u32 [#allocation4], 4
          %s358 = int_to_ptr.vmem [resolvable:$true] %s357
          %360 = dma.hbm_to_vmem [thread:$0]  %s356, 16, %s358, [#allocation5]
        $region24: #{_lambda_.3} parent=11 // pred_fallthru
          _
        // Predicated region
        $region25: #{_lambda_.3} parent=11 // pred_check
          %p361 = pneg %p134
        $region26: #{_lambda_.3} parent=11 // pred_check_branch
          %363 = sbr.rel (%p361) target = $region28
        $region27: #{_lambda_.3} parent=11 // pred_region
          %365 = vsyncadd [#allocation7], 0
          %s366 = sshll.u32 %s4, 4
          %s367 = int_to_ptr.hbm [resolvable:$true] %s366
          %s368 = sshll.u32 [#allocation6], 4
          %s369 = int_to_ptr.vmem [resolvable:$true] %s368
          %374 = dma.hbm_to_vmem [thread:$0]  %s367, 256, %s369, [#allocation7], 64, 64, 4
        $region28: #{_lambda_.3} parent=11 // pred_fallthru
          _
        // Predicated region
        $region29: #{_lambda_.3} parent=11 // pred_check
          %p375 = pneg %p155
        $region30: #{_lambda_.3} parent=11 // pred_check_branch
          %377 = sbr.rel (%p375) target = $region32
        $region31: #{_lambda_.3} parent=11 // pred_region
          %379 = vsyncadd [#allocation7], 0
          %s381 = sshll.u32 %s5, 4
          %s382 = int_to_ptr.hbm [resolvable:$true] %s381
          %s383 = sshll.u32 [#allocation8], 4
          %s384 = int_to_ptr.vmem [resolvable:$true] %s383
          %386 = dma.hbm_to_vmem [thread:$0]  %s382, 64, %s384, [#allocation7]
        $region32: #{_lambda_.3} parent=11 // pred_fallthru
          _
        // Predicated region
        $region33: #{_lambda_.3} parent=11 // pred_check
          %p387 = pneg %p176
        $region34: #{_lambda_.3} parent=11 // pred_check_branch
          %389 = sbr.rel (%p387) target = $region36
        $region35: #{_lambda_.3} parent=11 // pred_region
          %391 = vsyncadd [#allocation10], 0
          %s393 = sshll.u32 %s6, 4
          %s394 = int_to_ptr.hbm [resolvable:$true] %s393
          %s395 = sshll.u32 [#allocation9], 4
          %s396 = int_to_ptr.vmem [resolvable:$true] %s395
          %398 = dma.hbm_to_vmem [thread:$0]  %s394, 16, %s396, [#allocation10]
        $region36: #{_lambda_.3} parent=11 // pred_fallthru
          _
        // Predicated region
        $region37: #{_lambda_.3} parent=11 // pred_check
          %p399 = pneg %p197
        $region38: #{_lambda_.3} parent=11 // pred_check_branch
          %401 = sbr.rel (%p399) target = $region40
        $region39: #{_lambda_.3} parent=11 // pred_region
          %403 = vsyncadd [#allocation10], 0
          %s404 = sshll.u32 %s7, 4
          %s405 = int_to_ptr.hbm [resolvable:$true] %s404
          %s406 = sshll.u32 [#allocation11], 4
          %s407 = int_to_ptr.vmem [resolvable:$true] %s406
          %412 = dma.hbm_to_vmem [thread:$0]  %s405, 1024, %s407, [#allocation10], 128, 128, 8
        $region40: #{_lambda_.3} parent=11 // pred_fallthru
          _
        // Predicated region
        $region41: #{_lambda_.3} parent=11 // pred_check
          %p413 = pneg %p218
        $region42: #{_lambda_.3} parent=11 // pred_check_branch
          %415 = sbr.rel (%p413) target = $region44
        $region43: #{_lambda_.3} parent=11 // pred_region
          _
        $region44: #{_lambda_.3} parent=11 // pred_fallthru
          _
        // Predicated region
        $region45: #{_lambda_.3} parent=11 // pred_check
          %p416 = pneg %p239
        $region46: #{_lambda_.3} parent=11 // pred_check_branch
          %418 = sbr.rel (%p416) target = $region48
        $region47: #{_lambda_.3} parent=11 // pred_region
          %420 = vsyncadd [#allocation13], 0
          %s422 = sshll.u32 %s9, 4
          %s423 = int_to_ptr.hbm [resolvable:$true] %s422
          %s424 = sshll.u32 [#allocation12], 4
          %s425 = int_to_ptr.vmem [resolvable:$true] %s424
          %427 = dma.hbm_to_vmem [thread:$0]  %s423, 16, %s425, [#allocation13]
        $region48: #{_lambda_.3} parent=11 // pred_fallthru
          _
        // Predicated region
        $region49: #{_lambda_.3} parent=11 // pred_check
          %p428 = pneg %p260
        $region50: #{_lambda_.3} parent=11 // pred_check_branch
          %430 = sbr.rel (%p428) target = $region52
        $region51: #{_lambda_.3} parent=11 // pred_region
          %432 = vsyncadd [#allocation13], 0
          %s434 = sshll.u32 %s10, 4
          %s435 = int_to_ptr.hbm [resolvable:$true] %s434
          %s436 = sshll.u32 [#allocation14], 4
          %s437 = int_to_ptr.vmem [resolvable:$true] %s436
          %439 = dma.hbm_to_vmem [thread:$0]  %s435, 16, %s437, [#allocation13]
        $region52: #{_lambda_.3} parent=11 // pred_fallthru
          _
        // Predicated region
        $region53: #{_lambda_.3} parent=11 // pred_check
          %p440 = pneg %p281
        $region54: #{_lambda_.3} parent=11 // pred_check_branch
          %442 = sbr.rel (%p440) target = $region56
        $region55: #{_lambda_.3} parent=11 // pred_region
          %444 = vsyncadd [#allocation16], 0
          %s446 = sshll.u32 %s11, 4
          %s447 = int_to_ptr.hbm [resolvable:$true] %s446
          %s448 = sshll.u32 [#allocation15], 4
          %s449 = int_to_ptr.vmem [resolvable:$true] %s448
          %451 = dma.hbm_to_vmem [thread:$0]  %s447, 16, %s449, [#allocation16]
        $region56: #{_lambda_.3} parent=11 // pred_fallthru
          _
        // Predicated region
        $region57: #{_lambda_.3} parent=11 // pred_check
          %p452 = pneg %p302
        $region58: #{_lambda_.3} parent=11 // pred_check_branch
          %454 = sbr.rel (%p452) target = $region60
        $region59: #{_lambda_.3} parent=11 // pred_region
          _
        $region60: #{_lambda_.3} parent=11 // pred_fallthru
          _
      $region12: #{_lambda_.3} parent=5 // pred_fallthru
        _
      %p455 = scmp.lt.s32.totalorder %s24, 2
      // Predicated region
      $region61: #{_lambda_.3} parent=5 // pred_check
        %p456 = pneg %p455
      $region62: #{_lambda_.3} parent=5 // pred_check_branch
        %458 = sbr.rel (%p456) target = $region64
      $region63: #{_lambda_.3} parent=5 // pred_region
        // Predicated region
        $region65: #{_lambda_.3} parent=63 // pred_check
          %p459 = pneg %p44
        $region66: #{_lambda_.3} parent=63 // pred_check_branch
          %461 = sbr.rel (%p459) target = $region68
        $region67: #{_lambda_.3} parent=63 // pred_region
          %p462 = scmp.lt.s32.totalorder %s24, 1
          %s463 = scalar_select %p462, %s24, 1
          %s464 = smul.addr %s463, 8
          %s465 = scalar_lea.vmem %s0, %s464
        $region68: #{_lambda_.3} parent=63 // pred_fallthru
          _
      $region64: #{_lambda_.3} parent=5 // pred_fallthru
        _
      %p466 = scmp.le.s32.totalorder 1, %s24
      %p467 = scmp.lt.s32.totalorder %s24, 3
      %p468 = pnand %p466, %p467
      %p469 = pneg %p468
      // Predicated region
      $region69: #{_lambda_.3} parent=5 // pred_check
        _
      $region70: #{_lambda_.3} parent=5 // pred_check_branch
        %471 = sbr.rel (%p468) target = $region72
      $region71: #{_lambda_.3} parent=5 // pred_region
        %s472 = ssub.s32 %s24, 1
        // Predicated region
        $region73: #{_lambda_.3} parent=71 // pred_check
          %p473 = pneg %p113
        $region74: #{_lambda_.3} parent=71 // pred_check_branch
          %475 = sbr.rel (%p473) target = $region76
        $region75: #{_lambda_.3} parent=71 // pred_region
          %477 = dma.done [#allocation5], 16
        $region76: #{_lambda_.3} parent=71 // pred_fallthru
          _
        // Predicated region
        $region77: #{_lambda_.3} parent=71 // pred_check
          %p478 = pneg %p134
        $region78: #{_lambda_.3} parent=71 // pred_check_branch
          %480 = sbr.rel (%p478) target = $region80
        $region79: #{_lambda_.3} parent=71 // pred_region
          %482 = dma.done [#allocation7], 256
        $region80: #{_lambda_.3} parent=71 // pred_fallthru
          _
        // Predicated region
        $region81: #{_lambda_.3} parent=71 // pred_check
          %p483 = pneg %p155
        $region82: #{_lambda_.3} parent=71 // pred_check_branch
          %485 = sbr.rel (%p483) target = $region84
        $region83: #{_lambda_.3} parent=71 // pred_region
          %487 = dma.done [#allocation7], 64
        $region84: #{_lambda_.3} parent=71 // pred_fallthru
          _
        // Predicated region
        $region85: #{_lambda_.3} parent=71 // pred_check
          %p488 = pneg %p176
        $region86: #{_lambda_.3} parent=71 // pred_check_branch
          %490 = sbr.rel (%p488) target = $region88
        $region87: #{_lambda_.3} parent=71 // pred_region
          %492 = dma.done [#allocation10], 16
        $region88: #{_lambda_.3} parent=71 // pred_fallthru
          _
        // Predicated region
        $region89: #{_lambda_.3} parent=71 // pred_check
          %p493 = pneg %p197
        $region90: #{_lambda_.3} parent=71 // pred_check_branch
          %495 = sbr.rel (%p493) target = $region92
        $region91: #{_lambda_.3} parent=71 // pred_region
          %497 = dma.done [#allocation10], 1024
        $region92: #{_lambda_.3} parent=71 // pred_fallthru
          _
        // Predicated region
        $region93: #{_lambda_.3} parent=71 // pred_check
          %p498 = pneg %p239
        $region94: #{_lambda_.3} parent=71 // pred_check_branch
          %500 = sbr.rel (%p498) target = $region96
        $region95: #{_lambda_.3} parent=71 // pred_region
          %502 = dma.done [#allocation13], 16
        $region96: #{_lambda_.3} parent=71 // pred_fallthru
          _
        // Predicated region
        $region97: #{_lambda_.3} parent=71 // pred_check
          %p503 = pneg %p260
        $region98: #{_lambda_.3} parent=71 // pred_check_branch
          %505 = sbr.rel (%p503) target = $region100
        $region99: #{_lambda_.3} parent=71 // pred_region
          %507 = dma.done [#allocation13], 16
        $region100: #{_lambda_.3} parent=71 // pred_fallthru
          _
        // Predicated region
        $region101: #{_lambda_.3} parent=71 // pred_check
          %p508 = pneg %p281
        $region102: #{_lambda_.3} parent=71 // pred_check_branch
          %510 = sbr.rel (%p508) target = $region104
        $region103: #{_lambda_.3} parent=71 // pred_region
          %512 = dma.done [#allocation16], 16
        $region104: #{_lambda_.3} parent=71 // pred_fallthru
          _
        %p513 = scmp.lt.s32.totalorder %s29, 1
        %s514 = scalar_select %p513, %s29, 1
        %s515 = smul.addr %s514, 8
        %s516 = scalar_lea.vmem %s0, %s515
        %p517 = pneg %p50
        %p518 = pneg %p47
        %p519 = pneg %p71
        %p520 = pneg %p68
        %p521 = pneg %p92
        %p522 = pneg %p89
        %p523 = pneg %p113
        %p524 = pneg %p110
        %p525 = pneg %p134
        %p526 = pneg %p131
        %p527 = pneg %p155
        %p528 = pneg %p152
        %p529 = pneg %p176
        %p530 = pneg %p173
        %p531 = pneg %p197
        %p532 = pneg %p194
        %p533 = pneg %p218
        %p534 = pneg %p215
        %p535 = pneg %p239
        %p536 = pneg %p236
        %p537 = pneg %p260
        %p538 = pneg %p257
        %p539 = pneg %p281
        %p540 = pneg %p278
        %p541 = pneg %p302
        %p542 = pneg %p299
        %p543 = pneg %p328
        %p544 = pneg %p325
        %p545 = scmp.lt.s32.totalorder %s29, 1
        %s546 = scalar_select %p545, %s29, 1
        %s547 = smul.addr %s546, 8
        %s548 = scalar_lea.vmem %s13, %s547
        %p549 = scmp.lt.s32.totalorder %s29, 1
        %s550 = scalar_select %p549, %s29, 1
        %s551 = smul.addr %s550, 8
        %s552 = scalar_lea.vmem %s0, %s551
        %p553 = scmp.lt.s32.totalorder %s29, 1
        %s554 = scalar_select %p553, %s29, 1
        %s555 = smul.addr %s554, 8
        %s556 = scalar_lea.vmem %s13, %s555
        %v558 = vld [vmem:[%s552] sm:$0xff]
        %v559 = vld [vmem:[%s1] sm:$0x3]
        %v560 = vpack.c.bf16 %v558, %v558
        %v561 = vld [vmem:[%s2] sm:$0x1]
        %v563 = vperm.slane %v561, 0
        %vm565 = vcmask 31744
        %v567 = vsel %vm565, %v560, 0
        %vm569 = vcmask 1041408
        %v571 = vsel %vm569, %v559, 0
        %573 = vmatpush.bf16.msra.mxu0 0
        %574 = vmatpush.bf16.msra.mxu0 0
        %575 = vmatpush.bf16.msra.mxu0 0
        %576 = vmatpush.bf16.msra.mxu0 0
        %577 = vmatpush.bf16.msra.mxu0 0
        %578 = vmatpush.bf16.msra.mxu0 0
        %579 = vmatpush.bf16.msra.mxu0 0
        %580 = vmatpush.bf16.msra.mxu0 %v571
        %581 = vmatmul.bf16.gmra.mxu0 %v567
        %v582 = vpop.f32.mrf.mxu0
        %v583 = vadd.f32 %v563, %v582
        %v584 = vpop.f32.mrf.mxu0
        %585 = vdwg.mxu0
        %v586 = vmax.f32 %v583, 0.0
        %v587 = vld [vmem:[#allocation4] sm:$0x1]
        %vm588 = vcmask 261120
        %v589 = vsel %vm588, %v586, 0.0
        %590 = vadd.xlane.f32.xlu0 %v589
        %v591 = vpop.xlane.xlu0 %590
        %v592 = vrcp.pop 32.0
        %v593 = vmul.f32 32.0, %v592
        %v594 = vsub.f32 1.0, %v593
        %v595 = vmul.f32 %v592, %v594
        %v596 = vadd.f32 %v592, %v595
        %vm597 = vweird.f32 %v592
        %v598 = vsel %vm597, %v592, %v596
        %v599 = vmul.f32 %v591, %v598
        %v600 = vsub.f32 %v586, %v599
        %v601 = vmul.f32 %v600, %v600
        %v602 = vsel %vm588, %v601, 0.0
        %603 = vadd.xlane.f32.xlu0 %v602
        %v604 = vpop.xlane.xlu0 %603
        %v605 = vmul.f32 %v604, %v598
        %v606 = vadd.f32 %v605, 1e-05
        %v607 = vrsqrt.pop %v606
        %v608 = vmul.f32 %v607, %v606
        %v609 = vmul.f32 %v608, %v607
        %v610 = vmul.f32 0.5, %v609
        %v611 = vsub.f32 1.5, %v610
        %v612 = vmul.f32 %v607, %v611
        %vm613 = vweird.f32 %v606
        %vm614 = vweird.f32 %v607
        %vm615 = vmor %vm613, %vm614
        %v616 = vsel %vm615, %v607, %v612
        %v617 = vmul.f32 %v600, %v616
        %v619 = vperm.slane %v587, 0
        %v621 = vmul.f32 %v617, %v619
        %v622 = vld [vmem:[#allocation6] sm:$0xf]
        %v623 = vld [vmem:[#allocation6 + $0x4] sm:$0xf]
        %v624 = vld [vmem:[#allocation6 + $0x8] sm:$0xf]
        %v625 = vld [vmem:[#allocation6 + $0xc] sm:$0xf]
        %v626 = vpack.c.bf16 %v621, %v621
        %v631 = vunpack.c.l.b16 %v622
        %v632 = vunpack.c.l.b16 %v623
        %v633 = vunpack.c.l.b16 %v624
        %v634 = vunpack.c.l.b16 %v625
        %v635 = vpack.c.b16 %v632, %v631
        %v636 = vpack.c.b16 %v634, %v633
        %v640 = vsel %vm588, %v626, 0
        %642 = vmatpush.bf16.msra.mxu0 0
        %643 = vmatpush.bf16.msra.mxu0 0
        %644 = vmatpush.bf16.msra.mxu0 0
        %645 = vmatpush.bf16.msra.mxu0 0
        %646 = vmatpush.bf16.msra.mxu0 0
        %647 = vmatpush.bf16.msra.mxu0 0
        %648 = vmatpush.bf16.msra.mxu0 %v636
        %649 = vmatpush.bf16.msra.mxu0 %v635
        %650 = vmatmul.bf16.gmra.mxu0 %v640
        %v651 = vpop.f32.mrf.mxu0
        %v652 = vadd.f32 0.0, %v651
        %v653 = vpop.f32.mrf.mxu0
        %654 = vdwg.mxu0
        %v655 = vld [vmem:[#allocation9] sm:$0x1]
        %v656 = vld [vmem:[#allocation8 + $0x3] sm:$0x1]
        %v657 = vperm.slane %v656, 0
        %v658 = vmul.f32 %v652, %v657
        %vm659 = vcmask 523264
        %660 = vst.msk [vmem:[#allocation2] sm:$0xff] %vm659, %v658
        %v661 = vld [vmem:[#allocation2 + $0x3] sm:$0x1f]
        %v662 = vld [vmem:[#allocation8] sm:$0x1]
        %v663 = vperm.slane %v662, 0
        %v664 = vmul.f32 %v652, %v663
        %v665 = vadd.f32 %v661, %v664
        %vm666 = vcmask 520192
        %667 = vst.msk [vmem:[#allocation2 + $0x3] sm:$0x1f] %vm666, %v665
        %v668 = vld [vmem:[#allocation2 + $0x2] sm:$0x3f]
        %v669 = vld [vmem:[#allocation8 + $0x1] sm:$0x1]
        %v670 = vperm.slane %v669, 0
        %v671 = vmul.f32 %v652, %v670
        %v672 = vadd.f32 %v668, %v671
        %vm673 = vcmask 521216
        %674 = vst.msk [vmem:[#allocation2 + $0x2] sm:$0x3f] %vm673, %v672
        %v675 = vld [vmem:[#allocation2 + $0x1] sm:$0x7f]
        %v676 = vld [vmem:[#allocation8 + $0x2] sm:$0x1]
        %v677 = vperm.slane %v676, 0
        %v678 = vmul.f32 %v652, %v677
        %v679 = vadd.f32 %v675, %v678
        %vm680 = vcmask 522240
        %681 = vst.msk [vmem:[#allocation2 + $0x1] sm:$0x7f] %vm680, %v679
        %v682 = vld [vmem:[#allocation2] sm:$0xff]
        %v684 = vperm.slane %v655, 0
        %v686 = vadd.f32 %v682, %v684
        %v687 = vsub.f32 0.0, %v686
        %v688 = vmul.f32 %v687, 1.442695
        %v689 = vpow.pop %v688
        %v690 = vadd.f32 %v689, 1.0
        %v691 = vrcp.pop %v690
        %v692 = vmul.f32 %v690, %v691
        %v693 = vsub.f32 1.0, %v692
        %v694 = vmul.f32 %v691, %v693
        %v695 = vadd.f32 %v691, %v694
        %vm696 = vweird.f32 %v690
        %vm697 = vweird.f32 %v691
        %vm698 = vmor %vm696, %vm697
        %v699 = vsel %vm698, %v691, %v695
        %v700 = vand.u32 2147483647, %v690
        %vm701 = vcmp.eq.f32.partialorder %v700, 8.507059e+37
        %v702 = vand.u32 %v690, 2147483648
        %v703 = vor.u32 1.1754944e-38, %v702
        %v704 = vsel %vm701, %v703, %v699
        %v705 = vmul.f32 1.0, %v704
        %v706 = vmul.f32 %v686, %v705
        %v707 = vld [vmem:[#allocation11] sm:$0xff]
        %v708 = vld [vmem:[#allocation11 + $0x8] sm:$0xff]
        %v709 = vld [vmem:[#allocation11 + $0x10] sm:$0xff]
        %v710 = vld [vmem:[#allocation11 + $0x18] sm:$0xff]
        %v711 = vld [vmem:[#allocation11 + $0x20] sm:$0xff]
        %v712 = vld [vmem:[#allocation11 + $0x28] sm:$0xff]
        %v713 = vld [vmem:[#allocation11 + $0x30] sm:$0xff]
        %v714 = vld [vmem:[#allocation11 + $0x38] sm:$0xff]
        %v715 = vpack.c.bf16 %v706, %v706
        %v724 = vunpack.c.l.b16 %v707
        %v725 = vunpack.c.h.b16 %v707
        %v726 = vunpack.c.l.b16 %v708
        %v727 = vunpack.c.h.b16 %v708
        %v728 = vunpack.c.l.b16 %v709
        %v729 = vunpack.c.h.b16 %v709
        %v730 = vunpack.c.l.b16 %v710
        %v731 = vunpack.c.h.b16 %v710
        %v732 = vunpack.c.l.b16 %v711
        %v733 = vunpack.c.h.b16 %v711
        %v734 = vunpack.c.l.b16 %v712
        %v735 = vunpack.c.h.b16 %v712
        %v736 = vunpack.c.l.b16 %v713
        %v737 = vunpack.c.h.b16 %v713
        %v738 = vunpack.c.l.b16 %v714
        %v739 = vunpack.c.h.b16 %v714
        %v740 = vpack.c.b16 %v726, %v724
        %v741 = vpack.c.b16 %v727, %v725
        %v742 = vpack.c.b16 %v730, %v728
        %v743 = vpack.c.b16 %v731, %v729
        %v744 = vpack.c.b16 %v734, %v732
        %v745 = vpack.c.b16 %v735, %v733
        %v746 = vpack.c.b16 %v738, %v736
        %v747 = vpack.c.b16 %v739, %v737
        %v757 = vsel %vm659, %v715, 0
        %759 = vmatpush.bf16.msra.mxu0 0
        %760 = vmatpush.bf16.msra.mxu0 0
        %761 = vmatpush.bf16.msra.mxu0 0
        %762 = vmatpush.bf16.msra.mxu0 0
        %763 = vmatpush.bf16.msra.mxu0 %v746
        %764 = vmatpush.bf16.msra.mxu0 %v744
        %765 = vmatpush.bf16.msra.mxu0 %v742
        %766 = vmatpush.bf16.msra.mxu0 %v740
        %767 = vmatmul.bf16.gmra.mxu0 %v757
        %v768 = vpop.f32.mrf.mxu0
        %v769 = vadd.f32 0.0, %v768
        %v770 = vpop.f32.mrf.mxu0
        %771 = vdwg.mxu0
        %772 = vmatpush.bf16.msra.mxu0 0
        %773 = vmatpush.bf16.msra.mxu0 0
        %774 = vmatpush.bf16.msra.mxu0 0
        %775 = vmatpush.bf16.msra.mxu0 0
        %776 = vmatpush.bf16.msra.mxu0 %v747
        %777 = vmatpush.bf16.msra.mxu0 %v745
        %778 = vmatpush.bf16.msra.mxu0 %v743
        %779 = vmatpush.bf16.msra.mxu0 %v741
        %780 = vmatmul.bf16.gmra.mxu0 %v757
        %v781 = vpop.f32.mrf.mxu0
        %v782 = vadd.f32 0.0, %v781
        %v783 = vpop.f32.mrf.mxu0
        %784 = vdwg.mxu0
        %v785 = vld [vmem:[%s8] sm:$0xf]
        %v786 = vld [vmem:[%s8 + $0x4] sm:$0xf]
        %v787 = vld [vmem:[%s8 + $0x8] sm:$0xf]
        %v788 = vld [vmem:[%s8 + $0xc] sm:$0xf]
        %v789 = vld [vmem:[%s8 + $0x10] sm:$0xf]
        %v790 = vld [vmem:[%s8 + $0x14] sm:$0xf]
        %v791 = vld [vmem:[%s8 + $0x18] sm:$0xf]
        %v792 = vld [vmem:[%s8 + $0x1c] sm:$0xf]
        %v793 = vpack.c.bf16 %v652, %v652
        %v802 = vunpack.c.l.b16 %v785
        %v803 = vunpack.c.l.b16 %v786
        %v804 = vunpack.c.l.b16 %v787
        %v805 = vunpack.c.l.b16 %v788
        %v806 = vunpack.c.l.b16 %v789
        %v807 = vunpack.c.l.b16 %v790
        %v808 = vunpack.c.l.b16 %v791
        %v809 = vunpack.c.l.b16 %v792
        %v810 = vpack.c.b16 %v803, %v802
        %v811 = vpack.c.b16 %v805, %v804
        %v812 = vpack.c.b16 %v807, %v806
        %v813 = vpack.c.b16 %v809, %v808
        %v819 = vsel %vm659, %v793, 0
        %821 = vmatpush.bf16.msra.mxu0 0
        %822 = vmatpush.bf16.msra.mxu0 0
        %823 = vmatpush.bf16.msra.mxu0 0
        %824 = vmatpush.bf16.msra.mxu0 0
        %825 = vmatpush.bf16.msra.mxu0 %v813
        %826 = vmatpush.bf16.msra.mxu0 %v812
        %827 = vmatpush.bf16.msra.mxu0 %v811
        %828 = vmatpush.bf16.msra.mxu0 %v810
        %829 = vmatmul.bf16.gmra.mxu0 %v819
        %v830 = vpop.f32.mrf.mxu0
        %v831 = vadd.f32 0.0, %v830
        %v832 = vpop.f32.mrf.mxu0
        %833 = vdwg.mxu0
        %835 = vrot.lane.b32.xlu0 %v831, 64
        %v836 = vpop.permute.xlu0 %835
        %v838 = vadd.f32 %v782, %v836
        %v839 = vld [vmem:[#allocation12] sm:$0x1]
        %v841 = vperm.slane %v839, 0
        %v843 = vadd.f32 %v838, %v841
        %v844 = vmin.f32 %v843, 0.0
        %v845 = vand.u32 2147483647, %v843
        %v846 = vsub.f32 0.0, %v845
        %v847 = vmul.f32 %v846, 1.442695
        %v848 = vpow.pop %v847
        %v849 = vadd.f32 %v848, 1.0
        %v850 = vlog2.pop %v849
        %v851 = vmul.f32 %v850, 0.6931472
        %v852 = vsub.f32 %v844, %v851
        %v853 = vlaneseq
        %v854 = vshrl.u32 %v853, 7
        %v855 = vlaneseq
        %v856 = vand.u32 %v855, 127
        %vm857 = vcmp.ge.s32.totalorder %v854, %v856
        %vm858 = vcmp.eq.s32.totalorder %v854, %v856
        %v859 = vsel %vm857, 1, 0
        %v860 = vcvt.s32.f32 %v859
        %862 = vrot.lane.b32.xlu0 %v852, 124
        %v863 = vpop.permute.xlu0 %862
        %vm865 = vcmask 64512
        %v867 = vsel %vm865, %v860, 0
        %869 = vmatpush.msra.mxu0 0.0
        %870 = vmatpush.msra.mxu0 0.0
        %871 = vmatpush.msra.mxu0 0.0
        %872 = vmatpush.msra.mxu0 0.0
        %873 = vmatpush.msra.mxu0 0.0
        %874 = vmatpush.msra.mxu0 0.0
        %875 = vmatpush.msra.mxu0 0.0
        %876 = vmatpush.msra.mxu0 0.0
        %877 = vmatpush.msra.mxu0 0.0
        %878 = vmatpush.msra.mxu0 0.0
        %879 = vmatpush.msra.mxu0 0.0
        %880 = vmatpush.msra.mxu0 0.0
        %881 = vmatpush.msra.mxu0 0.0
        %882 = vmatpush.msra.mxu0 0.0
        %883 = vmatpush.msra.mxu0 0.0
        %884 = vmatpush.msra.mxu0 %v863
        %885 = vmatmul.f32.gmra.mxu0 %v867
        %v886 = vpop.f32.mrf.mxu0
        %v887 = vadd.f32 0.0, %v886
        %888 = vdwg.mxu0
        %v889 = vsub.f32 %v843, %v887
        %891 = vset.pattern.permute.xlu0 0
        %892 = vperm.xlu0 %891, %v889
        %v893 = vpop.permute.xlu0 %892
        %v895 = vsel %vm858, %v893, 0.0
        %v896 = vsel %vm865, %v895, 0.0
        %v897 = vrot.slane %v896, 4
        %v898 = vadd.f32 %v896, %v897
        %v899 = vrot.slane %v898, 2
        %v900 = vadd.f32 %v898, %v899
        %v901 = vrot.slane %v900, 1
        %v902 = vadd.f32 %v900, %v901
        %904 = vset.pattern.permute.xlu0 0
        %905 = vperm.xlu0 %904, %v887
        %v906 = vpop.permute.xlu0 %905
        %v908 = vadd.f32 %v906, %v902
        %v909 = vsel %vm857, %v908, -inf
        %v910 = vsel %vm865, %v909, -inf
        %911 = vmax.xlane.f32.xlu0 %v910
        %v912 = vpop.xlane.xlu0 %911
        %v913 = vsub.f32 %v909, %v912
        %v914 = vmul.f32 %v913, 1.442695
        %v915 = vpow.pop %v914
        %917 = vrot.lane.b32.xlu0 %v769, 64
        %v918 = vpop.permute.xlu0 %917
        %vm919 = vcmask 130048
        %v920 = vsel %vm919, %v769, 0
        %v922 = vsel %vm919, %v918, 0
        %924 = vmatpush.xpose.msra.mxu0 0.0
        %925 = vmatpush.xpose.msra.mxu0 0.0
        %926 = vmatpush.xpose.msra.mxu0 0.0
        %927 = vmatpush.xpose.msra.mxu0 0.0
        %928 = vmatpush.xpose.msra.mxu0 0.0
        %929 = vmatpush.xpose.msra.mxu0 0.0
        %930 = vmatpush.xpose.msra.mxu0 0.0
        %931 = vmatpush.xpose.msra.mxu0 0.0
        %932 = vmatpush.xpose.msra.mxu0 0.0
        %933 = vmatpush.xpose.msra.mxu0 0.0
        %934 = vmatpush.xpose.msra.mxu0 0.0
        %935 = vmatpush.xpose.msra.mxu0 0.0
        %936 = vmatpush.xpose.msra.mxu0 0.0
        %937 = vmatpush.xpose.msra.mxu0 0.0
        %938 = vmatpush.xpose.msra.mxu0 0.0
        %939 = vmatpush.xpose.msra.mxu0 %v922
        %940 = vmatmul.f32.gmra.mxu0 %v920
        %v941 = vpop.f32.mrf.mxu0
        %v942 = vadd.f32 0.0, %v941
        %943 = vdwg.mxu0
        %v944 = vmul.f32 %v942, 0.25
        %v945 = vmul.f32 %v944, %v915
        %v946 = vsel %vm865, %v945, 0.0
        %947 = vadd.xlane.f32.xlu0 %v946
        %v948 = vpop.xlane.xlu0 %947
        %v949 = vand.u32 2147483647, %v948
        %v950 = vsub.f32 0.0, %v912
        %v951 = vmul.f32 %v950, 1.442695
        %v952 = vpow.pop %v951
        %v953 = vmax.f32 %v949, %v952
        %v954 = vadd.f32 %v953, 1e-06
        %v955 = vrcp.pop %v954
        %v956 = vmul.f32 %v945, %v955
        %v958 = vsel %vm865, %v956, 0
        %960 = vmatpush.msra.mxu0 0.0
        %961 = vmatpush.msra.mxu0 0.0
        %962 = vmatpush.msra.mxu0 0.0
        %963 = vmatpush.msra.mxu0 0.0
        %964 = vmatpush.msra.mxu0 0.0
        %965 = vmatpush.msra.mxu0 0.0
        %966 = vmatpush.msra.mxu0 0.0
        %967 = vmatpush.msra.mxu0 0.0
        %968 = vmatpush.msra.mxu0 0.0
        %969 = vmatpush.msra.mxu0 0.0
        %970 = vmatpush.msra.mxu0 0.0
        %971 = vmatpush.msra.mxu0 0.0
        %972 = vmatpush.msra.mxu0 0.0
        %973 = vmatpush.msra.mxu0 0.0
        %974 = vmatpush.msra.mxu0 0.0
        %975 = vmatpush.msra.mxu0 %v831
        %976 = vmatmul.f32.gmra.mxu0 %v958
        %v977 = vpop.f32.mrf.mxu0
        %v978 = vadd.f32 0.0, %v977
        %979 = vdwg.mxu0
        %v980 = vsel %vm919, %v978, 0.0
        %981 = vadd.xlane.f32.xlu0 %v980
        %v982 = vpop.xlane.xlu0 %981
        %v983 = vrcp.pop 16.0
        %v984 = vmul.f32 16.0, %v983
        %v985 = vsub.f32 1.0, %v984
        %v986 = vmul.f32 %v983, %v985
        %v987 = vadd.f32 %v983, %v986
        %vm988 = vweird.f32 %v983
        %v989 = vsel %vm988, %v983, %v987
        %v990 = vmul.f32 %v982, %v989
        %v991 = vsub.f32 %v978, %v990
        %v992 = vmul.f32 %v991, %v991
        %v993 = vsel %vm919, %v992, 0.0
        %994 = vadd.xlane.f32.xlu0 %v993
        %v995 = vpop.xlane.xlu0 %994
        %v996 = vmul.f32 %v995, %v989
        %v997 = vadd.f32 %v996, 1e-05
        %v998 = vrsqrt.pop %v997
        %v999 = vmul.f32 %v998, %v997
        %v1000 = vmul.f32 %v999, %v998
        %v1001 = vmul.f32 0.5, %v1000
        %v1002 = vsub.f32 1.5, %v1001
        %v1003 = vmul.f32 %v998, %v1002
        %vm1004 = vweird.f32 %v997
        %vm1005 = vweird.f32 %v998
        %vm1006 = vmor %vm1004, %vm1005
        %v1007 = vsel %vm1006, %v998, %v1003
        %v1008 = vmul.f32 %v991, %v1007
        %v1009 = vld [vmem:[#allocation14] sm:$0x1]
        %v1011 = vperm.slane %v1009, 0
        %v1013 = vmul.f32 %v1008, %v1011
        %1014 = vst.msk [vmem:[#allocation3] sm:$0xff] %vm919, %v1013
        %1015 = vset.pattern.permute.xlu0 1
        %1016 = vperm.xlu0 %1015, %v889
        %v1017 = vpop.permute.xlu0 %1016
        %v1019 = vsel %vm858, %v1017, 0.0
        %v1020 = vsel %vm865, %v1019, 0.0
        %v1021 = vrot.slane %v1020, 4
        %v1022 = vadd.f32 %v1020, %v1021
        %v1023 = vrot.slane %v1022, 2
        %v1024 = vadd.f32 %v1022, %v1023
        %v1025 = vrot.slane %v1024, 1
        %v1026 = vadd.f32 %v1024, %v1025
        %1027 = vset.pattern.permute.xlu0 1
        %1028 = vperm.xlu0 %1027, %v887
        %v1029 = vpop.permute.xlu0 %1028
        %v1031 = vadd.f32 %v1029, %v1026
        %v1032 = vsel %vm857, %v1031, -inf
        %v1033 = vsel %vm865, %v1032, -inf
        %1034 = vmax.xlane.f32.xlu0 %v1033
        %v1035 = vpop.xlane.xlu0 %1034
        %v1036 = vsub.f32 %v1032, %v1035
        %v1037 = vmul.f32 %v1036, 1.442695
        %v1038 = vpow.pop %v1037
        %1039 = vrot.lane.b32.xlu0 %v769, 112
        %v1040 = vpop.permute.xlu0 %1039
        %1041 = vrot.lane.b32.xlu0 %v769, 48
        %v1042 = vpop.permute.xlu0 %1041
        %v1043 = vsel %vm919, %v1040, 0
        %v1045 = vsel %vm919, %v1042, 0
        %1047 = vmatpush.xpose.msra.mxu0 0.0
        %1048 = vmatpush.xpose.msra.mxu0 0.0
        %1049 = vmatpush.xpose.msra.mxu0 0.0
        %1050 = vmatpush.xpose.msra.mxu0 0.0
        %1051 = vmatpush.xpose.msra.mxu0 0.0
        %1052 = vmatpush.xpose.msra.mxu0 0.0
        %1053 = vmatpush.xpose.msra.mxu0 0.0
        %1054 = vmatpush.xpose.msra.mxu0 0.0
        %1055 = vmatpush.xpose.msra.mxu0 0.0
        %1056 = vmatpush.xpose.msra.mxu0 0.0
        %1057 = vmatpush.xpose.msra.mxu0 0.0
        %1058 = vmatpush.xpose.msra.mxu0 0.0
        %1059 = vmatpush.xpose.msra.mxu0 0.0
        %1060 = vmatpush.xpose.msra.mxu0 0.0
        %1061 = vmatpush.xpose.msra.mxu0 0.0
        %1062 = vmatpush.xpose.msra.mxu0 %v1045
        %1063 = vmatmul.f32.gmra.mxu0 %v1043
        %v1064 = vpop.f32.mrf.mxu0
        %v1065 = vadd.f32 0.0, %v1064
        %1066 = vdwg.mxu0
        %v1067 = vmul.f32 %v1065, 0.25
        %v1068 = vmul.f32 %v1067, %v1038
        %v1069 = vsel %vm865, %v1068, 0.0
        %1070 = vadd.xlane.f32.xlu0 %v1069
        %v1071 = vpop.xlane.xlu0 %1070
        %v1072 = vand.u32 2147483647, %v1071
        %v1073 = vsub.f32 0.0, %v1035
        %v1074 = vmul.f32 %v1073, 1.442695
        %v1075 = vpow.pop %v1074
        %v1076 = vmax.f32 %v1072, %v1075
        %v1077 = vadd.f32 %v1076, 1e-06
        %v1078 = vrcp.pop %v1077
        %v1079 = vmul.f32 %v1068, %v1078
        %1080 = vrot.lane.b32.xlu0 %v831, 112
        %v1081 = vpop.permute.xlu0 %1080
        %v1084 = vsel %vm865, %v1079, 0
        %1086 = vmatpush.msra.mxu0 0.0
        %1087 = vmatpush.msra.mxu0 0.0
        %1088 = vmatpush.msra.mxu0 0.0
        %1089 = vmatpush.msra.mxu0 0.0
        %1090 = vmatpush.msra.mxu0 0.0
        %1091 = vmatpush.msra.mxu0 0.0
        %1092 = vmatpush.msra.mxu0 0.0
        %1093 = vmatpush.msra.mxu0 0.0
        %1094 = vmatpush.msra.mxu0 0.0
        %1095 = vmatpush.msra.mxu0 0.0
        %1096 = vmatpush.msra.mxu0 0.0
        %1097 = vmatpush.msra.mxu0 0.0
        %1098 = vmatpush.msra.mxu0 0.0
        %1099 = vmatpush.msra.mxu0 0.0
        %1100 = vmatpush.msra.mxu0 0.0
        %1101 = vmatpush.msra.mxu0 %v1081
        %1102 = vmatmul.f32.gmra.mxu0 %v1084
        %v1103 = vpop.f32.mrf.mxu0
        %v1104 = vadd.f32 0.0, %v1103
        %1105 = vdwg.mxu0
        %v1106 = vsel %vm919, %v1104, 0.0
        %1107 = vadd.xlane.f32.xlu0 %v1106
        %v1108 = vpop.xlane.xlu0 %1107
        %v1109 = vmul.f32 %v1108, %v989
        %v1110 = vsub.f32 %v1104, %v1109
        %v1111 = vmul.f32 %v1110, %v1110
        %v1112 = vsel %vm919, %v1111, 0.0
        %1113 = vadd.xlane.f32.xlu0 %v1112
        %v1114 = vpop.xlane.xlu0 %1113
        %v1115 = vmul.f32 %v1114, %v989
        %v1116 = vadd.f32 %v1115, 1e-05
        %v1117 = vrsqrt.pop %v1116
        %v1118 = vmul.f32 %v1117, %v1116
        %v1119 = vmul.f32 %v1118, %v1117
        %v1120 = vmul.f32 0.5, %v1119
        %v1121 = vsub.f32 1.5, %v1120
        %v1122 = vmul.f32 %v1117, %v1121
        %vm1123 = vweird.f32 %v1116
        %vm1124 = vweird.f32 %v1117
        %vm1125 = vmor %vm1123, %vm1124
        %v1126 = vsel %vm1125, %v1117, %v1122
        %v1127 = vmul.f32 %v1110, %v1126
        %v1128 = vld [vmem:[#allocation14] sm:$0x1]
        %v1130 = vperm.slane %v1128, 0
        %1131 = vrot.lane.b32.xlu0 %v1130, 112
        %v1132 = vpop.permute.xlu0 %1131
        %v1134 = vmul.f32 %v1127, %v1132
        %1136 = vrot.lane.b32.xlu0 %v1134, 16
        %v1137 = vpop.permute.xlu0 %1136
        %vm1139 = vcmask 261248
        %1140 = vst.msk [vmem:[#allocation3] sm:$0xff] %vm1139, %v1137
        %1141 = vset.pattern.permute.xlu0 2
        %1142 = vperm.xlu0 %1141, %v889
        %v1143 = vpop.permute.xlu0 %1142
        %v1145 = vsel %vm858, %v1143, 0.0
        %v1146 = vsel %vm865, %v1145, 0.0
        %v1147 = vrot.slane %v1146, 4
        %v1148 = vadd.f32 %v1146, %v1147
        %v1149 = vrot.slane %v1148, 2
        %v1150 = vadd.f32 %v1148, %v1149
        %v1151 = vrot.slane %v1150, 1
        %v1152 = vadd.f32 %v1150, %v1151
        %1153 = vset.pattern.permute.xlu0 2
        %1154 = vperm.xlu0 %1153, %v887
        %v1155 = vpop.permute.xlu0 %1154
        %v1157 = vadd.f32 %v1155, %v1152
        %v1158 = vsel %vm857, %v1157, -inf
        %v1159 = vsel %vm865, %v1158, -inf
        %1160 = vmax.xlane.f32.xlu0 %v1159
        %v1161 = vpop.xlane.xlu0 %1160
        %v1162 = vsub.f32 %v1158, %v1161
        %v1163 = vmul.f32 %v1162, 1.442695
        %v1164 = vpow.pop %v1163
        %1165 = vrot.lane.b32.xlu0 %v769, 96
        %v1166 = vpop.permute.xlu0 %1165
        %1167 = vrot.lane.b32.xlu0 %v769, 32
        %v1168 = vpop.permute.xlu0 %1167
        %v1169 = vsel %vm919, %v1166, 0
        %v1171 = vsel %vm919, %v1168, 0
        %1173 = vmatpush.xpose.msra.mxu0 0.0
        %1174 = vmatpush.xpose.msra.mxu0 0.0
        %1175 = vmatpush.xpose.msra.mxu0 0.0
        %1176 = vmatpush.xpose.msra.mxu0 0.0
        %1177 = vmatpush.xpose.msra.mxu0 0.0
        %1178 = vmatpush.xpose.msra.mxu0 0.0
        %1179 = vmatpush.xpose.msra.mxu0 0.0
        %1180 = vmatpush.xpose.msra.mxu0 0.0
        %1181 = vmatpush.xpose.msra.mxu0 0.0
        %1182 = vmatpush.xpose.msra.mxu0 0.0
        %1183 = vmatpush.xpose.msra.mxu0 0.0
        %1184 = vmatpush.xpose.msra.mxu0 0.0
        %1185 = vmatpush.xpose.msra.mxu0 0.0
        %1186 = vmatpush.xpose.msra.mxu0 0.0
        %1187 = vmatpush.xpose.msra.mxu0 0.0
        %1188 = vmatpush.xpose.msra.mxu0 %v1171
        %1189 = vmatmul.f32.gmra.mxu0 %v1169
        %v1190 = vpop.f32.mrf.mxu0
        %v1191 = vadd.f32 0.0, %v1190
        %1192 = vdwg.mxu0
        %v1193 = vmul.f32 %v1191, 0.25
        %v1194 = vmul.f32 %v1193, %v1164
        %v1195 = vsel %vm865, %v1194, 0.0
        %1196 = vadd.xlane.f32.xlu0 %v1195
        %v1197 = vpop.xlane.xlu0 %1196
        %v1198 = vand.u32 2147483647, %v1197
        %v1199 = vsub.f32 0.0, %v1161
        %v1200 = vmul.f32 %v1199, 1.442695
        %v1201 = vpow.pop %v1200
        %v1202 = vmax.f32 %v1198, %v1201
        %v1203 = vadd.f32 %v1202, 1e-06
        %v1204 = vrcp.pop %v1203
        %v1205 = vmul.f32 %v1194, %v1204
        %1206 = vrot.lane.b32.xlu0 %v831, 96
        %v1207 = vpop.permute.xlu0 %1206
        %v1210 = vsel %vm865, %v1205, 0
        %1212 = vmatpush.msra.mxu0 0.0
        %1213 = vmatpush.msra.mxu0 0.0
        %1214 = vmatpush.msra.mxu0 0.0
        %1215 = vmatpush.msra.mxu0 0.0
        %1216 = vmatpush.msra.mxu0 0.0
        %1217 = vmatpush.msra.mxu0 0.0
        %1218 = vmatpush.msra.mxu0 0.0
        %1219 = vmatpush.msra.mxu0 0.0
        %1220 = vmatpush.msra.mxu0 0.0
        %1221 = vmatpush.msra.mxu0 0.0
        %1222 = vmatpush.msra.mxu0 0.0
        %1223 = vmatpush.msra.mxu0 0.0
        %1224 = vmatpush.msra.mxu0 0.0
        %1225 = vmatpush.msra.mxu0 0.0
        %1226 = vmatpush.msra.mxu0 0.0
        %1227 = vmatpush.msra.mxu0 %v1207
        %1228 = vmatmul.f32.gmra.mxu0 %v1210
        %v1229 = vpop.f32.mrf.mxu0
        %v1230 = vadd.f32 0.0, %v1229
        %1231 = vdwg.mxu0
        %v1232 = vsel %vm919, %v1230, 0.0
        %1233 = vadd.xlane.f32.xlu0 %v1232
        %v1234 = vpop.xlane.xlu0 %1233
        %v1235 = vmul.f32 %v1234, %v989
        %v1236 = vsub.f32 %v1230, %v1235
        %v1237 = vmul.f32 %v1236, %v1236
        %v1238 = vsel %vm919, %v1237, 0.0
        %1239 = vadd.xlane.f32.xlu0 %v1238
        %v1240 = vpop.xlane.xlu0 %1239
        %v1241 = vmul.f32 %v1240, %v989
        %v1242 = vadd.f32 %v1241, 1e-05
        %v1243 = vrsqrt.pop %v1242
        %v1244 = vmul.f32 %v1243, %v1242
        %v1245 = vmul.f32 %v1244, %v1243
        %v1246 = vmul.f32 0.5, %v1245
        %v1247 = vsub.f32 1.5, %v1246
        %v1248 = vmul.f32 %v1243, %v1247
        %vm1249 = vweird.f32 %v1242
        %vm1250 = vweird.f32 %v1243
        %vm1251 = vmor %vm1249, %vm1250
        %v1252 = vsel %vm1251, %v1243, %v1248
        %v1253 = vmul.f32 %v1236, %v1252
        %v1254 = vld [vmem:[#allocation14] sm:$0x1]
        %v1256 = vperm.slane %v1254, 0
        %1257 = vrot.lane.b32.xlu0 %v1256, 96
        %v1258 = vpop.permute.xlu0 %1257
        %v1260 = vmul.f32 %v1253, %v1258
        %1262 = vrot.lane.b32.xlu0 %v1260, 32
        %v1263 = vpop.permute.xlu0 %1262
        %vm1265 = vcmask 392448
        %1266 = vst.msk [vmem:[#allocation3] sm:$0xff] %vm1265, %v1263
        %1267 = vset.pattern.permute.xlu0 3
        %1268 = vperm.xlu0 %1267, %v889
        %v1269 = vpop.permute.xlu0 %1268
        %v1271 = vsel %vm858, %v1269, 0.0
        %v1272 = vsel %vm865, %v1271, 0.0
        %v1273 = vrot.slane %v1272, 4
        %v1274 = vadd.f32 %v1272, %v1273
        %v1275 = vrot.slane %v1274, 2
        %v1276 = vadd.f32 %v1274, %v1275
        %v1277 = vrot.slane %v1276, 1
        %v1278 = vadd.f32 %v1276, %v1277
        %1279 = vset.pattern.permute.xlu0 3
        %1280 = vperm.xlu0 %1279, %v887
        %v1281 = vpop.permute.xlu0 %1280
        %v1283 = vadd.f32 %v1281, %v1278
        %v1284 = vsel %vm857, %v1283, -inf
        %v1285 = vsel %vm865, %v1284, -inf
        %1286 = vmax.xlane.f32.xlu0 %v1285
        %v1287 = vpop.xlane.xlu0 %1286
        %v1288 = vsub.f32 %v1284, %v1287
        %v1289 = vmul.f32 %v1288, 1.442695
        %v1290 = vpow.pop %v1289
        %1291 = vrot.lane.b32.xlu0 %v769, 80
        %v1292 = vpop.permute.xlu0 %1291
        %1293 = vrot.lane.b32.xlu0 %v769, 16
        %v1294 = vpop.permute.xlu0 %1293
        %v1295 = vsel %vm919, %v1292, 0
        %v1297 = vsel %vm919, %v1294, 0
        %1299 = vmatpush.xpose.msra.mxu0 0.0
        %1300 = vmatpush.xpose.msra.mxu0 0.0
        %1301 = vmatpush.xpose.msra.mxu0 0.0
        %1302 = vmatpush.xpose.msra.mxu0 0.0
        %1303 = vmatpush.xpose.msra.mxu0 0.0
        %1304 = vmatpush.xpose.msra.mxu0 0.0
        %1305 = vmatpush.xpose.msra.mxu0 0.0
        %1306 = vmatpush.xpose.msra.mxu0 0.0
        %1307 = vmatpush.xpose.msra.mxu0 0.0
        %1308 = vmatpush.xpose.msra.mxu0 0.0
        %1309 = vmatpush.xpose.msra.mxu0 0.0
        %1310 = vmatpush.xpose.msra.mxu0 0.0
        %1311 = vmatpush.xpose.msra.mxu0 0.0
        %1312 = vmatpush.xpose.msra.mxu0 0.0
        %1313 = vmatpush.xpose.msra.mxu0 0.0
        %1314 = vmatpush.xpose.msra.mxu0 %v1297
        %1315 = vmatmul.f32.gmra.mxu0 %v1295
        %v1316 = vpop.f32.mrf.mxu0
        %v1317 = vadd.f32 0.0, %v1316
        %1318 = vdwg.mxu0
        %v1319 = vmul.f32 %v1317, 0.25
        %v1320 = vmul.f32 %v1319, %v1290
        %v1321 = vsel %vm865, %v1320, 0.0
        %1322 = vadd.xlane.f32.xlu0 %v1321
        %v1323 = vpop.xlane.xlu0 %1322
        %v1324 = vand.u32 2147483647, %v1323
        %v1325 = vsub.f32 0.0, %v1287
        %v1326 = vmul.f32 %v1325, 1.442695
        %v1327 = vpow.pop %v1326
        %v1328 = vmax.f32 %v1324, %v1327
        %v1329 = vadd.f32 %v1328, 1e-06
        %v1330 = vrcp.pop %v1329
        %v1331 = vmul.f32 %v1320, %v1330
        %1332 = vrot.lane.b32.xlu0 %v831, 80
        %v1333 = vpop.permute.xlu0 %1332
        %v1336 = vsel %vm865, %v1331, 0
        %1338 = vmatpush.msra.mxu0 0.0
        %1339 = vmatpush.msra.mxu0 0.0
        %1340 = vmatpush.msra.mxu0 0.0
        %1341 = vmatpush.msra.mxu0 0.0
        %1342 = vmatpush.msra.mxu0 0.0
        %1343 = vmatpush.msra.mxu0 0.0
        %1344 = vmatpush.msra.mxu0 0.0
        %1345 = vmatpush.msra.mxu0 0.0
        %1346 = vmatpush.msra.mxu0 0.0
        %1347 = vmatpush.msra.mxu0 0.0
        %1348 = vmatpush.msra.mxu0 0.0
        %1349 = vmatpush.msra.mxu0 0.0
        %1350 = vmatpush.msra.mxu0 0.0
        %1351 = vmatpush.msra.mxu0 0.0
        %1352 = vmatpush.msra.mxu0 0.0
        %1353 = vmatpush.msra.mxu0 %v1333
        %1354 = vmatmul.f32.gmra.mxu0 %v1336
        %v1355 = vpop.f32.mrf.mxu0
        %v1356 = vadd.f32 0.0, %v1355
        %1357 = vdwg.mxu0
        %v1358 = vsel %vm919, %v1356, 0.0
        %1359 = vadd.xlane.f32.xlu0 %v1358
        %v1360 = vpop.xlane.xlu0 %1359
        %v1361 = vmul.f32 %v1360, %v989
        %v1362 = vsub.f32 %v1356, %v1361
        %v1363 = vmul.f32 %v1362, %v1362
        %v1364 = vsel %vm919, %v1363, 0.0
        %1365 = vadd.xlane.f32.xlu0 %v1364
        %v1366 = vpop.xlane.xlu0 %1365
        %v1367 = vmul.f32 %v1366, %v989
        %v1368 = vadd.f32 %v1367, 1e-05
        %v1369 = vrsqrt.pop %v1368
        %v1370 = vmul.f32 %v1369, %v1368
        %v1371 = vmul.f32 %v1370, %v1369
        %v1372 = vmul.f32 0.5, %v1371
        %v1373 = vsub.f32 1.5, %v1372
        %v1374 = vmul.f32 %v1369, %v1373
        %vm1375 = vweird.f32 %v1368
        %vm1376 = vweird.f32 %v1369
        %vm1377 = vmor %vm1375, %vm1376
        %v1378 = vsel %vm1377, %v1369, %v1374
        %v1379 = vmul.f32 %v1362, %v1378
        %v1380 = vld [vmem:[#allocation14] sm:$0x1]
        %v1382 = vperm.slane %v1380, 0
        %1383 = vrot.lane.b32.xlu0 %v1382, 80
        %v1384 = vpop.permute.xlu0 %1383
        %v1386 = vmul.f32 %v1379, %v1384
        %1388 = vrot.lane.b32.xlu0 %v1386, 48
        %v1389 = vpop.permute.xlu0 %1388
        %vm1391 = vcmask 523648
        %1392 = vst.msk [vmem:[#allocation3] sm:$0xff] %vm1391, %v1389
        %v1393 = vld [vmem:[#allocation3] sm:$0xff]
        %v1394 = vld [vmem:[#allocation15] sm:$0x1]
        %v1396 = vperm.slane %v1394, 0
        %v1398 = vmul.f32 %v1396, %v706
        %v1399 = vadd.f32 %v1393, %v1398
        %v1400 = vsub.f32 0.0, %v652
        %v1401 = vmul.f32 %v1400, 1.442695
        %v1402 = vpow.pop %v1401
        %v1403 = vadd.f32 %v1402, 1.0
        %v1404 = vrcp.pop %v1403
        %v1405 = vmul.f32 %v1403, %v1404
        %v1406 = vsub.f32 1.0, %v1405
        %v1407 = vmul.f32 %v1404, %v1406
        %v1408 = vadd.f32 %v1404, %v1407
        %vm1409 = vweird.f32 %v1403
        %vm1410 = vweird.f32 %v1404
        %vm1411 = vmor %vm1409, %vm1410
        %v1412 = vsel %vm1411, %v1404, %v1408
        %v1413 = vand.u32 2147483647, %v1403
        %vm1414 = vcmp.eq.f32.partialorder %v1413, 8.507059e+37
        %v1415 = vand.u32 %v1403, 2147483648
        %v1416 = vor.u32 1.1754944e-38, %v1415
        %v1417 = vsel %vm1414, %v1416, %v1412
        %v1418 = vmul.f32 1.0, %v1417
        %v1419 = vmul.f32 %v652, %v1418
        %1421 = vrot.lane.b32.xlu0 %v1419, 64
        %v1422 = vpop.permute.xlu0 %1421
        %v1424 = vmul.f32 %v1399, %v1422
        %v1425 = vld [vmem:[%s12] sm:$0xf]
        %v1426 = vld [vmem:[%s12 + $0x4] sm:$0xf]
        %v1427 = vld [vmem:[%s12 + $0x8] sm:$0xf]
        %v1428 = vld [vmem:[%s12 + $0xc] sm:$0xf]
        %v1429 = vld [vmem:[%s12 + $0x10] sm:$0xf]
        %v1430 = vld [vmem:[%s12 + $0x14] sm:$0xf]
        %v1431 = vld [vmem:[%s12 + $0x18] sm:$0xf]
        %v1432 = vld [vmem:[%s12 + $0x1c] sm:$0xf]
        %v1433 = vpack.c.bf16 %v1424, %v1424
        %v1442 = vunpack.c.l.b16 %v1425
        %v1443 = vunpack.c.l.b16 %v1426
        %v1444 = vunpack.c.l.b16 %v1427
        %v1445 = vunpack.c.l.b16 %v1428
        %v1446 = vunpack.c.l.b16 %v1429
        %v1447 = vunpack.c.l.b16 %v1430
        %v1448 = vunpack.c.l.b16 %v1431
        %v1449 = vunpack.c.l.b16 %v1432
        %v1450 = vpack.c.b16 %v1443, %v1442
        %v1451 = vpack.c.b16 %v1445, %v1444
        %v1452 = vpack.c.b16 %v1447, %v1446
        %v1453 = vpack.c.b16 %v1449, %v1448
        %v1459 = vsel %vm659, %v1433, 0
        %1461 = vmatpush.bf16.msra.mxu0 0
        %1462 = vmatpush.bf16.msra.mxu0 0
        %1463 = vmatpush.bf16.msra.mxu0 0
        %1464 = vmatpush.bf16.msra.mxu0 0
        %1465 = vmatpush.bf16.msra.mxu0 %v1453
        %1466 = vmatpush.bf16.msra.mxu0 %v1452
        %1467 = vmatpush.bf16.msra.mxu0 %v1451
        %1468 = vmatpush.bf16.msra.mxu0 %v1450
        %1469 = vmatmul.bf16.gmra.mxu0 %v1459
        %v1470 = vpop.f32.mrf.mxu0
        %v1471 = vadd.f32 0.0, %v1470
        %v1472 = vpop.f32.mrf.mxu0
        %1473 = vdwg.mxu0
        %v1474 = vadd.f32 %v586, %v1471
        %1475 = vst.msk [vmem:[%s556] sm:$0xff] %vm588, %v1474
        %p1476 = scmp.lt.s32.totalorder %s29, 1
        %s1477 = scalar_select %p1476, %s29, 1
        %s1478 = smul.addr %s1477, 8
        %s1479 = scalar_lea.vmem %s13, %s1478
        // Predicated region
        $region105: #{_lambda_.3} parent=71 // pred_check
          %p1480 = pneg %p325
        $region106: #{_lambda_.3} parent=71 // pred_check_branch
          %1482 = sbr.rel (%p1480) target = $region108
        $region107: #{_lambda_.3} parent=71 // pred_region
          _
        $region108: #{_lambda_.3} parent=71 // pred_fallthru
          _
      $region72: #{_lambda_.3} parent=5 // pred_fallthru
        _
      %p1483 = scmp.le.s32.totalorder 2, %s24
      // Predicated region
      $region109: #{_lambda_.3} parent=5 // pred_check
        %p1484 = pneg %p1483
      $region110: #{_lambda_.3} parent=5 // pred_check_branch
        %1486 = sbr.rel (%p1484) target = $region112
      $region111: #{_lambda_.3} parent=5 // pred_region
        %s1487 = ssub.s32 %s24, 2
        // Predicated region
        $region113: #{_lambda_.3} parent=111 // pred_check
          %p1488 = pneg %p331
        $region114: #{_lambda_.3} parent=111 // pred_check_branch
          %1490 = sbr.rel (%p1488) target = $region116
        $region115: #{_lambda_.3} parent=111 // pred_region
          %p1491 = scmp.lt.s32.totalorder %s30, 1
          %s1492 = scalar_select %p1491, %s30, 1
          %s1493 = smul.addr %s1492, 8
          %s1494 = scalar_lea.vmem %s13, %s1493
        $region116: #{_lambda_.3} parent=111 // pred_fallthru
          _
      $region112: #{_lambda_.3} parent=5 // pred_fallthru
        _
    $region6: #{_lambda_.3} parent=1 // loop_footer
      %s28 = sadd.s32 1, %s24
    $region7: #{_lambda_.3} parent=1 // loop_footer_branch
      %23 = sbr.rel target = $region3
    $region8: #{_lambda_.3} parent=1 // loop_exit
      _
    %1495 = vsyncpa [#allocation5], 1
    %s1496 = scalar_lea.sflag [#allocation5], 1
    %1497 = vsyncpa %s1496, 1
    %1498 = vsyncpa [#allocation7], 1
    %1499 = vsyncpa [#allocation10], 1
    %1500 = vsyncpa [#allocation13], 1
    %1501 = vsyncpa [#allocation16], 1

</llo_original>
